<compile_context>
chip_gen: v7x
topology: tpu7x:2x2x1
jax: 0.10.0
libtpu: 0.0.40
codegen_flags: <defaults>
</compile_context>

<pallas_src>
import numpy as np
import jax
import jax.numpy as jnp
from jax.experimental import pallas as pl
from jax.experimental.pallas import tpu as pltpu

# ---------------- config (small, consistent with the module) ----------------
BATCH = 2            # batch_size
NUM_EPOCH = 8        # num_epoch (sequence of epochs)
IN_CH = 4            # input_channels
SPATIAL = 16         # H = W
FEATURE_DIM = 32     # feature_dim
PRED_STEPS = 2       # pred_steps
NUM_GRU_LAYERS = 2   # agg = GRU(num_layers=2)
USE_TEMPERATURE = True
TEMPERATURE = 0.07

VMEM_SPEC = pl.BlockSpec(memory_space=pltpu.MemorySpace.VMEM)


# ---------------------------------------------------------------------------
# Single fused kernel: encoder -> ReLU -> GRU(T steps, 2 layers) ->
# prediction loop (predictor MLP + 1-step GRU rollouts) -> normalized logits.
# ---------------------------------------------------------------------------
def dpcm_fused_kernel(x_ref, perm_ref, enc_w_ref, enc_b_ref,
                      wih_ref, whh_ref, bih_ref, bhh_ref,
                      pw1_ref, pb1_ref, pw2_ref, pb2_ref,
                      o_ref):
    B, N, ps, D, L = BATCH, NUM_EPOCH, PRED_STEPS, FEATURE_DIM, NUM_GRU_LAYERS
    T = N - ps

    # ---- encoder (stand-in linear): rows arrive in (batch, epoch) order -----
    feat_bn = (jnp.dot(x_ref[...], enc_w_ref[...],
                       preferred_element_type=jnp.float32) + enc_b_ref[...])
    # One tiny constant-permutation matmul (16x16 @ 16x32) re-orders feature
    # rows to (epoch, batch) order: row n*B + b == feature_q[b, n].  This
    # replaces the previous wrapper-side transpose launch + HBM round trip.
    feat = jnp.dot(perm_ref[...], feat_bn, preferred_element_type=jnp.float32)
    feat_relu = jnp.maximum(feat, 0.0)

    # ---- hoist all loop-invariant weight/bias loads & broadcasts ------------
    wih = [wih_ref[l] for l in range(L)]                       # (D, 3D)
    whh = [whh_ref[l] for l in range(L)]                       # (D, 3D)
    bih = [jnp.broadcast_to(bih_ref[l], (B, 3 * D)) for l in range(L)]
    bhh = [jnp.broadcast_to(bhh_ref[l], (B, 3 * D)) for l in range(L)]
    pw1, pw2 = pw1_ref[...], pw2_ref[...]
    pb1 = jnp.broadcast_to(pb1_ref[...], (B, D))
    pb2 = jnp.broadcast_to(pb2_ref[...], (B, D))

    # ---- GRU cell (PyTorch nn.GRU gate math), gates fused along lanes -------
    def cell_from_gi(gi, h, layer):
        gh = (jnp.dot(h, whh[layer], preferred_element_type=jnp.float32)
              + bhh[layer])                                    # (B, 3D)
        r = jax.nn.sigmoid(gi[:, 0:D] + gh[:, 0:D])
        z = jax.nn.sigmoid(gi[:, D:2 * D] + gh[:, D:2 * D])
        n = jnp.tanh(gi[:, 2 * D:3 * D] + r * gh[:, 2 * D:3 * D])
        return (1.0 - z) * n + z * h

    def cell(x, h, layer):
        gi = (jnp.dot(x, wih[layer], preferred_element_type=jnp.float32)
              + bih[layer])
        return cell_from_gi(gi, h, layer)

    # ---- hoisted layer-0 input->hidden transform (one 96-lane matmul) -------
    seq_in = feat_relu[:T * B, :]                              # (T*B, D), time-major
    gi0 = (jnp.dot(seq_in, wih[0], preferred_element_type=jnp.float32)
           + bih_ref[0])                                       # (T*B, 3D)

    # ---- recurrence over T observed timesteps (states live in vregs) --------
    h = [jnp.zeros((B, D), jnp.float32) for _ in range(L)]
    for t in range(T):
        h[0] = cell_from_gi(gi0[t * B:(t + 1) * B, :], h[0], 0)
        inp = h[0]
        for layer in range(1, L):
            h[layer] = cell(inp, h[layer], layer)
            inp = h[layer]

    # ---- prediction loop: predictor MLP + single-step GRU rollouts ----------
    c_next = h[L - 1]
    preds = []
    for _ in range(ps):
        z1 = jnp.maximum(
            jnp.dot(c_next, pw1, preferred_element_type=jnp.float32) + pb1, 0.0)
        z = jnp.dot(z1, pw2, preferred_element_type=jnp.float32) + pb2
        preds.append(z)
        inp = z
        for layer in range(L):
            h[layer] = cell(inp, h[layer], layer)
            inp = h[layer]
        c_next = h[L - 1]

    # pred rows in (batch, step) order == torch.stack(pred, 1).view(B*ps, D)
    pred_flat = jnp.stack(preds, axis=1).reshape(B * ps, D)

    # ---- logits: optional L2-normalize (EUP rsqrt), 1/temperature folded in --
    if USE_TEMPERATURE:
        inv_p = jax.lax.rsqrt(jnp.maximum(
            jnp.sum(pred_flat * pred_flat, axis=-1, keepdims=True), 1e-24))
        inv_f = jax.lax.rsqrt(jnp.maximum(
            jnp.sum(feat * feat, axis=-1, keepdims=True), 1e-24))
        p_s = pred_flat * (inv_p * (1.0 / TEMPERATURE))
        f_s = feat * inv_f
    else:
        p_s, f_s = pred_flat, feat

    # logits[i*ps+j, n*B+m] = <pred[i,j,:], feature_q[m,n,:]>
    # (einsum('ijk,mnk->ijnm') followed by view(B*ps, N*B) in the reference)
    o_ref[...] = jax.lax.dot_general(
        p_s, f_s, (((1,), (1,)), ((), ())),
        preferred_element_type=jnp.float32)


def dpcm_fused(x_flat, perm, p):
    B, N, ps = BATCH, NUM_EPOCH, PRED_STEPS
    return pl.pallas_call(
        dpcm_fused_kernel,
        out_shape=jax.ShapeDtypeStruct((B * ps, N * B), jnp.float32),
        in_specs=[VMEM_SPEC] * 12,
        out_specs=VMEM_SPEC,
    )(x_flat, perm, p["enc_w"], p["enc_b"],
      p["gru_w_ih"], p["gru_w_hh"], p["gru_b_ih"], p["gru_b_hh"],
      p["pred_w1"], p["pred_b1"], p["pred_w2"], p["pred_b2"])


# ---------------------------------------------------------------------------
# Constant (batch,epoch) -> (epoch,batch) row-permutation matrix:
#   P[n*B + b, b*N + n] = 1, so (P @ feat_bn)[n*B + b] = feature_q[b, n].
# ---------------------------------------------------------------------------
def _perm_matrix(B, N):
    P = np.zeros((N * B, N * B), dtype=np.float32)
    for b in range(B):
        for n in range(N):
            P[n * B + b, b * N + n] = 1.0
    return jnp.asarray(P)


# ---------------------------------------------------------------------------
# Targets (exact reproduction of the PyTorch loop; integer bookkeeping -> glue)
# ---------------------------------------------------------------------------
def build_targets(batch_size, num_epoch, pred_steps):
    t = np.zeros((batch_size, num_epoch, pred_steps, batch_size), dtype=np.float32)
    for i in range(batch_size):
        for j in range(pred_steps):
            t[i, num_epoch - pred_steps + j, j, i] = 1.0
    t = t.reshape(batch_size * num_epoch, pred_steps * batch_size).T
    # PyTorch uses int64 ('long'); JAX default integer dtype is int32 here.
    return jnp.asarray(np.argmax(t, axis=1), dtype=jnp.int32)


# ---------------------------------------------------------------------------
# Full DPCMem.forward (use_memory_pool=False path)
# ---------------------------------------------------------------------------
def dpcm_forward(x, params):
    B, N = x.shape[0], x.shape[1]
    # Pure contiguous reshape (no transpose / copy launch); rows are b*N + n,
    # exactly like PyTorch's x.view(batch_size * num_epoch, ...).
    x_flat = x.reshape(B * N, -1).astype(jnp.float32)
    logits = dpcm_fused(x_flat, _perm_matrix(B, N), params)
    targets = build_targets(B, N, PRED_STEPS)
    return logits, targets


# ---------------------------------------------------------------------------
# Deterministic parameter init (synthetic; module uses orthogonal/default init)
# GRU weights are stored gate-FUSED as (L, D, 3D) with [r | z | n] column
# blocks; PyTorch's (3H, in) w_ih maps here by splitting the 3H axis into
# (3, H), transposing each (H, in) block and concatenating along columns.
# ---------------------------------------------------------------------------
def init_params(key):
    D = FEATURE_DIM
    flat_in = IN_CH * SPATIAL * SPATIAL
    ks = jax.random.split(key, 6)
    return {
        "enc_w": 0.02 * jax.random.normal(ks[0], (flat_in, D), jnp.float32),
        "enc_b": jnp.zeros((1, D), jnp.float32),
        "gru_w_ih": 0.1 * jax.random.normal(
            ks[1], (NUM_GRU_LAYERS, D, 3 * D), jnp.float32),
        "gru_w_hh": 0.1 * jax.random.normal(
            ks[2], (NUM_GRU_LAYERS, D, 3 * D), jnp.float32),
        "gru_b_ih": jnp.zeros((NUM_GRU_LAYERS, 1, 3 * D), jnp.float32),
        "gru_b_hh": jnp.zeros((NUM_GRU_LAYERS, 1, 3 * D), jnp.float32),
        "pred_w1": 0.1 * jax.random.normal(ks[3], (D, D), jnp.float32),
        "pred_b1": jnp.zeros((1, D), jnp.float32),
        "pred_w2": 0.1 * jax.random.normal(ks[4], (D, D), jnp.float32),
        "pred_b2": jnp.zeros((1, D), jnp.float32),
    }


if __name__ == "__main__":
    key = jax.random.PRNGKey(0)
    kx, kp = jax.random.split(key)
    x = jax.random.normal(kx, (BATCH, NUM_EPOCH, IN_CH, SPATIAL, SPATIAL),
                          jnp.float32)
    params = init_params(kp)

    logits, targets = dpcm_forward(x, params)
    logits = jax.block_until_ready(logits)
    targets = jax.block_until_ready(targets)

    assert logits.shape == (BATCH * PRED_STEPS, NUM_EPOCH * BATCH), logits.shape
    assert targets.shape == (PRED_STEPS * BATCH,), targets.shape
    assert logits.dtype == jnp.float32
    assert bool(jnp.all(jnp.isfinite(logits)))
    print("KERNEL_OK")
</pallas_src>

<mosaic_0001>
module attributes {stable_mosaic.version = 11 : i64} {
  func.func @dpcm_fused_kernel(%arg0: memref<16x1024xf32, #tpu.memory_space<vmem>>, %arg1: memref<16x16xf32, #tpu.memory_space<vmem>>, %arg2: memref<1024x32xf32, #tpu.memory_space<vmem>>, %arg3: memref<1x32xf32, #tpu.memory_space<vmem>>, %arg4: memref<2x32x96xf32, #tpu.memory_space<vmem>>, %arg5: memref<2x32x96xf32, #tpu.memory_space<vmem>>, %arg6: memref<2x1x96xf32, #tpu.memory_space<vmem>>, %arg7: memref<2x1x96xf32, #tpu.memory_space<vmem>>, %arg8: memref<32x32xf32, #tpu.memory_space<vmem>>, %arg9: memref<1x32xf32, #tpu.memory_space<vmem>>, %arg10: memref<32x32xf32, #tpu.memory_space<vmem>>, %arg11: memref<1x32xf32, #tpu.memory_space<vmem>>, %arg12: memref<4x16xf32, #tpu.memory_space<vmem>>) attributes {dimension_semantics = [], scalar_prefetch = 0 : i64, scratch_operands = 0 : i64, tpu.core_type = #tpu.core_type<tc>} {
    %c0 = arith.constant 0 : index
    %c0_0 = arith.constant 0 : index
    %0 = vector.load %arg0[%c0, %c0_0] : memref<16x1024xf32, #tpu.memory_space<vmem>>, vector<16x1024xf32>
    %c0_1 = arith.constant 0 : index
    %c0_2 = arith.constant 0 : index
    %1 = vector.load %arg2[%c0_1, %c0_2] : memref<1024x32xf32, #tpu.memory_space<vmem>>, vector<1024x32xf32>
    %cst = arith.constant dense<0.000000e+00> : vector<16x32xf32>
    %2 = tpu.matmul %0, %1, %cst {dimension_numbers = #tpu.dot_dimension_numbers<[1], [0], [0], [1], [0, 0, 1, 1], [], []>} : vector<16x1024xf32>, vector<1024x32xf32>, vector<16x32xf32> -> vector<16x32xf32>
    %c0_3 = arith.constant 0 : index
    %c0_4 = arith.constant 0 : index
    %3 = vector.load %arg3[%c0_3, %c0_4] : memref<1x32xf32, #tpu.memory_space<vmem>>, vector<1x32xf32>
    %4 = vector.broadcast %3 : vector<1x32xf32> to vector<16x32xf32>
    %5 = arith.addf %2, %4 : vector<16x32xf32>
    %c0_5 = arith.constant 0 : index
    %c0_6 = arith.constant 0 : index
    %6 = vector.load %arg1[%c0_5, %c0_6] : memref<16x16xf32, #tpu.memory_space<vmem>>, vector<16x16xf32>
    %cst_7 = arith.constant dense<0.000000e+00> : vector<16x32xf32>
    %7 = tpu.matmul %6, %5, %cst_7 {dimension_numbers = #tpu.dot_dimension_numbers<[1], [0], [0], [1], [0, 0, 1, 1], [], []>} : vector<16x16xf32>, vector<16x32xf32>, vector<16x32xf32> -> vector<16x32xf32>
    %cst_8 = arith.constant 0.000000e+00 : f32
    %8 = vector.broadcast %cst_8 : f32 to vector<16x32xf32>
    %9 = arith.maximumf %7, %8 : vector<16x32xf32>
    %c0_9 = arith.constant 0 : index
    %c0_10 = arith.constant 0 : index
    %c0_11 = arith.constant 0 : index
    %10 = vector.load %arg4[%c0_9, %c0_10, %c0_11] : memref<2x32x96xf32, #tpu.memory_space<vmem>>, vector<1x32x96xf32>
    %11 = vector.shape_cast %10 : vector<1x32x96xf32> to vector<32x96xf32>
    %c1 = arith.constant 1 : index
    %c0_12 = arith.constant 0 : index
    %c0_13 = arith.constant 0 : index
    %12 = vector.load %arg4[%c1, %c0_12, %c0_13] : memref<2x32x96xf32, #tpu.memory_space<vmem>>, vector<1x32x96xf32>
    %13 = vector.shape_cast %12 : vector<1x32x96xf32> to vector<32x96xf32>
    %c0_14 = arith.constant 0 : index
    %c0_15 = arith.constant 0 : index
    %c0_16 = arith.constant 0 : index
    %14 = vector.load %arg5[%c0_14, %c0_15, %c0_16] : memref<2x32x96xf32, #tpu.memory_space<vmem>>, vector<1x32x96xf32>
    %15 = vector.shape_cast %14 : vector<1x32x96xf32> to vector<32x96xf32>
    %c1_17 = arith.constant 1 : index
    %c0_18 = arith.constant 0 : index
    %c0_19 = arith.constant 0 : index
    %16 = vector.load %arg5[%c1_17, %c0_18, %c0_19] : memref<2x32x96xf32, #tpu.memory_space<vmem>>, vector<1x32x96xf32>
    %17 = vector.shape_cast %16 : vector<1x32x96xf32> to vector<32x96xf32>
    %c0_20 = arith.constant 0 : index
    %c0_21 = arith.constant 0 : index
    %c0_22 = arith.constant 0 : index
    %18 = vector.load %arg6[%c0_20, %c0_21, %c0_22] : memref<2x1x96xf32, #tpu.memory_space<vmem>>, vector<1x1x96xf32>
    %19 = vector.shape_cast %18 : vector<1x1x96xf32> to vector<1x96xf32>
    %20 = vector.shape_cast %19 : vector<1x96xf32> to vector<1x96xf32>
    %21 = vector.broadcast %20 : vector<1x96xf32> to vector<2x96xf32>
    %c1_23 = arith.constant 1 : index
    %c0_24 = arith.constant 0 : index
    %c0_25 = arith.constant 0 : index
    %22 = vector.load %arg6[%c1_23, %c0_24, %c0_25] : memref<2x1x96xf32, #tpu.memory_space<vmem>>, vector<1x1x96xf32>
    %23 = vector.shape_cast %22 : vector<1x1x96xf32> to vector<1x96xf32>
    %24 = vector.shape_cast %23 : vector<1x96xf32> to vector<1x96xf32>
    %25 = vector.broadcast %24 : vector<1x96xf32> to vector<2x96xf32>
    %c0_26 = arith.constant 0 : index
    %c0_27 = arith.constant 0 : index
    %c0_28 = arith.constant 0 : index
    %26 = vector.load %arg7[%c0_26, %c0_27, %c0_28] : memref<2x1x96xf32, #tpu.memory_space<vmem>>, vector<1x1x96xf32>
    %27 = vector.shape_cast %26 : vector<1x1x96xf32> to vector<1x96xf32>
    %28 = vector.shape_cast %27 : vector<1x96xf32> to vector<1x96xf32>
    %29 = vector.broadcast %28 : vector<1x96xf32> to vector<2x96xf32>
    %c1_29 = arith.constant 1 : index
    %c0_30 = arith.constant 0 : index
    %c0_31 = arith.constant 0 : index
    %30 = vector.load %arg7[%c1_29, %c0_30, %c0_31] : memref<2x1x96xf32, #tpu.memory_space<vmem>>, vector<1x1x96xf32>
    %31 = vector.shape_cast %30 : vector<1x1x96xf32> to vector<1x96xf32>
    %32 = vector.shape_cast %31 : vector<1x96xf32> to vector<1x96xf32>
    %33 = vector.broadcast %32 : vector<1x96xf32> to vector<2x96xf32>
    %c0_32 = arith.constant 0 : index
    %c0_33 = arith.constant 0 : index
    %34 = vector.load %arg8[%c0_32, %c0_33] : memref<32x32xf32, #tpu.memory_space<vmem>>, vector<32x32xf32>
    %c0_34 = arith.constant 0 : index
    %c0_35 = arith.constant 0 : index
    %35 = vector.load %arg10[%c0_34, %c0_35] : memref<32x32xf32, #tpu.memory_space<vmem>>, vector<32x32xf32>
    %c0_36 = arith.constant 0 : index
    %c0_37 = arith.constant 0 : index
    %36 = vector.load %arg9[%c0_36, %c0_37] : memref<1x32xf32, #tpu.memory_space<vmem>>, vector<1x32xf32>
    %37 = vector.shape_cast %36 : vector<1x32xf32> to vector<1x32xf32>
    %38 = vector.broadcast %37 : vector<1x32xf32> to vector<2x32xf32>
    %c0_38 = arith.constant 0 : index
    %c0_39 = arith.constant 0 : index
    %39 = vector.load %arg11[%c0_38, %c0_39] : memref<1x32xf32, #tpu.memory_space<vmem>>, vector<1x32xf32>
    %40 = vector.shape_cast %39 : vector<1x32xf32> to vector<1x32xf32>
    %41 = vector.broadcast %40 : vector<1x32xf32> to vector<2x32xf32>
    %42 = vector.extract_strided_slice %9 {offsets = [0, 0], sizes = [12, 32], strides = [1, 1]} : vector<16x32xf32> to vector<12x32xf32>
    %cst_40 = arith.constant dense<0.000000e+00> : vector<12x96xf32>
    %43 = tpu.matmul %42, %11, %cst_40 {dimension_numbers = #tpu.dot_dimension_numbers<[1], [0], [0], [1], [0, 0, 1, 1], [], []>} : vector<12x32xf32>, vector<32x96xf32>, vector<12x96xf32> -> vector<12x96xf32>
    %c0_41 = arith.constant 0 : index
    %c0_42 = arith.constant 0 : index
    %c0_43 = arith.constant 0 : index
    %44 = vector.load %arg6[%c0_41, %c0_42, %c0_43] : memref<2x1x96xf32, #tpu.memory_space<vmem>>, vector<1x1x96xf32>
    %45 = vector.shape_cast %44 : vector<1x1x96xf32> to vector<1x96xf32>
    %46 = vector.broadcast %45 : vector<1x96xf32> to vector<12x96xf32>
    %47 = arith.addf %43, %46 : vector<12x96xf32>
    %cst_44 = arith.constant 0.000000e+00 : f32
    %48 = vector.broadcast %cst_44 : f32 to vector<2x32xf32>
    %cst_45 = arith.constant 0.000000e+00 : f32
    %49 = vector.broadcast %cst_45 : f32 to vector<2x32xf32>
    %50 = vector.extract_strided_slice %47 {offsets = [0, 0], sizes = [2, 96], strides = [1, 1]} : vector<12x96xf32> to vector<2x96xf32>
    %cst_46 = arith.constant dense<0.000000e+00> : vector<2x96xf32>
    %51 = tpu.matmul %48, %15, %cst_46 {dimension_numbers = #tpu.dot_dimension_numbers<[1], [0], [0], [1], [0, 0, 1, 1], [], []>} : vector<2x32xf32>, vector<32x96xf32>, vector<2x96xf32> -> vector<2x96xf32>
    %52 = arith.addf %51, %29 : vector<2x96xf32>
    %53 = vector.extract_strided_slice %50 {offsets = [0, 0], sizes = [2, 32], strides = [1, 1]} : vector<2x96xf32> to vector<2x32xf32>
    %54 = vector.extract_strided_slice %52 {offsets = [0, 0], sizes = [2, 32], strides = [1, 1]} : vector<2x96xf32> to vector<2x32xf32>
    %55 = arith.addf %53, %54 : vector<2x32xf32>
    %56 = arith.negf %55 : vector<2x32xf32>
    %57 = math.exp %56 : vector<2x32xf32>
    %cst_47 = arith.constant 1.000000e+00 : f32
    %58 = vector.broadcast %cst_47 : f32 to vector<2x32xf32>
    %59 = arith.addf %58, %57 : vector<2x32xf32>
    %60 = arith.divf %58, %59 : vector<2x32xf32>
    %61 = vector.extract_strided_slice %50 {offsets = [0, 32], sizes = [2, 32], strides = [1, 1]} : vector<2x96xf32> to vector<2x32xf32>
    %62 = vector.extract_strided_slice %52 {offsets = [0, 32], sizes = [2, 32], strides = [1, 1]} : vector<2x96xf32> to vector<2x32xf32>
    %63 = arith.addf %61, %62 : vector<2x32xf32>
    %64 = arith.negf %63 : vector<2x32xf32>
    %65 = math.exp %64 : vector<2x32xf32>
    %cst_48 = arith.constant 1.000000e+00 : f32
    %66 = vector.broadcast %cst_48 : f32 to vector<2x32xf32>
    %67 = arith.addf %66, %65 : vector<2x32xf32>
    %68 = arith.divf %66, %67 : vector<2x32xf32>
    %69 = vector.extract_strided_slice %50 {offsets = [0, 64], sizes = [2, 32], strides = [1, 1]} : vector<2x96xf32> to vector<2x32xf32>
    %70 = vector.extract_strided_slice %52 {offsets = [0, 64], sizes = [2, 32], strides = [1, 1]} : vector<2x96xf32> to vector<2x32xf32>
    %71 = arith.mulf %60, %70 : vector<2x32xf32>
    %72 = arith.addf %69, %71 : vector<2x32xf32>
    %73 = math.tanh %72 : vector<2x32xf32>
    %cst_49 = arith.constant 1.000000e+00 : f32
    %74 = vector.broadcast %cst_49 : f32 to vector<2x32xf32>
    %75 = arith.subf %74, %68 : vector<2x32xf32>
    %76 = arith.mulf %75, %73 : vector<2x32xf32>
    %77 = arith.mulf %68, %48 : vector<2x32xf32>
    %78 = arith.addf %76, %77 : vector<2x32xf32>
    %cst_50 = arith.constant dense<0.000000e+00> : vector<2x96xf32>
    %79 = tpu.matmul %78, %13, %cst_50 {dimension_numbers = #tpu.dot_dimension_numbers<[1], [0], [0], [1], [0, 0, 1, 1], [], []>} : vector<2x32xf32>, vector<32x96xf32>, vector<2x96xf32> -> vector<2x96xf32>
    %80 = arith.addf %79, %25 : vector<2x96xf32>
    %cst_51 = arith.constant dense<0.000000e+00> : vector<2x96xf32>
    %81 = tpu.matmul %49, %17, %cst_51 {dimension_numbers = #tpu.dot_dimension_numbers<[1], [0], [0], [1], [0, 0, 1, 1], [], []>} : vector<2x32xf32>, vector<32x96xf32>, vector<2x96xf32> -> vector<2x96xf32>
    %82 = arith.addf %81, %33 : vector<2x96xf32>
    %83 = vector.extract_strided_slice %80 {offsets = [0, 0], sizes = [2, 32], strides = [1, 1]} : vector<2x96xf32> to vector<2x32xf32>
    %84 = vector.extract_strided_slice %82 {offsets = [0, 0], sizes = [2, 32], strides = [1, 1]} : vector<2x96xf32> to vector<2x32xf32>
    %85 = arith.addf %83, %84 : vector<2x32xf32>
    %86 = arith.negf %85 : vector<2x32xf32>
    %87 = math.exp %86 : vector<2x32xf32>
    %cst_52 = arith.constant 1.000000e+00 : f32
    %88 = vector.broadcast %cst_52 : f32 to vector<2x32xf32>
    %89 = arith.addf %88, %87 : vector<2x32xf32>
    %90 = arith.divf %88, %89 : vector<2x32xf32>
    %91 = vector.extract_strided_slice %80 {offsets = [0, 32], sizes = [2, 32], strides = [1, 1]} : vector<2x96xf32> to vector<2x32xf32>
    %92 = vector.extract_strided_slice %82 {offsets = [0, 32], sizes = [2, 32], strides = [1, 1]} : vector<2x96xf32> to vector<2x32xf32>
    %93 = arith.addf %91, %92 : vector<2x32xf32>
    %94 = arith.negf %93 : vector<2x32xf32>
    %95 = math.exp %94 : vector<2x32xf32>
    %cst_53 = arith.constant 1.000000e+00 : f32
    %96 = vector.broadcast %cst_53 : f32 to vector<2x32xf32>
    %97 = arith.addf %96, %95 : vector<2x32xf32>
    %98 = arith.divf %96, %97 : vector<2x32xf32>
    %99 = vector.extract_strided_slice %80 {offsets = [0, 64], sizes = [2, 32], strides = [1, 1]} : vector<2x96xf32> to vector<2x32xf32>
    %100 = vector.extract_strided_slice %82 {offsets = [0, 64], sizes = [2, 32], strides = [1, 1]} : vector<2x96xf32> to vector<2x32xf32>
    %101 = arith.mulf %90, %100 : vector<2x32xf32>
    %102 = arith.addf %99, %101 : vector<2x32xf32>
    %103 = math.tanh %102 : vector<2x32xf32>
    %cst_54 = arith.constant 1.000000e+00 : f32
    %104 = vector.broadcast %cst_54 : f32 to vector<2x32xf32>
    %105 = arith.subf %104, %98 : vector<2x32xf32>
    %106 = arith.mulf %105, %103 : vector<2x32xf32>
    %107 = arith.mulf %98, %49 : vector<2x32xf32>
    %108 = arith.addf %106, %107 : vector<2x32xf32>
    %109 = vector.extract_strided_slice %47 {offsets = [2, 0], sizes = [2, 96], strides = [1, 1]} : vector<12x96xf32> to vector<2x96xf32>
    %cst_55 = arith.constant dense<0.000000e+00> : vector<2x96xf32>
    %110 = tpu.matmul %78, %15, %cst_55 {dimension_numbers = #tpu.dot_dimension_numbers<[1], [0], [0], [1], [0, 0, 1, 1], [], []>} : vector<2x32xf32>, vector<32x96xf32>, vector<2x96xf32> -> vector<2x96xf32>
    %111 = arith.addf %110, %29 : vector<2x96xf32>
    %112 = vector.extract_strided_slice %109 {offsets = [0, 0], sizes = [2, 32], strides = [1, 1]} : vector<2x96xf32> to vector<2x32xf32>
    %113 = vector.extract_strided_slice %111 {offsets = [0, 0], sizes = [2, 32], strides = [1, 1]} : vector<2x96xf32> to vector<2x32xf32>
    %114 = arith.addf %112, %113 : vector<2x32xf32>
    %115 = arith.negf %114 : vector<2x32xf32>
    %116 = math.exp %115 : vector<2x32xf32>
    %cst_56 = arith.constant 1.000000e+00 : f32
    %117 = vector.broadcast %cst_56 : f32 to vector<2x32xf32>
    %118 = arith.addf %117, %116 : vector<2x32xf32>
    %119 = arith.divf %117, %118 : vector<2x32xf32>
    %120 = vector.extract_strided_slice %109 {offsets = [0, 32], sizes = [2, 32], strides = [1, 1]} : vector<2x96xf32> to vector<2x32xf32>
    %121 = vector.extract_strided_slice %111 {offsets = [0, 32], sizes = [2, 32], strides = [1, 1]} : vector<2x96xf32> to vector<2x32xf32>
    %122 = arith.addf %120, %121 : vector<2x32xf32>
    %123 = arith.negf %122 : vector<2x32xf32>
    %124 = math.exp %123 : vector<2x32xf32>
    %cst_57 = arith.constant 1.000000e+00 : f32
    %125 = vector.broadcast %cst_57 : f32 to vector<2x32xf32>
    %126 = arith.addf %125, %124 : vector<2x32xf32>
    %127 = arith.divf %125, %126 : vector<2x32xf32>
    %128 = vector.extract_strided_slice %109 {offsets = [0, 64], sizes = [2, 32], strides = [1, 1]} : vector<2x96xf32> to vector<2x32xf32>
    %129 = vector.extract_strided_slice %111 {offsets = [0, 64], sizes = [2, 32], strides = [1, 1]} : vector<2x96xf32> to vector<2x32xf32>
    %130 = arith.mulf %119, %129 : vector<2x32xf32>
    %131 = arith.addf %128, %130 : vector<2x32xf32>
    %132 = math.tanh %131 : vector<2x32xf32>
    %cst_58 = arith.constant 1.000000e+00 : f32
    %133 = vector.broadcast %cst_58 : f32 to vector<2x32xf32>
    %134 = arith.subf %133, %127 : vector<2x32xf32>
    %135 = arith.mulf %134, %132 : vector<2x32xf32>
    %136 = arith.mulf %127, %78 : vector<2x32xf32>
    %137 = arith.addf %135, %136 : vector<2x32xf32>
    %cst_59 = arith.constant dense<0.000000e+00> : vector<2x96xf32>
    %138 = tpu.matmul %137, %13, %cst_59 {dimension_numbers = #tpu.dot_dimension_numbers<[1], [0], [0], [1], [0, 0, 1, 1], [], []>} : vector<2x32xf32>, vector<32x96xf32>, vector<2x96xf32> -> vector<2x96xf32>
    %139 = arith.addf %138, %25 : vector<2x96xf32>
    %cst_60 = arith.constant dense<0.000000e+00> : vector<2x96xf32>
    %140 = tpu.matmul %108, %17, %cst_60 {dimension_numbers = #tpu.dot_dimension_numbers<[1], [0], [0], [1], [0, 0, 1, 1], [], []>} : vector<2x32xf32>, vector<32x96xf32>, vector<2x96xf32> -> vector<2x96xf32>
    %141 = arith.addf %140, %33 : vector<2x96xf32>
    %142 = vector.extract_strided_slice %139 {offsets = [0, 0], sizes = [2, 32], strides = [1, 1]} : vector<2x96xf32> to vector<2x32xf32>
    %143 = vector.extract_strided_slice %141 {offsets = [0, 0], sizes = [2, 32], strides = [1, 1]} : vector<2x96xf32> to vector<2x32xf32>
    %144 = arith.addf %142, %143 : vector<2x32xf32>
    %145 = arith.negf %144 : vector<2x32xf32>
    %146 = math.exp %145 : vector<2x32xf32>
    %cst_61 = arith.constant 1.000000e+00 : f32
    %147 = vector.broadcast %cst_61 : f32 to vector<2x32xf32>
    %148 = arith.addf %147, %146 : vector<2x32xf32>
    %149 = arith.divf %147, %148 : vector<2x32xf32>
    %150 = vector.extract_strided_slice %139 {offsets = [0, 32], sizes = [2, 32], strides = [1, 1]} : vector<2x96xf32> to vector<2x32xf32>
    %151 = vector.extract_strided_slice %141 {offsets = [0, 32], sizes = [2, 32], strides = [1, 1]} : vector<2x96xf32> to vector<2x32xf32>
    %152 = arith.addf %150, %151 : vector<2x32xf32>
    %153 = arith.negf %152 : vector<2x32xf32>
    %154 = math.exp %153 : vector<2x32xf32>
    %cst_62 = arith.constant 1.000000e+00 : f32
    %155 = vector.broadcast %cst_62 : f32 to vector<2x32xf32>
    %156 = arith.addf %155, %154 : vector<2x32xf32>
    %157 = arith.divf %155, %156 : vector<2x32xf32>
    %158 = vector.extract_strided_slice %139 {offsets = [0, 64], sizes = [2, 32], strides = [1, 1]} : vector<2x96xf32> to vector<2x32xf32>
    %159 = vector.extract_strided_slice %141 {offsets = [0, 64], sizes = [2, 32], strides = [1, 1]} : vector<2x96xf32> to vector<2x32xf32>
    %160 = arith.mulf %149, %159 : vector<2x32xf32>
    %161 = arith.addf %158, %160 : vector<2x32xf32>
    %162 = math.tanh %161 : vector<2x32xf32>
    %cst_63 = arith.constant 1.000000e+00 : f32
    %163 = vector.broadcast %cst_63 : f32 to vector<2x32xf32>
    %164 = arith.subf %163, %157 : vector<2x32xf32>
    %165 = arith.mulf %164, %162 : vector<2x32xf32>
    %166 = arith.mulf %157, %108 : vector<2x32xf32>
    %167 = arith.addf %165, %166 : vector<2x32xf32>
    %168 = vector.extract_strided_slice %47 {offsets = [4, 0], sizes = [2, 96], strides = [1, 1]} : vector<12x96xf32> to vector<2x96xf32>
    %cst_64 = arith.constant dense<0.000000e+00> : vector<2x96xf32>
    %169 = tpu.matmul %137, %15, %cst_64 {dimension_numbers = #tpu.dot_dimension_numbers<[1], [0], [0], [1], [0, 0, 1, 1], [], []>} : vector<2x32xf32>, vector<32x96xf32>, vector<2x96xf32> -> vector<2x96xf32>
    %170 = arith.addf %169, %29 : vector<2x96xf32>
    %171 = vector.extract_strided_slice %168 {offsets = [0, 0], sizes = [2, 32], strides = [1, 1]} : vector<2x96xf32> to vector<2x32xf32>
    %172 = vector.extract_strided_slice %170 {offsets = [0, 0], sizes = [2, 32], strides = [1, 1]} : vector<2x96xf32> to vector<2x32xf32>
    %173 = arith.addf %171, %172 : vector<2x32xf32>
    %174 = arith.negf %173 : vector<2x32xf32>
    %175 = math.exp %174 : vector<2x32xf32>
    %cst_65 = arith.constant 1.000000e+00 : f32
    %176 = vector.broadcast %cst_65 : f32 to vector<2x32xf32>
    %177 = arith.addf %176, %175 : vector<2x32xf32>
    %178 = arith.divf %176, %177 : vector<2x32xf32>
    %179 = vector.extract_strided_slice %168 {offsets = [0, 32], sizes = [2, 32], strides = [1, 1]} : vector<2x96xf32> to vector<2x32xf32>
    %180 = vector.extract_strided_slice %170 {offsets = [0, 32], sizes = [2, 32], strides = [1, 1]} : vector<2x96xf32> to vector<2x32xf32>
    %181 = arith.addf %179, %180 : vector<2x32xf32>
    %182 = arith.negf %181 : vector<2x32xf32>
    %183 = math.exp %182 : vector<2x32xf32>
    %cst_66 = arith.constant 1.000000e+00 : f32
    %184 = vector.broadcast %cst_66 : f32 to vector<2x32xf32>
    %185 = arith.addf %184, %183 : vector<2x32xf32>
    %186 = arith.divf %184, %185 : vector<2x32xf32>
    %187 = vector.extract_strided_slice %168 {offsets = [0, 64], sizes = [2, 32], strides = [1, 1]} : vector<2x96xf32> to vector<2x32xf32>
    %188 = vector.extract_strided_slice %170 {offsets = [0, 64], sizes = [2, 32], strides = [1, 1]} : vector<2x96xf32> to vector<2x32xf32>
    %189 = arith.mulf %178, %188 : vector<2x32xf32>
    %190 = arith.addf %187, %189 : vector<2x32xf32>
    %191 = math.tanh %190 : vector<2x32xf32>
    %cst_67 = arith.constant 1.000000e+00 : f32
    %192 = vector.broadcast %cst_67 : f32 to vector<2x32xf32>
    %193 = arith.subf %192, %186 : vector<2x32xf32>
    %194 = arith.mulf %193, %191 : vector<2x32xf32>
    %195 = arith.mulf %186, %137 : vector<2x32xf32>
    %196 = arith.addf %194, %195 : vector<2x32xf32>
    %cst_68 = arith.constant dense<0.000000e+00> : vector<2x96xf32>
    %197 = tpu.matmul %196, %13, %cst_68 {dimension_numbers = #tpu.dot_dimension_numbers<[1], [0], [0], [1], [0, 0, 1, 1], [], []>} : vector<2x32xf32>, vector<32x96xf32>, vector<2x96xf32> -> vector<2x96xf32>
    %198 = arith.addf %197, %25 : vector<2x96xf32>
    %cst_69 = arith.constant dense<0.000000e+00> : vector<2x96xf32>
    %199 = tpu.matmul %167, %17, %cst_69 {dimension_numbers = #tpu.dot_dimension_numbers<[1], [0], [0], [1], [0, 0, 1, 1], [], []>} : vector<2x32xf32>, vector<32x96xf32>, vector<2x96xf32> -> vector<2x96xf32>
    %200 = arith.addf %199, %33 : vector<2x96xf32>
    %201 = vector.extract_strided_slice %198 {offsets = [0, 0], sizes = [2, 32], strides = [1, 1]} : vector<2x96xf32> to vector<2x32xf32>
    %202 = vector.extract_strided_slice %200 {offsets = [0, 0], sizes = [2, 32], strides = [1, 1]} : vector<2x96xf32> to vector<2x32xf32>
    %203 = arith.addf %201, %202 : vector<2x32xf32>
    %204 = arith.negf %203 : vector<2x32xf32>
    %205 = math.exp %204 : vector<2x32xf32>
    %cst_70 = arith.constant 1.000000e+00 : f32
    %206 = vector.broadcast %cst_70 : f32 to vector<2x32xf32>
    %207 = arith.addf %206, %205 : vector<2x32xf32>
    %208 = arith.divf %206, %207 : vector<2x32xf32>
    %209 = vector.extract_strided_slice %198 {offsets = [0, 32], sizes = [2, 32], strides = [1, 1]} : vector<2x96xf32> to vector<2x32xf32>
    %210 = vector.extract_strided_slice %200 {offsets = [0, 32], sizes = [2, 32], strides = [1, 1]} : vector<2x96xf32> to vector<2x32xf32>
    %211 = arith.addf %209, %210 : vector<2x32xf32>
    %212 = arith.negf %211 : vector<2x32xf32>
    %213 = math.exp %212 : vector<2x32xf32>
    %cst_71 = arith.constant 1.000000e+00 : f32
    %214 = vector.broadcast %cst_71 : f32 to vector<2x32xf32>
    %215 = arith.addf %214, %213 : vector<2x32xf32>
    %216 = arith.divf %214, %215 : vector<2x32xf32>
    %217 = vector.extract_strided_slice %198 {offsets = [0, 64], sizes = [2, 32], strides = [1, 1]} : vector<2x96xf32> to vector<2x32xf32>
    %218 = vector.extract_strided_slice %200 {offsets = [0, 64], sizes = [2, 32], strides = [1, 1]} : vector<2x96xf32> to vector<2x32xf32>
    %219 = arith.mulf %208, %218 : vector<2x32xf32>
    %220 = arith.addf %217, %219 : vector<2x32xf32>
    %221 = math.tanh %220 : vector<2x32xf32>
    %cst_72 = arith.constant 1.000000e+00 : f32
    %222 = vector.broadcast %cst_72 : f32 to vector<2x32xf32>
    %223 = arith.subf %222, %216 : vector<2x32xf32>
    %224 = arith.mulf %223, %221 : vector<2x32xf32>
    %225 = arith.mulf %216, %167 : vector<2x32xf32>
    %226 = arith.addf %224, %225 : vector<2x32xf32>
    %227 = vector.extract_strided_slice %47 {offsets = [6, 0], sizes = [2, 96], strides = [1, 1]} : vector<12x96xf32> to vector<2x96xf32>
    %cst_73 = arith.constant dense<0.000000e+00> : vector<2x96xf32>
    %228 = tpu.matmul %196, %15, %cst_73 {dimension_numbers = #tpu.dot_dimension_numbers<[1], [0], [0], [1], [0, 0, 1, 1], [], []>} : vector<2x32xf32>, vector<32x96xf32>, vector<2x96xf32> -> vector<2x96xf32>
    %229 = arith.addf %228, %29 : vector<2x96xf32>
    %230 = vector.extract_strided_slice %227 {offsets = [0, 0], sizes = [2, 32], strides = [1, 1]} : vector<2x96xf32> to vector<2x32xf32>
    %231 = vector.extract_strided_slice %229 {offsets = [0, 0], sizes = [2, 32], strides = [1, 1]} : vector<2x96xf32> to vector<2x32xf32>
    %232 = arith.addf %230, %231 : vector<2x32xf32>
    %233 = arith.negf %232 : vector<2x32xf32>
    %234 = math.exp %233 : vector<2x32xf32>
    %cst_74 = arith.constant 1.000000e+00 : f32
    %235 = vector.broadcast %cst_74 : f32 to vector<2x32xf32>
    %236 = arith.addf %235, %234 : vector<2x32xf32>
    %237 = arith.divf %235, %236 : vector<2x32xf32>
    %238 = vector.extract_strided_slice %227 {offsets = [0, 32], sizes = [2, 32], strides = [1, 1]} : vector<2x96xf32> to vector<2x32xf32>
    %239 = vector.extract_strided_slice %229 {offsets = [0, 32], sizes = [2, 32], strides = [1, 1]} : vector<2x96xf32> to vector<2x32xf32>
    %240 = arith.addf %238, %239 : vector<2x32xf32>
    %241 = arith.negf %240 : vector<2x32xf32>
    %242 = math.exp %241 : vector<2x32xf32>
    %cst_75 = arith.constant 1.000000e+00 : f32
    %243 = vector.broadcast %cst_75 : f32 to vector<2x32xf32>
    %244 = arith.addf %243, %242 : vector<2x32xf32>
    %245 = arith.divf %243, %244 : vector<2x32xf32>
    %246 = vector.extract_strided_slice %227 {offsets = [0, 64], sizes = [2, 32], strides = [1, 1]} : vector<2x96xf32> to vector<2x32xf32>
    %247 = vector.extract_strided_slice %229 {offsets = [0, 64], sizes = [2, 32], strides = [1, 1]} : vector<2x96xf32> to vector<2x32xf32>
    %248 = arith.mulf %237, %247 : vector<2x32xf32>
    %249 = arith.addf %246, %248 : vector<2x32xf32>
    %250 = math.tanh %249 : vector<2x32xf32>
    %cst_76 = arith.constant 1.000000e+00 : f32
    %251 = vector.broadcast %cst_76 : f32 to vector<2x32xf32>
    %252 = arith.subf %251, %245 : vector<2x32xf32>
    %253 = arith.mulf %252, %250 : vector<2x32xf32>
    %254 = arith.mulf %245, %196 : vector<2x32xf32>
    %255 = arith.addf %253, %254 : vector<2x32xf32>
    %cst_77 = arith.constant dense<0.000000e+00> : vector<2x96xf32>
    %256 = tpu.matmul %255, %13, %cst_77 {dimension_numbers = #tpu.dot_dimension_numbers<[1], [0], [0], [1], [0, 0, 1, 1], [], []>} : vector<2x32xf32>, vector<32x96xf32>, vector<2x96xf32> -> vector<2x96xf32>
    %257 = arith.addf %256, %25 : vector<2x96xf32>
    %cst_78 = arith.constant dense<0.000000e+00> : vector<2x96xf32>
    %258 = tpu.matmul %226, %17, %cst_78 {dimension_numbers = #tpu.dot_dimension_numbers<[1], [0], [0], [1], [0, 0, 1, 1], [], []>} : vector<2x32xf32>, vector<32x96xf32>, vector<2x96xf32> -> vector<2x96xf32>
    %259 = arith.addf %258, %33 : vector<2x96xf32>
    %260 = vector.extract_strided_slice %257 {offsets = [0, 0], sizes = [2, 32], strides = [1, 1]} : vector<2x96xf32> to vector<2x32xf32>
    %261 = vector.extract_strided_slice %259 {offsets = [0, 0], sizes = [2, 32], strides = [1, 1]} : vector<2x96xf32> to vector<2x32xf32>
    %262 = arith.addf %260, %261 : vector<2x32xf32>
    %263 = arith.negf %262 : vector<2x32xf32>
    %264 = math.exp %263 : vector<2x32xf32>
    %cst_79 = arith.constant 1.000000e+00 : f32
    %265 = vector.broadcast %cst_79 : f32 to vector<2x32xf32>
    %266 = arith.addf %265, %264 : vector<2x32xf32>
    %267 = arith.divf %265, %266 : vector<2x32xf32>
    %268 = vector.extract_strided_slice %257 {offsets = [0, 32], sizes = [2, 32], strides = [1, 1]} : vector<2x96xf32> to vector<2x32xf32>
    %269 = vector.extract_strided_slice %259 {offsets = [0, 32], sizes = [2, 32], strides = [1, 1]} : vector<2x96xf32> to vector<2x32xf32>
    %270 = arith.addf %268, %269 : vector<2x32xf32>
    %271 = arith.negf %270 : vector<2x32xf32>
    %272 = math.exp %271 : vector<2x32xf32>
    %cst_80 = arith.constant 1.000000e+00 : f32
    %273 = vector.broadcast %cst_80 : f32 to vector<2x32xf32>
    %274 = arith.addf %273, %272 : vector<2x32xf32>
    %275 = arith.divf %273, %274 : vector<2x32xf32>
    %276 = vector.extract_strided_slice %257 {offsets = [0, 64], sizes = [2, 32], strides = [1, 1]} : vector<2x96xf32> to vector<2x32xf32>
    %277 = vector.extract_strided_slice %259 {offsets = [0, 64], sizes = [2, 32], strides = [1, 1]} : vector<2x96xf32> to vector<2x32xf32>
    %278 = arith.mulf %267, %277 : vector<2x32xf32>
    %279 = arith.addf %276, %278 : vector<2x32xf32>
    %280 = math.tanh %279 : vector<2x32xf32>
    %cst_81 = arith.constant 1.000000e+00 : f32
    %281 = vector.broadcast %cst_81 : f32 to vector<2x32xf32>
    %282 = arith.subf %281, %275 : vector<2x32xf32>
    %283 = arith.mulf %282, %280 : vector<2x32xf32>
    %284 = arith.mulf %275, %226 : vector<2x32xf32>
    %285 = arith.addf %283, %284 : vector<2x32xf32>
    %286 = vector.extract_strided_slice %47 {offsets = [8, 0], sizes = [2, 96], strides = [1, 1]} : vector<12x96xf32> to vector<2x96xf32>
    %cst_82 = arith.constant dense<0.000000e+00> : vector<2x96xf32>
    %287 = tpu.matmul %255, %15, %cst_82 {dimension_numbers = #tpu.dot_dimension_numbers<[1], [0], [0], [1], [0, 0, 1, 1], [], []>} : vector<2x32xf32>, vector<32x96xf32>, vector<2x96xf32> -> vector<2x96xf32>
    %288 = arith.addf %287, %29 : vector<2x96xf32>
    %289 = vector.extract_strided_slice %286 {offsets = [0, 0], sizes = [2, 32], strides = [1, 1]} : vector<2x96xf32> to vector<2x32xf32>
    %290 = vector.extract_strided_slice %288 {offsets = [0, 0], sizes = [2, 32], strides = [1, 1]} : vector<2x96xf32> to vector<2x32xf32>
    %291 = arith.addf %289, %290 : vector<2x32xf32>
    %292 = arith.negf %291 : vector<2x32xf32>
    %293 = math.exp %292 : vector<2x32xf32>
    %cst_83 = arith.constant 1.000000e+00 : f32
    %294 = vector.broadcast %cst_83 : f32 to vector<2x32xf32>
    %295 = arith.addf %294, %293 : vector<2x32xf32>
    %296 = arith.divf %294, %295 : vector<2x32xf32>
    %297 = vector.extract_strided_slice %286 {offsets = [0, 32], sizes = [2, 32], strides = [1, 1]} : vector<2x96xf32> to vector<2x32xf32>
    %298 = vector.extract_strided_slice %288 {offsets = [0, 32], sizes = [2, 32], strides = [1, 1]} : vector<2x96xf32> to vector<2x32xf32>
    %299 = arith.addf %297, %298 : vector<2x32xf32>
    %300 = arith.negf %299 : vector<2x32xf32>
    %301 = math.exp %300 : vector<2x32xf32>
    %cst_84 = arith.constant 1.000000e+00 : f32
    %302 = vector.broadcast %cst_84 : f32 to vector<2x32xf32>
    %303 = arith.addf %302, %301 : vector<2x32xf32>
    %304 = arith.divf %302, %303 : vector<2x32xf32>
    %305 = vector.extract_strided_slice %286 {offsets = [0, 64], sizes = [2, 32], strides = [1, 1]} : vector<2x96xf32> to vector<2x32xf32>
    %306 = vector.extract_strided_slice %288 {offsets = [0, 64], sizes = [2, 32], strides = [1, 1]} : vector<2x96xf32> to vector<2x32xf32>
    %307 = arith.mulf %296, %306 : vector<2x32xf32>
    %308 = arith.addf %305, %307 : vector<2x32xf32>
    %309 = math.tanh %308 : vector<2x32xf32>
    %cst_85 = arith.constant 1.000000e+00 : f32
    %310 = vector.broadcast %cst_85 : f32 to vector<2x32xf32>
    %311 = arith.subf %310, %304 : vector<2x32xf32>
    %312 = arith.mulf %311, %309 : vector<2x32xf32>
    %313 = arith.mulf %304, %255 : vector<2x32xf32>
    %314 = arith.addf %312, %313 : vector<2x32xf32>
    %cst_86 = arith.constant dense<0.000000e+00> : vector<2x96xf32>
    %315 = tpu.matmul %314, %13, %cst_86 {dimension_numbers = #tpu.dot_dimension_numbers<[1], [0], [0], [1], [0, 0, 1, 1], [], []>} : vector<2x32xf32>, vector<32x96xf32>, vector<2x96xf32> -> vector<2x96xf32>
    %316 = arith.addf %315, %25 : vector<2x96xf32>
    %cst_87 = arith.constant dense<0.000000e+00> : vector<2x96xf32>
    %317 = tpu.matmul %285, %17, %cst_87 {dimension_numbers = #tpu.dot_dimension_numbers<[1], [0], [0], [1], [0, 0, 1, 1], [], []>} : vector<2x32xf32>, vector<32x96xf32>, vector<2x96xf32> -> vector<2x96xf32>
    %318 = arith.addf %317, %33 : vector<2x96xf32>
    %319 = vector.extract_strided_slice %316 {offsets = [0, 0], sizes = [2, 32], strides = [1, 1]} : vector<2x96xf32> to vector<2x32xf32>
    %320 = vector.extract_strided_slice %318 {offsets = [0, 0], sizes = [2, 32], strides = [1, 1]} : vector<2x96xf32> to vector<2x32xf32>
    %321 = arith.addf %319, %320 : vector<2x32xf32>
    %322 = arith.negf %321 : vector<2x32xf32>
    %323 = math.exp %322 : vector<2x32xf32>
    %cst_88 = arith.constant 1.000000e+00 : f32
    %324 = vector.broadcast %cst_88 : f32 to vector<2x32xf32>
    %325 = arith.addf %324, %323 : vector<2x32xf32>
    %326 = arith.divf %324, %325 : vector<2x32xf32>
    %327 = vector.extract_strided_slice %316 {offsets = [0, 32], sizes = [2, 32], strides = [1, 1]} : vector<2x96xf32> to vector<2x32xf32>
    %328 = vector.extract_strided_slice %318 {offsets = [0, 32], sizes = [2, 32], strides = [1, 1]} : vector<2x96xf32> to vector<2x32xf32>
    %329 = arith.addf %327, %328 : vector<2x32xf32>
    %330 = arith.negf %329 : vector<2x32xf32>
    %331 = math.exp %330 : vector<2x32xf32>
    %cst_89 = arith.constant 1.000000e+00 : f32
    %332 = vector.broadcast %cst_89 : f32 to vector<2x32xf32>
    %333 = arith.addf %332, %331 : vector<2x32xf32>
    %334 = arith.divf %332, %333 : vector<2x32xf32>
    %335 = vector.extract_strided_slice %316 {offsets = [0, 64], sizes = [2, 32], strides = [1, 1]} : vector<2x96xf32> to vector<2x32xf32>
    %336 = vector.extract_strided_slice %318 {offsets = [0, 64], sizes = [2, 32], strides = [1, 1]} : vector<2x96xf32> to vector<2x32xf32>
    %337 = arith.mulf %326, %336 : vector<2x32xf32>
    %338 = arith.addf %335, %337 : vector<2x32xf32>
    %339 = math.tanh %338 : vector<2x32xf32>
    %cst_90 = arith.constant 1.000000e+00 : f32
    %340 = vector.broadcast %cst_90 : f32 to vector<2x32xf32>
    %341 = arith.subf %340, %334 : vector<2x32xf32>
    %342 = arith.mulf %341, %339 : vector<2x32xf32>
    %343 = arith.mulf %334, %285 : vector<2x32xf32>
    %344 = arith.addf %342, %343 : vector<2x32xf32>
    %345 = vector.extract_strided_slice %47 {offsets = [10, 0], sizes = [2, 96], strides = [1, 1]} : vector<12x96xf32> to vector<2x96xf32>
    %cst_91 = arith.constant dense<0.000000e+00> : vector<2x96xf32>
    %346 = tpu.matmul %314, %15, %cst_91 {dimension_numbers = #tpu.dot_dimension_numbers<[1], [0], [0], [1], [0, 0, 1, 1], [], []>} : vector<2x32xf32>, vector<32x96xf32>, vector<2x96xf32> -> vector<2x96xf32>
    %347 = arith.addf %346, %29 : vector<2x96xf32>
    %348 = vector.extract_strided_slice %345 {offsets = [0, 0], sizes = [2, 32], strides = [1, 1]} : vector<2x96xf32> to vector<2x32xf32>
    %349 = vector.extract_strided_slice %347 {offsets = [0, 0], sizes = [2, 32], strides = [1, 1]} : vector<2x96xf32> to vector<2x32xf32>
    %350 = arith.addf %348, %349 : vector<2x32xf32>
    %351 = arith.negf %350 : vector<2x32xf32>
    %352 = math.exp %351 : vector<2x32xf32>
    %cst_92 = arith.constant 1.000000e+00 : f32
    %353 = vector.broadcast %cst_92 : f32 to vector<2x32xf32>
    %354 = arith.addf %353, %352 : vector<2x32xf32>
    %355 = arith.divf %353, %354 : vector<2x32xf32>
    %356 = vector.extract_strided_slice %345 {offsets = [0, 32], sizes = [2, 32], strides = [1, 1]} : vector<2x96xf32> to vector<2x32xf32>
    %357 = vector.extract_strided_slice %347 {offsets = [0, 32], sizes = [2, 32], strides = [1, 1]} : vector<2x96xf32> to vector<2x32xf32>
    %358 = arith.addf %356, %357 : vector<2x32xf32>
    %359 = arith.negf %358 : vector<2x32xf32>
    %360 = math.exp %359 : vector<2x32xf32>
    %cst_93 = arith.constant 1.000000e+00 : f32
    %361 = vector.broadcast %cst_93 : f32 to vector<2x32xf32>
    %362 = arith.addf %361, %360 : vector<2x32xf32>
    %363 = arith.divf %361, %362 : vector<2x32xf32>
    %364 = vector.extract_strided_slice %345 {offsets = [0, 64], sizes = [2, 32], strides = [1, 1]} : vector<2x96xf32> to vector<2x32xf32>
    %365 = vector.extract_strided_slice %347 {offsets = [0, 64], sizes = [2, 32], strides = [1, 1]} : vector<2x96xf32> to vector<2x32xf32>
    %366 = arith.mulf %355, %365 : vector<2x32xf32>
    %367 = arith.addf %364, %366 : vector<2x32xf32>
    %368 = math.tanh %367 : vector<2x32xf32>
    %cst_94 = arith.constant 1.000000e+00 : f32
    %369 = vector.broadcast %cst_94 : f32 to vector<2x32xf32>
    %370 = arith.subf %369, %363 : vector<2x32xf32>
    %371 = arith.mulf %370, %368 : vector<2x32xf32>
    %372 = arith.mulf %363, %314 : vector<2x32xf32>
    %373 = arith.addf %371, %372 : vector<2x32xf32>
    %cst_95 = arith.constant dense<0.000000e+00> : vector<2x96xf32>
    %374 = tpu.matmul %373, %13, %cst_95 {dimension_numbers = #tpu.dot_dimension_numbers<[1], [0], [0], [1], [0, 0, 1, 1], [], []>} : vector<2x32xf32>, vector<32x96xf32>, vector<2x96xf32> -> vector<2x96xf32>
    %375 = arith.addf %374, %25 : vector<2x96xf32>
    %cst_96 = arith.constant dense<0.000000e+00> : vector<2x96xf32>
    %376 = tpu.matmul %344, %17, %cst_96 {dimension_numbers = #tpu.dot_dimension_numbers<[1], [0], [0], [1], [0, 0, 1, 1], [], []>} : vector<2x32xf32>, vector<32x96xf32>, vector<2x96xf32> -> vector<2x96xf32>
    %377 = arith.addf %376, %33 : vector<2x96xf32>
    %378 = vector.extract_strided_slice %375 {offsets = [0, 0], sizes = [2, 32], strides = [1, 1]} : vector<2x96xf32> to vector<2x32xf32>
    %379 = vector.extract_strided_slice %377 {offsets = [0, 0], sizes = [2, 32], strides = [1, 1]} : vector<2x96xf32> to vector<2x32xf32>
    %380 = arith.addf %378, %379 : vector<2x32xf32>
    %381 = arith.negf %380 : vector<2x32xf32>
    %382 = math.exp %381 : vector<2x32xf32>
    %cst_97 = arith.constant 1.000000e+00 : f32
    %383 = vector.broadcast %cst_97 : f32 to vector<2x32xf32>
    %384 = arith.addf %383, %382 : vector<2x32xf32>
    %385 = arith.divf %383, %384 : vector<2x32xf32>
    %386 = vector.extract_strided_slice %375 {offsets = [0, 32], sizes = [2, 32], strides = [1, 1]} : vector<2x96xf32> to vector<2x32xf32>
    %387 = vector.extract_strided_slice %377 {offsets = [0, 32], sizes = [2, 32], strides = [1, 1]} : vector<2x96xf32> to vector<2x32xf32>
    %388 = arith.addf %386, %387 : vector<2x32xf32>
    %389 = arith.negf %388 : vector<2x32xf32>
    %390 = math.exp %389 : vector<2x32xf32>
    %cst_98 = arith.constant 1.000000e+00 : f32
    %391 = vector.broadcast %cst_98 : f32 to vector<2x32xf32>
    %392 = arith.addf %391, %390 : vector<2x32xf32>
    %393 = arith.divf %391, %392 : vector<2x32xf32>
    %394 = vector.extract_strided_slice %375 {offsets = [0, 64], sizes = [2, 32], strides = [1, 1]} : vector<2x96xf32> to vector<2x32xf32>
    %395 = vector.extract_strided_slice %377 {offsets = [0, 64], sizes = [2, 32], strides = [1, 1]} : vector<2x96xf32> to vector<2x32xf32>
    %396 = arith.mulf %385, %395 : vector<2x32xf32>
    %397 = arith.addf %394, %396 : vector<2x32xf32>
    %398 = math.tanh %397 : vector<2x32xf32>
    %cst_99 = arith.constant 1.000000e+00 : f32
    %399 = vector.broadcast %cst_99 : f32 to vector<2x32xf32>
    %400 = arith.subf %399, %393 : vector<2x32xf32>
    %401 = arith.mulf %400, %398 : vector<2x32xf32>
    %402 = arith.mulf %393, %344 : vector<2x32xf32>
    %403 = arith.addf %401, %402 : vector<2x32xf32>
    %cst_100 = arith.constant dense<0.000000e+00> : vector<2x32xf32>
    %404 = tpu.matmul %403, %34, %cst_100 {dimension_numbers = #tpu.dot_dimension_numbers<[1], [0], [0], [1], [0, 0, 1, 1], [], []>} : vector<2x32xf32>, vector<32x32xf32>, vector<2x32xf32> -> vector<2x32xf32>
    %405 = arith.addf %404, %38 : vector<2x32xf32>
    %cst_101 = arith.constant 0.000000e+00 : f32
    %406 = vector.broadcast %cst_101 : f32 to vector<2x32xf32>
    %407 = arith.maximumf %405, %406 : vector<2x32xf32>
    %cst_102 = arith.constant dense<0.000000e+00> : vector<2x32xf32>
    %408 = tpu.matmul %407, %35, %cst_102 {dimension_numbers = #tpu.dot_dimension_numbers<[1], [0], [0], [1], [0, 0, 1, 1], [], []>} : vector<2x32xf32>, vector<32x32xf32>, vector<2x32xf32> -> vector<2x32xf32>
    %409 = arith.addf %408, %41 : vector<2x32xf32>
    %cst_103 = arith.constant dense<0.000000e+00> : vector<2x96xf32>
    %410 = tpu.matmul %409, %11, %cst_103 {dimension_numbers = #tpu.dot_dimension_numbers<[1], [0], [0], [1], [0, 0, 1, 1], [], []>} : vector<2x32xf32>, vector<32x96xf32>, vector<2x96xf32> -> vector<2x96xf32>
    %411 = arith.addf %410, %21 : vector<2x96xf32>
    %cst_104 = arith.constant dense<0.000000e+00> : vector<2x96xf32>
    %412 = tpu.matmul %373, %15, %cst_104 {dimension_numbers = #tpu.dot_dimension_numbers<[1], [0], [0], [1], [0, 0, 1, 1], [], []>} : vector<2x32xf32>, vector<32x96xf32>, vector<2x96xf32> -> vector<2x96xf32>
    %413 = arith.addf %412, %29 : vector<2x96xf32>
    %414 = vector.extract_strided_slice %411 {offsets = [0, 0], sizes = [2, 32], strides = [1, 1]} : vector<2x96xf32> to vector<2x32xf32>
    %415 = vector.extract_strided_slice %413 {offsets = [0, 0], sizes = [2, 32], strides = [1, 1]} : vector<2x96xf32> to vector<2x32xf32>
    %416 = arith.addf %414, %415 : vector<2x32xf32>
    %417 = arith.negf %416 : vector<2x32xf32>
    %418 = math.exp %417 : vector<2x32xf32>
    %cst_105 = arith.constant 1.000000e+00 : f32
    %419 = vector.broadcast %cst_105 : f32 to vector<2x32xf32>
    %420 = arith.addf %419, %418 : vector<2x32xf32>
    %421 = arith.divf %419, %420 : vector<2x32xf32>
    %422 = vector.extract_strided_slice %411 {offsets = [0, 32], sizes = [2, 32], strides = [1, 1]} : vector<2x96xf32> to vector<2x32xf32>
    %423 = vector.extract_strided_slice %413 {offsets = [0, 32], sizes = [2, 32], strides = [1, 1]} : vector<2x96xf32> to vector<2x32xf32>
    %424 = arith.addf %422, %423 : vector<2x32xf32>
    %425 = arith.negf %424 : vector<2x32xf32>
    %426 = math.exp %425 : vector<2x32xf32>
    %cst_106 = arith.constant 1.000000e+00 : f32
    %427 = vector.broadcast %cst_106 : f32 to vector<2x32xf32>
    %428 = arith.addf %427, %426 : vector<2x32xf32>
    %429 = arith.divf %427, %428 : vector<2x32xf32>
    %430 = vector.extract_strided_slice %411 {offsets = [0, 64], sizes = [2, 32], strides = [1, 1]} : vector<2x96xf32> to vector<2x32xf32>
    %431 = vector.extract_strided_slice %413 {offsets = [0, 64], sizes = [2, 32], strides = [1, 1]} : vector<2x96xf32> to vector<2x32xf32>
    %432 = arith.mulf %421, %431 : vector<2x32xf32>
    %433 = arith.addf %430, %432 : vector<2x32xf32>
    %434 = math.tanh %433 : vector<2x32xf32>
    %cst_107 = arith.constant 1.000000e+00 : f32
    %435 = vector.broadcast %cst_107 : f32 to vector<2x32xf32>
    %436 = arith.subf %435, %429 : vector<2x32xf32>
    %437 = arith.mulf %436, %434 : vector<2x32xf32>
    %438 = arith.mulf %429, %373 : vector<2x32xf32>
    %439 = arith.addf %437, %438 : vector<2x32xf32>
    %cst_108 = arith.constant dense<0.000000e+00> : vector<2x96xf32>
    %440 = tpu.matmul %439, %13, %cst_108 {dimension_numbers = #tpu.dot_dimension_numbers<[1], [0], [0], [1], [0, 0, 1, 1], [], []>} : vector<2x32xf32>, vector<32x96xf32>, vector<2x96xf32> -> vector<2x96xf32>
    %441 = arith.addf %440, %25 : vector<2x96xf32>
    %cst_109 = arith.constant dense<0.000000e+00> : vector<2x96xf32>
    %442 = tpu.matmul %403, %17, %cst_109 {dimension_numbers = #tpu.dot_dimension_numbers<[1], [0], [0], [1], [0, 0, 1, 1], [], []>} : vector<2x32xf32>, vector<32x96xf32>, vector<2x96xf32> -> vector<2x96xf32>
    %443 = arith.addf %442, %33 : vector<2x96xf32>
    %444 = vector.extract_strided_slice %441 {offsets = [0, 0], sizes = [2, 32], strides = [1, 1]} : vector<2x96xf32> to vector<2x32xf32>
    %445 = vector.extract_strided_slice %443 {offsets = [0, 0], sizes = [2, 32], strides = [1, 1]} : vector<2x96xf32> to vector<2x32xf32>
    %446 = arith.addf %444, %445 : vector<2x32xf32>
    %447 = arith.negf %446 : vector<2x32xf32>
    %448 = math.exp %447 : vector<2x32xf32>
    %cst_110 = arith.constant 1.000000e+00 : f32
    %449 = vector.broadcast %cst_110 : f32 to vector<2x32xf32>
    %450 = arith.addf %449, %448 : vector<2x32xf32>
    %451 = arith.divf %449, %450 : vector<2x32xf32>
    %452 = vector.extract_strided_slice %441 {offsets = [0, 32], sizes = [2, 32], strides = [1, 1]} : vector<2x96xf32> to vector<2x32xf32>
    %453 = vector.extract_strided_slice %443 {offsets = [0, 32], sizes = [2, 32], strides = [1, 1]} : vector<2x96xf32> to vector<2x32xf32>
    %454 = arith.addf %452, %453 : vector<2x32xf32>
    %455 = arith.negf %454 : vector<2x32xf32>
    %456 = math.exp %455 : vector<2x32xf32>
    %cst_111 = arith.constant 1.000000e+00 : f32
    %457 = vector.broadcast %cst_111 : f32 to vector<2x32xf32>
    %458 = arith.addf %457, %456 : vector<2x32xf32>
    %459 = arith.divf %457, %458 : vector<2x32xf32>
    %460 = vector.extract_strided_slice %441 {offsets = [0, 64], sizes = [2, 32], strides = [1, 1]} : vector<2x96xf32> to vector<2x32xf32>
    %461 = vector.extract_strided_slice %443 {offsets = [0, 64], sizes = [2, 32], strides = [1, 1]} : vector<2x96xf32> to vector<2x32xf32>
    %462 = arith.mulf %451, %461 : vector<2x32xf32>
    %463 = arith.addf %460, %462 : vector<2x32xf32>
    %464 = math.tanh %463 : vector<2x32xf32>
    %cst_112 = arith.constant 1.000000e+00 : f32
    %465 = vector.broadcast %cst_112 : f32 to vector<2x32xf32>
    %466 = arith.subf %465, %459 : vector<2x32xf32>
    %467 = arith.mulf %466, %464 : vector<2x32xf32>
    %468 = arith.mulf %459, %403 : vector<2x32xf32>
    %469 = arith.addf %467, %468 : vector<2x32xf32>
    %cst_113 = arith.constant dense<0.000000e+00> : vector<2x32xf32>
    %470 = tpu.matmul %469, %34, %cst_113 {dimension_numbers = #tpu.dot_dimension_numbers<[1], [0], [0], [1], [0, 0, 1, 1], [], []>} : vector<2x32xf32>, vector<32x32xf32>, vector<2x32xf32> -> vector<2x32xf32>
    %471 = arith.addf %470, %38 : vector<2x32xf32>
    %cst_114 = arith.constant 0.000000e+00 : f32
    %472 = vector.broadcast %cst_114 : f32 to vector<2x32xf32>
    %473 = arith.maximumf %471, %472 : vector<2x32xf32>
    %cst_115 = arith.constant dense<0.000000e+00> : vector<2x32xf32>
    %474 = tpu.matmul %473, %35, %cst_115 {dimension_numbers = #tpu.dot_dimension_numbers<[1], [0], [0], [1], [0, 0, 1, 1], [], []>} : vector<2x32xf32>, vector<32x32xf32>, vector<2x32xf32> -> vector<2x32xf32>
    %475 = arith.addf %474, %41 : vector<2x32xf32>
    %476 = vector.shape_cast %409 : vector<2x32xf32> to vector<2x1x32xf32>
    %477 = vector.shape_cast %475 : vector<2x32xf32> to vector<2x1x32xf32>
    %478 = tpu.concatenate %476, %477 in 1 : vector<2x1x32xf32>, vector<2x1x32xf32> -> vector<2x2x32xf32>
    %479 = vector.shape_cast %478 : vector<2x2x32xf32> to vector<4x32xf32>
    %480 = arith.mulf %479, %479 : vector<4x32xf32>
    %cst_116 = arith.constant dense<0.000000e+00> : vector<4xf32>
    %481 = vector.multi_reduction <add>, %480, %cst_116 [1] : vector<4x32xf32> to vector<4xf32>
    %482 = vector.shape_cast %481 : vector<4xf32> to vector<4x1xf32>
    %cst_117 = arith.constant 1.000000e-24 : f32
    %483 = vector.broadcast %cst_117 : f32 to vector<4x1xf32>
    %484 = arith.maximumf %482, %483 : vector<4x1xf32>
    %485 = math.rsqrt %484 : vector<4x1xf32>
    %486 = arith.mulf %7, %7 : vector<16x32xf32>
    %cst_118 = arith.constant dense<0.000000e+00> : vector<16xf32>
    %487 = vector.multi_reduction <add>, %486, %cst_118 [1] : vector<16x32xf32> to vector<16xf32>
    %488 = vector.shape_cast %487 : vector<16xf32> to vector<16x1xf32>
    %cst_119 = arith.constant 1.000000e-24 : f32
    %489 = vector.broadcast %cst_119 : f32 to vector<16x1xf32>
    %490 = arith.maximumf %488, %489 : vector<16x1xf32>
    %491 = math.rsqrt %490 : vector<16x1xf32>
    %cst_120 = arith.constant 14.2857141 : f32
    %492 = vector.broadcast %cst_120 : f32 to vector<4x1xf32>
    %493 = arith.mulf %485, %492 : vector<4x1xf32>
    %494 = vector.broadcast %493 : vector<4x1xf32> to vector<4x32xf32>
    %495 = arith.mulf %479, %494 : vector<4x32xf32>
    %496 = vector.broadcast %491 : vector<16x1xf32> to vector<16x32xf32>
    %497 = arith.mulf %7, %496 : vector<16x32xf32>
    %cst_121 = arith.constant dense<0.000000e+00> : vector<4x16xf32>
    %498 = tpu.matmul %495, %497, %cst_121 {dimension_numbers = #tpu.dot_dimension_numbers<[1], [1], [0], [0], [0, 0, 1, 0], [], []>} : vector<4x32xf32>, vector<16x32xf32>, vector<4x16xf32> -> vector<4x16xf32>
    %c0_122 = arith.constant 0 : index
    %c0_123 = arith.constant 0 : index
    %499 = vector.load %arg12[%c0_122, %c0_123] : memref<4x16xf32, #tpu.memory_space<vmem>>, vector<4x16xf32>
    tpu.vector_store %arg12[%c0_122, %c0_123], %498 {strides = array<i32>} : memref<4x16xf32, #tpu.memory_space<vmem>>, vector<4x16xf32>,
    return
  }
}

</mosaic_0001>

<llo_original>
// kernel: tpu_custom_call.1
$region0: #{tpu_custom_call.1}
  #allocation0 [shape = 'u32[]', space=smem, size = 0x4, offset = 0x4, fixed_abs, tag = 'smem constant byte address 0x4 - core index']
  #allocation1 [shape = 'u32[144,128]{1,0:T(1,128)}', space=vmem, size = 0x12000, scoped, tag = 'internal scratch']
  %s0 = inlined_call_operand.vmem [shape: f32[16,1024], index: 0, kind: input, shape index: {}]
  %s1 = inlined_call_operand.vmem [shape: f32[16,16], index: 1, kind: input, shape index: {}]
  %s2 = inlined_call_operand.vmem [shape: f32[1024,32], index: 2, kind: input, shape index: {}]
  %s3 = inlined_call_operand.vmem [shape: f32[1,32], index: 3, kind: input, shape index: {}]
  %s4 = inlined_call_operand.vmem [shape: f32[2,32,96], index: 4, kind: input, shape index: {}]
  %s5 = inlined_call_operand.vmem [shape: f32[2,32,96], index: 5, kind: input, shape index: {}]
  %s6 = inlined_call_operand.vmem [shape: f32[2,1,96], index: 6, kind: input, shape index: {}]
  %s7 = inlined_call_operand.vmem [shape: f32[2,1,96], index: 7, kind: input, shape index: {}]
  %s8 = inlined_call_operand.vmem [shape: f32[32,32], index: 8, kind: input, shape index: {}]
  %s9 = inlined_call_operand.vmem [shape: f32[1,32], index: 9, kind: input, shape index: {}]
  %s10 = inlined_call_operand.vmem [shape: f32[32,32], index: 10, kind: input, shape index: {}]
  %s11 = inlined_call_operand.vmem [shape: f32[1,32], index: 11, kind: input, shape index: {}]
  %s12 = inlined_call_operand.hbm [shape: f32[4,16], index: 12, kind: output, shape index: {}]
  %s13 = sld [smem:[#allocation0]]
  $region58: #{tpu_custom_call.1} parent=0
    _
  %s15 = ssub.s32 1, %s13
  %s16 = scalar_select 0, %s15, %s13
  $region1: #{tpu_custom_call.1} parent=0
    #allocation2 [shape = 'u8[2048]{0}', space=vmem, size = 0x800, scoped, tag = 'output window, operand 0, single buffered']
    #allocation3 [shape = 's32[1]{0}', space=sflag, size = 0x4, scoped, tag = 'scoped memory for tpu_custom_call.1']
    %17 = vsyncpa [#allocation3], 0
    // Predicated region
    $region2: #{tpu_custom_call.1} parent=1 // pred_check
      _
    $region3: #{tpu_custom_call.1} parent=1 // pred_check_branch
      %19 = sbr.rel (0) target = $region5
    $region4: #{tpu_custom_call.1} parent=1 // pred_region
      _
    $region5: #{tpu_custom_call.1} parent=1 // pred_fallthru
      _
    // Predicated region
    $region6: #{tpu_custom_call.1} parent=1 // pred_check
      _
    $region7: #{tpu_custom_call.1} parent=1 // pred_check_branch
      %21 = sbr.rel (0) target = $region9
    $region8: #{tpu_custom_call.1} parent=1 // pred_region
      _
    $region9: #{tpu_custom_call.1} parent=1 // pred_fallthru
      _
    // Predicated region
    $region10: #{tpu_custom_call.1} parent=1 // pred_check
      _
    $region11: #{tpu_custom_call.1} parent=1 // pred_check_branch
      %23 = sbr.rel (0) target = $region13
    $region12: #{tpu_custom_call.1} parent=1 // pred_region
      _
    $region13: #{tpu_custom_call.1} parent=1 // pred_fallthru
      _
    // Predicated region
    $region14: #{tpu_custom_call.1} parent=1 // pred_check
      _
    $region15: #{tpu_custom_call.1} parent=1 // pred_check_branch
      %25 = sbr.rel (0) target = $region17
    $region16: #{tpu_custom_call.1} parent=1 // pred_region
      _
    $region17: #{tpu_custom_call.1} parent=1 // pred_fallthru
      _
    // Predicated region
    $region18: #{tpu_custom_call.1} parent=1 // pred_check
      _
    $region19: #{tpu_custom_call.1} parent=1 // pred_check_branch
      %27 = sbr.rel (0) target = $region21
    $region20: #{tpu_custom_call.1} parent=1 // pred_region
      _
    $region21: #{tpu_custom_call.1} parent=1 // pred_fallthru
      _
    // Predicated region
    $region22: #{tpu_custom_call.1} parent=1 // pred_check
      _
    $region23: #{tpu_custom_call.1} parent=1 // pred_check_branch
      %29 = sbr.rel (0) target = $region25
    $region24: #{tpu_custom_call.1} parent=1 // pred_region
      _
    $region25: #{tpu_custom_call.1} parent=1 // pred_fallthru
      _
    // Predicated region
    $region26: #{tpu_custom_call.1} parent=1 // pred_check
      _
    $region27: #{tpu_custom_call.1} parent=1 // pred_check_branch
      %31 = sbr.rel (0) target = $region29
    $region28: #{tpu_custom_call.1} parent=1 // pred_region
      _
    $region29: #{tpu_custom_call.1} parent=1 // pred_fallthru
      _
    // Predicated region
    $region30: #{tpu_custom_call.1} parent=1 // pred_check
      _
    $region31: #{tpu_custom_call.1} parent=1 // pred_check_branch
      %33 = sbr.rel (0) target = $region33
    $region32: #{tpu_custom_call.1} parent=1 // pred_region
      _
    $region33: #{tpu_custom_call.1} parent=1 // pred_fallthru
      _
    // Predicated region
    $region34: #{tpu_custom_call.1} parent=1 // pred_check
      _
    $region35: #{tpu_custom_call.1} parent=1 // pred_check_branch
      %35 = sbr.rel (0) target = $region37
    $region36: #{tpu_custom_call.1} parent=1 // pred_region
      _
    $region37: #{tpu_custom_call.1} parent=1 // pred_fallthru
      _
    // Predicated region
    $region38: #{tpu_custom_call.1} parent=1 // pred_check
      _
    $region39: #{tpu_custom_call.1} parent=1 // pred_check_branch
      %37 = sbr.rel (0) target = $region41
    $region40: #{tpu_custom_call.1} parent=1 // pred_region
      _
    $region41: #{tpu_custom_call.1} parent=1 // pred_fallthru
      _
    // Predicated region
    $region42: #{tpu_custom_call.1} parent=1 // pred_check
      _
    $region43: #{tpu_custom_call.1} parent=1 // pred_check_branch
      %39 = sbr.rel (0) target = $region45
    $region44: #{tpu_custom_call.1} parent=1 // pred_region
      _
    $region45: #{tpu_custom_call.1} parent=1 // pred_fallthru
      _
    // Predicated region
    $region46: #{tpu_custom_call.1} parent=1 // pred_check
      _
    $region47: #{tpu_custom_call.1} parent=1 // pred_check_branch
      %41 = sbr.rel (0) target = $region49
    $region48: #{tpu_custom_call.1} parent=1 // pred_region
      _
    $region49: #{tpu_custom_call.1} parent=1 // pred_fallthru
      _
    %v42 = vld [vmem:[%s0] sm:$0xff]
    %v43 = vld [vmem:[%s0 + $0x8] sm:$0xff]
    %v44 = vld [vmem:[%s0 + $0x10] sm:$0xff]
    %v45 = vld [vmem:[%s0 + $0x18] sm:$0xff]
    %v46 = vld [vmem:[%s0 + $0x20] sm:$0xff]
    %v47 = vld [vmem:[%s0 + $0x28] sm:$0xff]
    %v48 = vld [vmem:[%s0 + $0x30] sm:$0xff]
    %v49 = vld [vmem:[%s0 + $0x38] sm:$0xff]
    %v50 = vld [vmem:[%s0 + $0x40] sm:$0xff]
    %v51 = vld [vmem:[%s0 + $0x48] sm:$0xff]
    %v52 = vld [vmem:[%s0 + $0x50] sm:$0xff]
    %v53 = vld [vmem:[%s0 + $0x58] sm:$0xff]
    %v54 = vld [vmem:[%s0 + $0x60] sm:$0xff]
    %v55 = vld [vmem:[%s0 + $0x68] sm:$0xff]
    %v56 = vld [vmem:[%s0 + $0x70] sm:$0xff]
    %v57 = vld [vmem:[%s0 + $0x78] sm:$0xff]
    %v58 = vld [vmem:[%s2] sm:$0xff]
    %v59 = vld [vmem:[%s2 + $0x8] sm:$0xff]
    %v60 = vld [vmem:[%s2 + $0x10] sm:$0xff]
    %v61 = vld [vmem:[%s2 + $0x18] sm:$0xff]
    %v62 = vld [vmem:[%s2 + $0x20] sm:$0xff]
    %v63 = vld [vmem:[%s2 + $0x28] sm:$0xff]
    %v64 = vld [vmem:[%s2 + $0x30] sm:$0xff]
    %v65 = vld [vmem:[%s2 + $0x38] sm:$0xff]
    %v66 = vld [vmem:[%s2 + $0x40] sm:$0xff]
    %v67 = vld [vmem:[%s2 + $0x48] sm:$0xff]
    %v68 = vld [vmem:[%s2 + $0x50] sm:$0xff]
    %v69 = vld [vmem:[%s2 + $0x58] sm:$0xff]
    %v70 = vld [vmem:[%s2 + $0x60] sm:$0xff]
    %v71 = vld [vmem:[%s2 + $0x68] sm:$0xff]
    %v72 = vld [vmem:[%s2 + $0x70] sm:$0xff]
    %v73 = vld [vmem:[%s2 + $0x78] sm:$0xff]
    %v74 = vld [vmem:[%s2 + $0x80] sm:$0xff]
    %v75 = vld [vmem:[%s2 + $0x88] sm:$0xff]
    %v76 = vld [vmem:[%s2 + $0x90] sm:$0xff]
    %v77 = vld [vmem:[%s2 + $0x98] sm:$0xff]
    %v78 = vld [vmem:[%s2 + $0xa0] sm:$0xff]
    %v79 = vld [vmem:[%s2 + $0xa8] sm:$0xff]
    %v80 = vld [vmem:[%s2 + $0xb0] sm:$0xff]
    %v81 = vld [vmem:[%s2 + $0xb8] sm:$0xff]
    %v82 = vld [vmem:[%s2 + $0xc0] sm:$0xff]
    %v83 = vld [vmem:[%s2 + $0xc8] sm:$0xff]
    %v84 = vld [vmem:[%s2 + $0xd0] sm:$0xff]
    %v85 = vld [vmem:[%s2 + $0xd8] sm:$0xff]
    %v86 = vld [vmem:[%s2 + $0xe0] sm:$0xff]
    %v87 = vld [vmem:[%s2 + $0xe8] sm:$0xff]
    %v88 = vld [vmem:[%s2 + $0xf0] sm:$0xff]
    %v89 = vld [vmem:[%s2 + $0xf8] sm:$0xff]
    %v90 = vld [vmem:[%s2 + $0x100] sm:$0xff]
    %v91 = vld [vmem:[%s2 + $0x108] sm:$0xff]
    %v92 = vld [vmem:[%s2 + $0x110] sm:$0xff]
    %v93 = vld [vmem:[%s2 + $0x118] sm:$0xff]
    %v94 = vld [vmem:[%s2 + $0x120] sm:$0xff]
    %v95 = vld [vmem:[%s2 + $0x128] sm:$0xff]
    %v96 = vld [vmem:[%s2 + $0x130] sm:$0xff]
    %v97 = vld [vmem:[%s2 + $0x138] sm:$0xff]
    %v98 = vld [vmem:[%s2 + $0x140] sm:$0xff]
    %v99 = vld [vmem:[%s2 + $0x148] sm:$0xff]
    %v100 = vld [vmem:[%s2 + $0x150] sm:$0xff]
    %v101 = vld [vmem:[%s2 + $0x158] sm:$0xff]
    %v102 = vld [vmem:[%s2 + $0x160] sm:$0xff]
    %v103 = vld [vmem:[%s2 + $0x168] sm:$0xff]
    %v104 = vld [vmem:[%s2 + $0x170] sm:$0xff]
    %v105 = vld [vmem:[%s2 + $0x178] sm:$0xff]
    %v106 = vld [vmem:[%s2 + $0x180] sm:$0xff]
    %v107 = vld [vmem:[%s2 + $0x188] sm:$0xff]
    %v108 = vld [vmem:[%s2 + $0x190] sm:$0xff]
    %v109 = vld [vmem:[%s2 + $0x198] sm:$0xff]
    %v110 = vld [vmem:[%s2 + $0x1a0] sm:$0xff]
    %v111 = vld [vmem:[%s2 + $0x1a8] sm:$0xff]
    %v112 = vld [vmem:[%s2 + $0x1b0] sm:$0xff]
    %v113 = vld [vmem:[%s2 + $0x1b8] sm:$0xff]
    %v114 = vld [vmem:[%s2 + $0x1c0] sm:$0xff]
    %v115 = vld [vmem:[%s2 + $0x1c8] sm:$0xff]
    %v116 = vld [vmem:[%s2 + $0x1d0] sm:$0xff]
    %v117 = vld [vmem:[%s2 + $0x1d8] sm:$0xff]
    %v118 = vld [vmem:[%s2 + $0x1e0] sm:$0xff]
    %v119 = vld [vmem:[%s2 + $0x1e8] sm:$0xff]
    %v120 = vld [vmem:[%s2 + $0x1f0] sm:$0xff]
    %v121 = vld [vmem:[%s2 + $0x1f8] sm:$0xff]
    %v122 = vld [vmem:[%s2 + $0x200] sm:$0xff]
    %v123 = vld [vmem:[%s2 + $0x208] sm:$0xff]
    %v124 = vld [vmem:[%s2 + $0x210] sm:$0xff]
    %v125 = vld [vmem:[%s2 + $0x218] sm:$0xff]
    %v126 = vld [vmem:[%s2 + $0x220] sm:$0xff]
    %v127 = vld [vmem:[%s2 + $0x228] sm:$0xff]
    %v128 = vld [vmem:[%s2 + $0x230] sm:$0xff]
    %v129 = vld [vmem:[%s2 + $0x238] sm:$0xff]
    %v130 = vld [vmem:[%s2 + $0x240] sm:$0xff]
    %v131 = vld [vmem:[%s2 + $0x248] sm:$0xff]
    %v132 = vld [vmem:[%s2 + $0x250] sm:$0xff]
    %v133 = vld [vmem:[%s2 + $0x258] sm:$0xff]
    %v134 = vld [vmem:[%s2 + $0x260] sm:$0xff]
    %v135 = vld [vmem:[%s2 + $0x268] sm:$0xff]
    %v136 = vld [vmem:[%s2 + $0x270] sm:$0xff]
    %v137 = vld [vmem:[%s2 + $0x278] sm:$0xff]
    %v138 = vld [vmem:[%s2 + $0x280] sm:$0xff]
    %v139 = vld [vmem:[%s2 + $0x288] sm:$0xff]
    %v140 = vld [vmem:[%s2 + $0x290] sm:$0xff]
    %v141 = vld [vmem:[%s2 + $0x298] sm:$0xff]
    %v142 = vld [vmem:[%s2 + $0x2a0] sm:$0xff]
    %v143 = vld [vmem:[%s2 + $0x2a8] sm:$0xff]
    %v144 = vld [vmem:[%s2 + $0x2b0] sm:$0xff]
    %v145 = vld [vmem:[%s2 + $0x2b8] sm:$0xff]
    %v146 = vld [vmem:[%s2 + $0x2c0] sm:$0xff]
    %v147 = vld [vmem:[%s2 + $0x2c8] sm:$0xff]
    %v148 = vld [vmem:[%s2 + $0x2d0] sm:$0xff]
    %v149 = vld [vmem:[%s2 + $0x2d8] sm:$0xff]
    %v150 = vld [vmem:[%s2 + $0x2e0] sm:$0xff]
    %v151 = vld [vmem:[%s2 + $0x2e8] sm:$0xff]
    %v152 = vld [vmem:[%s2 + $0x2f0] sm:$0xff]
    %v153 = vld [vmem:[%s2 + $0x2f8] sm:$0xff]
    %v154 = vld [vmem:[%s2 + $0x300] sm:$0xff]
    %v155 = vld [vmem:[%s2 + $0x308] sm:$0xff]
    %v156 = vld [vmem:[%s2 + $0x310] sm:$0xff]
    %v157 = vld [vmem:[%s2 + $0x318] sm:$0xff]
    %v158 = vld [vmem:[%s2 + $0x320] sm:$0xff]
    %v159 = vld [vmem:[%s2 + $0x328] sm:$0xff]
    %v160 = vld [vmem:[%s2 + $0x330] sm:$0xff]
    %v161 = vld [vmem:[%s2 + $0x338] sm:$0xff]
    %v162 = vld [vmem:[%s2 + $0x340] sm:$0xff]
    %v163 = vld [vmem:[%s2 + $0x348] sm:$0xff]
    %v164 = vld [vmem:[%s2 + $0x350] sm:$0xff]
    %v165 = vld [vmem:[%s2 + $0x358] sm:$0xff]
    %v166 = vld [vmem:[%s2 + $0x360] sm:$0xff]
    %v167 = vld [vmem:[%s2 + $0x368] sm:$0xff]
    %v168 = vld [vmem:[%s2 + $0x370] sm:$0xff]
    %v169 = vld [vmem:[%s2 + $0x378] sm:$0xff]
    %v170 = vld [vmem:[%s2 + $0x380] sm:$0xff]
    %v171 = vld [vmem:[%s2 + $0x388] sm:$0xff]
    %v172 = vld [vmem:[%s2 + $0x390] sm:$0xff]
    %v173 = vld [vmem:[%s2 + $0x398] sm:$0xff]
    %v174 = vld [vmem:[%s2 + $0x3a0] sm:$0xff]
    %v175 = vld [vmem:[%s2 + $0x3a8] sm:$0xff]
    %v176 = vld [vmem:[%s2 + $0x3b0] sm:$0xff]
    %v177 = vld [vmem:[%s2 + $0x3b8] sm:$0xff]
    %v178 = vld [vmem:[%s2 + $0x3c0] sm:$0xff]
    %v179 = vld [vmem:[%s2 + $0x3c8] sm:$0xff]
    %v180 = vld [vmem:[%s2 + $0x3d0] sm:$0xff]
    %v181 = vld [vmem:[%s2 + $0x3d8] sm:$0xff]
    %v182 = vld [vmem:[%s2 + $0x3e0] sm:$0xff]
    %v183 = vld [vmem:[%s2 + $0x3e8] sm:$0xff]
    %v184 = vld [vmem:[%s2 + $0x3f0] sm:$0xff]
    %v185 = vld [vmem:[%s2 + $0x3f8] sm:$0xff]
    %v186 = vld [vmem:[%s3] sm:$0x1]
    %v188 = vlaneseq
    %v189 = vshrl.u32 %v188, 7
    %v190 = vsub.s32 0, %v189
    %v191 = vrot.slane %v186, %v190
    %193 = vmatprep.subr.mxu0 0.0
    %194 = vmatpush1.msra.mxu0 %v58
    %195 = vmatprep.subr.mxu0 0.0
    %196 = vmatpush1.msra.mxu0 %v59
    %197 = vmatprep.subr.mxu0 0.0
    %198 = vmatpush1.msra.mxu0 %v60
    %199 = vmatprep.subr.mxu0 0.0
    %200 = vmatpush1.msra.mxu0 %v61
    %201 = vmatprep.subr.mxu0 0.0
    %202 = vmatpush1.msra.mxu0 %v62
    %203 = vmatprep.subr.mxu0 0.0
    %204 = vmatpush1.msra.mxu0 %v63
    %205 = vmatprep.subr.mxu0 0.0
    %206 = vmatpush1.msra.mxu0 %v64
    %207 = vmatprep.subr.mxu0 0.0
    %208 = vmatpush1.msra.mxu0 %v65
    %209 = vmatprep.subr.mxu0 0.0
    %210 = vmatpush1.msra.mxu0 %v66
    %211 = vmatprep.subr.mxu0 0.0
    %212 = vmatpush1.msra.mxu0 %v67
    %213 = vmatprep.subr.mxu0 0.0
    %214 = vmatpush1.msra.mxu0 %v68
    %215 = vmatprep.subr.mxu0 0.0
    %216 = vmatpush1.msra.mxu0 %v69
    %217 = vmatprep.subr.mxu0 0.0
    %218 = vmatpush1.msra.mxu0 %v70
    %219 = vmatprep.subr.mxu0 0.0
    %220 = vmatpush1.msra.mxu0 %v71
    %221 = vmatprep.subr.mxu0 0.0
    %222 = vmatpush1.msra.mxu0 %v72
    %223 = vmatprep.subr.mxu0 0.0
    %224 = vmatpush1.msra.mxu0 %v73
    %225 = vmatprep.subr.mxu0 0.0
    %226 = vmatpush1.msra.mxu0 %v74
    %227 = vmatprep.subr.mxu0 0.0
    %228 = vmatpush1.msra.mxu0 %v75
    %229 = vmatprep.subr.mxu0 0.0
    %230 = vmatpush1.msra.mxu0 %v76
    %231 = vmatprep.subr.mxu0 0.0
    %232 = vmatpush1.msra.mxu0 %v77
    %233 = vmatprep.subr.mxu0 0.0
    %234 = vmatpush1.msra.mxu0 %v78
    %235 = vmatprep.subr.mxu0 0.0
    %236 = vmatpush1.msra.mxu0 %v79
    %237 = vmatprep.subr.mxu0 0.0
    %238 = vmatpush1.msra.mxu0 %v80
    %239 = vmatprep.subr.mxu0 0.0
    %240 = vmatpush1.msra.mxu0 %v81
    %241 = vmatprep.subr.mxu0 0.0
    %242 = vmatpush1.msra.mxu0 %v82
    %243 = vmatprep.subr.mxu0 0.0
    %244 = vmatpush1.msra.mxu0 %v83
    %245 = vmatprep.subr.mxu0 0.0
    %246 = vmatpush1.msra.mxu0 %v84
    %247 = vmatprep.subr.mxu0 0.0
    %248 = vmatpush1.msra.mxu0 %v85
    %249 = vmatprep.subr.mxu0 0.0
    %250 = vmatpush1.msra.mxu0 %v86
    %251 = vmatprep.subr.mxu0 0.0
    %252 = vmatpush1.msra.mxu0 %v87
    %253 = vmatprep.subr.mxu0 0.0
    %254 = vmatpush1.msra.mxu0 %v88
    %255 = vmatprep.subr.mxu0 0.0
    %256 = vmatpush1.msra.mxu0 %v89
    %257 = vmatprep.mubr.f32.mxu0 %v43
    %258 = vmatmul.mubr.f32.gmra.mrb[0].mxu0 %v42
    %v259 = vpop.f32.mrb[0].mxu0
    %v260 = vadd.f32 %v191, %v259
    %v261 = vpop.f32.mrb[0].mxu0
    %262 = vmatprep.mubr.f32.mxu0 %v51
    %263 = vmatmul.mubr.f32.gmra.mrb[0].mxu0 %v50
    %v264 = vpop.f32.mrb[0].mxu0
    %v265 = vadd.f32 %v191, %v264
    %v266 = vpop.f32.mrb[0].mxu0
    %267 = vdwg.mxu0
    %268 = vmatprep.subr.mxu0 0.0
    %269 = vmatpush1.msra.mxu0 %v90
    %270 = vmatprep.subr.mxu0 0.0
    %271 = vmatpush1.msra.mxu0 %v91
    %272 = vmatprep.subr.mxu0 0.0
    %273 = vmatpush1.msra.mxu0 %v92
    %274 = vmatprep.subr.mxu0 0.0
    %275 = vmatpush1.msra.mxu0 %v93
    %276 = vmatprep.subr.mxu0 0.0
    %277 = vmatpush1.msra.mxu0 %v94
    %278 = vmatprep.subr.mxu0 0.0
    %279 = vmatpush1.msra.mxu0 %v95
    %280 = vmatprep.subr.mxu0 0.0
    %281 = vmatpush1.msra.mxu0 %v96
    %282 = vmatprep.subr.mxu0 0.0
    %283 = vmatpush1.msra.mxu0 %v97
    %284 = vmatprep.subr.mxu0 0.0
    %285 = vmatpush1.msra.mxu0 %v98
    %286 = vmatprep.subr.mxu0 0.0
    %287 = vmatpush1.msra.mxu0 %v99
    %288 = vmatprep.subr.mxu0 0.0
    %289 = vmatpush1.msra.mxu0 %v100
    %290 = vmatprep.subr.mxu0 0.0
    %291 = vmatpush1.msra.mxu0 %v101
    %292 = vmatprep.subr.mxu0 0.0
    %293 = vmatpush1.msra.mxu0 %v102
    %294 = vmatprep.subr.mxu0 0.0
    %295 = vmatpush1.msra.mxu0 %v103
    %296 = vmatprep.subr.mxu0 0.0
    %297 = vmatpush1.msra.mxu0 %v104
    %298 = vmatprep.subr.mxu0 0.0
    %299 = vmatpush1.msra.mxu0 %v105
    %300 = vmatprep.subr.mxu0 0.0
    %301 = vmatpush1.msra.mxu0 %v106
    %302 = vmatprep.subr.mxu0 0.0
    %303 = vmatpush1.msra.mxu0 %v107
    %304 = vmatprep.subr.mxu0 0.0
    %305 = vmatpush1.msra.mxu0 %v108
    %306 = vmatprep.subr.mxu0 0.0
    %307 = vmatpush1.msra.mxu0 %v109
    %308 = vmatprep.subr.mxu0 0.0
    %309 = vmatpush1.msra.mxu0 %v110
    %310 = vmatprep.subr.mxu0 0.0
    %311 = vmatpush1.msra.mxu0 %v111
    %312 = vmatprep.subr.mxu0 0.0
    %313 = vmatpush1.msra.mxu0 %v112
    %314 = vmatprep.subr.mxu0 0.0
    %315 = vmatpush1.msra.mxu0 %v113
    %316 = vmatprep.subr.mxu0 0.0
    %317 = vmatpush1.msra.mxu0 %v114
    %318 = vmatprep.subr.mxu0 0.0
    %319 = vmatpush1.msra.mxu0 %v115
    %320 = vmatprep.subr.mxu0 0.0
    %321 = vmatpush1.msra.mxu0 %v116
    %322 = vmatprep.subr.mxu0 0.0
    %323 = vmatpush1.msra.mxu0 %v117
    %324 = vmatprep.subr.mxu0 0.0
    %325 = vmatpush1.msra.mxu0 %v118
    %326 = vmatprep.subr.mxu0 0.0
    %327 = vmatpush1.msra.mxu0 %v119
    %328 = vmatprep.subr.mxu0 0.0
    %329 = vmatpush1.msra.mxu0 %v120
    %330 = vmatprep.subr.mxu0 0.0
    %331 = vmatpush1.msra.mxu0 %v121
    %332 = vmatprep.mubr.f32.mxu0 %v45
    %333 = vmatmul.mubr.f32.gmra.mrb[0].mxu0 %v44
    %v334 = vpop.f32.mrb[0].mxu0
    %v335 = vadd.f32 %v260, %v334
    %v336 = vpop.f32.mrb[0].mxu0
    %337 = vmatprep.mubr.f32.mxu0 %v53
    %338 = vmatmul.mubr.f32.gmra.mrb[0].mxu0 %v52
    %v339 = vpop.f32.mrb[0].mxu0
    %v340 = vadd.f32 %v265, %v339
    %v341 = vpop.f32.mrb[0].mxu0
    %342 = vdwg.mxu0
    %343 = vmatprep.subr.mxu0 0.0
    %344 = vmatpush1.msra.mxu0 %v122
    %345 = vmatprep.subr.mxu0 0.0
    %346 = vmatpush1.msra.mxu0 %v123
    %347 = vmatprep.subr.mxu0 0.0
    %348 = vmatpush1.msra.mxu0 %v124
    %349 = vmatprep.subr.mxu0 0.0
    %350 = vmatpush1.msra.mxu0 %v125
    %351 = vmatprep.subr.mxu0 0.0
    %352 = vmatpush1.msra.mxu0 %v126
    %353 = vmatprep.subr.mxu0 0.0
    %354 = vmatpush1.msra.mxu0 %v127
    %355 = vmatprep.subr.mxu0 0.0
    %356 = vmatpush1.msra.mxu0 %v128
    %357 = vmatprep.subr.mxu0 0.0
    %358 = vmatpush1.msra.mxu0 %v129
    %359 = vmatprep.subr.mxu0 0.0
    %360 = vmatpush1.msra.mxu0 %v130
    %361 = vmatprep.subr.mxu0 0.0
    %362 = vmatpush1.msra.mxu0 %v131
    %363 = vmatprep.subr.mxu0 0.0
    %364 = vmatpush1.msra.mxu0 %v132
    %365 = vmatprep.subr.mxu0 0.0
    %366 = vmatpush1.msra.mxu0 %v133
    %367 = vmatprep.subr.mxu0 0.0
    %368 = vmatpush1.msra.mxu0 %v134
    %369 = vmatprep.subr.mxu0 0.0
    %370 = vmatpush1.msra.mxu0 %v135
    %371 = vmatprep.subr.mxu0 0.0
    %372 = vmatpush1.msra.mxu0 %v136
    %373 = vmatprep.subr.mxu0 0.0
    %374 = vmatpush1.msra.mxu0 %v137
    %375 = vmatprep.subr.mxu0 0.0
    %376 = vmatpush1.msra.mxu0 %v138
    %377 = vmatprep.subr.mxu0 0.0
    %378 = vmatpush1.msra.mxu0 %v139
    %379 = vmatprep.subr.mxu0 0.0
    %380 = vmatpush1.msra.mxu0 %v140
    %381 = vmatprep.subr.mxu0 0.0
    %382 = vmatpush1.msra.mxu0 %v141
    %383 = vmatprep.subr.mxu0 0.0
    %384 = vmatpush1.msra.mxu0 %v142
    %385 = vmatprep.subr.mxu0 0.0
    %386 = vmatpush1.msra.mxu0 %v143
    %387 = vmatprep.subr.mxu0 0.0
    %388 = vmatpush1.msra.mxu0 %v144
    %389 = vmatprep.subr.mxu0 0.0
    %390 = vmatpush1.msra.mxu0 %v145
    %391 = vmatprep.subr.mxu0 0.0
    %392 = vmatpush1.msra.mxu0 %v146
    %393 = vmatprep.subr.mxu0 0.0
    %394 = vmatpush1.msra.mxu0 %v147
    %395 = vmatprep.subr.mxu0 0.0
    %396 = vmatpush1.msra.mxu0 %v148
    %397 = vmatprep.subr.mxu0 0.0
    %398 = vmatpush1.msra.mxu0 %v149
    %399 = vmatprep.subr.mxu0 0.0
    %400 = vmatpush1.msra.mxu0 %v150
    %401 = vmatprep.subr.mxu0 0.0
    %402 = vmatpush1.msra.mxu0 %v151
    %403 = vmatprep.subr.mxu0 0.0
    %404 = vmatpush1.msra.mxu0 %v152
    %405 = vmatprep.subr.mxu0 0.0
    %406 = vmatpush1.msra.mxu0 %v153
    %407 = vmatprep.mubr.f32.mxu0 %v47
    %408 = vmatmul.mubr.f32.gmra.mrb[0].mxu0 %v46
    %v409 = vpop.f32.mrb[0].mxu0
    %v410 = vadd.f32 %v335, %v409
    %v411 = vpop.f32.mrb[0].mxu0
    %412 = vmatprep.mubr.f32.mxu0 %v55
    %413 = vmatmul.mubr.f32.gmra.mrb[0].mxu0 %v54
    %v414 = vpop.f32.mrb[0].mxu0
    %v415 = vadd.f32 %v340, %v414
    %v416 = vpop.f32.mrb[0].mxu0
    %417 = vdwg.mxu0
    %418 = vmatprep.subr.mxu0 0.0
    %419 = vmatpush1.msra.mxu0 %v154
    %420 = vmatprep.subr.mxu0 0.0
    %421 = vmatpush1.msra.mxu0 %v155
    %422 = vmatprep.subr.mxu0 0.0
    %423 = vmatpush1.msra.mxu0 %v156
    %424 = vmatprep.subr.mxu0 0.0
    %425 = vmatpush1.msra.mxu0 %v157
    %426 = vmatprep.subr.mxu0 0.0
    %427 = vmatpush1.msra.mxu0 %v158
    %428 = vmatprep.subr.mxu0 0.0
    %429 = vmatpush1.msra.mxu0 %v159
    %430 = vmatprep.subr.mxu0 0.0
    %431 = vmatpush1.msra.mxu0 %v160
    %432 = vmatprep.subr.mxu0 0.0
    %433 = vmatpush1.msra.mxu0 %v161
    %434 = vmatprep.subr.mxu0 0.0
    %435 = vmatpush1.msra.mxu0 %v162
    %436 = vmatprep.subr.mxu0 0.0
    %437 = vmatpush1.msra.mxu0 %v163
    %438 = vmatprep.subr.mxu0 0.0
    %439 = vmatpush1.msra.mxu0 %v164
    %440 = vmatprep.subr.mxu0 0.0
    %441 = vmatpush1.msra.mxu0 %v165
    %442 = vmatprep.subr.mxu0 0.0
    %443 = vmatpush1.msra.mxu0 %v166
    %444 = vmatprep.subr.mxu0 0.0
    %445 = vmatpush1.msra.mxu0 %v167
    %446 = vmatprep.subr.mxu0 0.0
    %447 = vmatpush1.msra.mxu0 %v168
    %448 = vmatprep.subr.mxu0 0.0
    %449 = vmatpush1.msra.mxu0 %v169
    %450 = vmatprep.subr.mxu0 0.0
    %451 = vmatpush1.msra.mxu0 %v170
    %452 = vmatprep.subr.mxu0 0.0
    %453 = vmatpush1.msra.mxu0 %v171
    %454 = vmatprep.subr.mxu0 0.0
    %455 = vmatpush1.msra.mxu0 %v172
    %456 = vmatprep.subr.mxu0 0.0
    %457 = vmatpush1.msra.mxu0 %v173
    %458 = vmatprep.subr.mxu0 0.0
    %459 = vmatpush1.msra.mxu0 %v174
    %460 = vmatprep.subr.mxu0 0.0
    %461 = vmatpush1.msra.mxu0 %v175
    %462 = vmatprep.subr.mxu0 0.0
    %463 = vmatpush1.msra.mxu0 %v176
    %464 = vmatprep.subr.mxu0 0.0
    %465 = vmatpush1.msra.mxu0 %v177
    %466 = vmatprep.subr.mxu0 0.0
    %467 = vmatpush1.msra.mxu0 %v178
    %468 = vmatprep.subr.mxu0 0.0
    %469 = vmatpush1.msra.mxu0 %v179
    %470 = vmatprep.subr.mxu0 0.0
    %471 = vmatpush1.msra.mxu0 %v180
    %472 = vmatprep.subr.mxu0 0.0
    %473 = vmatpush1.msra.mxu0 %v181
    %474 = vmatprep.subr.mxu0 0.0
    %475 = vmatpush1.msra.mxu0 %v182
    %476 = vmatprep.subr.mxu0 0.0
    %477 = vmatpush1.msra.mxu0 %v183
    %478 = vmatprep.subr.mxu0 0.0
    %479 = vmatpush1.msra.mxu0 %v184
    %480 = vmatprep.subr.mxu0 0.0
    %481 = vmatpush1.msra.mxu0 %v185
    %482 = vmatprep.mubr.f32.mxu0 %v49
    %483 = vmatmul.mubr.f32.gmra.mrb[0].mxu0 %v48
    %v484 = vpop.f32.mrb[0].mxu0
    %v485 = vadd.f32 %v410, %v484
    %v486 = vpop.f32.mrb[0].mxu0
    %487 = vmatprep.mubr.f32.mxu0 %v57
    %488 = vmatmul.mubr.f32.gmra.mrb[0].mxu0 %v56
    %v489 = vpop.f32.mrb[0].mxu0
    %v490 = vadd.f32 %v415, %v489
    %v491 = vpop.f32.mrb[0].mxu0
    %492 = vdwg.mxu0
    %v493 = vld [vmem:[%s1] sm:$0xff]
    %v494 = vld [vmem:[%s1 + $0x8] sm:$0xff]
    %vm495 = vcmask 130048
    %v497 = vsel %vm495, %v493, 0
    %v500 = vsel %vm495, %v494, 0
    %502 = vmatprep.subr.mxu0 0.0
    %503 = vmatpush1.msra.mxu0 %v485
    %504 = vmatprep.subr.mxu0 0.0
    %505 = vmatpush1.msra.mxu0 %v490
    %506 = vmatprep.subr.mxu0 0.0
    %507 = vmatpush1.msra.mxu0 0.0
    %508 = vmatprep.subr.mxu0 0.0
    %509 = vmatpush1.msra.mxu0 0.0
    %510 = vmatprep.subr.mxu0 0.0
    %511 = vmatpush1.msra.mxu0 0.0
    %512 = vmatprep.subr.mxu0 0.0
    %513 = vmatpush1.msra.mxu0 0.0
    %514 = vmatprep.subr.mxu0 0.0
    %515 = vmatpush1.msra.mxu0 0.0
    %516 = vmatprep.subr.mxu0 0.0
    %517 = vmatpush1.msra.mxu0 0.0
    %518 = vmatprep.subr.mxu0 0.0
    %519 = vmatpush1.msra.mxu0 0.0
    %520 = vmatprep.subr.mxu0 0.0
    %521 = vmatpush1.msra.mxu0 0.0
    %522 = vmatprep.subr.mxu0 0.0
    %523 = vmatpush1.msra.mxu0 0.0
    %524 = vmatprep.subr.mxu0 0.0
    %525 = vmatpush1.msra.mxu0 0.0
    %526 = vmatprep.subr.mxu0 0.0
    %527 = vmatpush1.msra.mxu0 0.0
    %528 = vmatprep.subr.mxu0 0.0
    %529 = vmatpush1.msra.mxu0 0.0
    %530 = vmatprep.subr.mxu0 0.0
    %531 = vmatpush1.msra.mxu0 0.0
    %532 = vmatprep.subr.mxu0 0.0
    %533 = vmatpush1.msra.mxu0 0.0
    %534 = vmatprep.subr.mxu0 0.0
    %535 = vmatpush1.msra.mxu0 0.0
    %536 = vmatprep.subr.mxu0 0.0
    %537 = vmatpush1.msra.mxu0 0.0
    %538 = vmatprep.subr.mxu0 0.0
    %539 = vmatpush1.msra.mxu0 0.0
    %540 = vmatprep.subr.mxu0 0.0
    %541 = vmatpush1.msra.mxu0 0.0
    %542 = vmatprep.subr.mxu0 0.0
    %543 = vmatpush1.msra.mxu0 0.0
    %544 = vmatprep.subr.mxu0 0.0
    %545 = vmatpush1.msra.mxu0 0.0
    %546 = vmatprep.subr.mxu0 0.0
    %547 = vmatpush1.msra.mxu0 0.0
    %548 = vmatprep.subr.mxu0 0.0
    %549 = vmatpush1.msra.mxu0 0.0
    %550 = vmatprep.subr.mxu0 0.0
    %551 = vmatpush1.msra.mxu0 0.0
    %552 = vmatprep.subr.mxu0 0.0
    %553 = vmatpush1.msra.mxu0 0.0
    %554 = vmatprep.subr.mxu0 0.0
    %555 = vmatpush1.msra.mxu0 0.0
    %556 = vmatprep.subr.mxu0 0.0
    %557 = vmatpush1.msra.mxu0 0.0
    %558 = vmatprep.subr.mxu0 0.0
    %559 = vmatpush1.msra.mxu0 0.0
    %560 = vmatprep.subr.mxu0 0.0
    %561 = vmatpush1.msra.mxu0 0.0
    %562 = vmatprep.subr.mxu0 0.0
    %563 = vmatpush1.msra.mxu0 0.0
    %564 = vmatprep.subr.mxu0 0.0
    %565 = vmatpush1.msra.mxu0 0.0
    %566 = vmatprep.mubr.f32.mxu0 0.0
    %567 = vmatmul.mubr.f32.gmra.mrb[0].mxu0 %v497
    %v568 = vpop.f32.mrb[0].mxu0
    %v569 = vadd.f32 0.0, %v568
    %v570 = vpop.f32.mrb[0].mxu0
    %571 = vmatprep.mubr.f32.mxu0 0.0
    %572 = vmatmul.mubr.f32.gmra.mrb[0].mxu0 %v500
    %v573 = vpop.f32.mrb[0].mxu0
    %v574 = vadd.f32 0.0, %v573
    %v575 = vpop.f32.mrb[0].mxu0
    %576 = vdwg.mxu0
    %v577 = vmax.f32 %v569, 0.0
    %v578 = vmax.f32 %v574, 0.0
    %v579 = vld [vmem:[%s4] sm:$0xff]
    %v580 = vld [vmem:[%s4 + $0x8] sm:$0xff]
    %v581 = vld [vmem:[%s4 + $0x10] sm:$0xff]
    %v582 = vld [vmem:[%s4 + $0x18] sm:$0xff]
    %s583 = scalar_lea.vmem %s4, 32
    %v584 = vld [vmem:[%s583] sm:$0xff]
    %v585 = vld [vmem:[%s583 + $0x8] sm:$0xff]
    %v586 = vld [vmem:[%s583 + $0x10] sm:$0xff]
    %v587 = vld [vmem:[%s583 + $0x18] sm:$0xff]
    %v588 = vld [vmem:[%s5] sm:$0xff]
    %v589 = vld [vmem:[%s5 + $0x8] sm:$0xff]
    %v590 = vld [vmem:[%s5 + $0x10] sm:$0xff]
    %v591 = vld [vmem:[%s5 + $0x18] sm:$0xff]
    %s592 = scalar_lea.vmem %s5, 32
    %v593 = vld [vmem:[%s592] sm:$0xff]
    %v594 = vld [vmem:[%s592 + $0x8] sm:$0xff]
    %v595 = vld [vmem:[%s592 + $0x10] sm:$0xff]
    %v596 = vld [vmem:[%s592 + $0x18] sm:$0xff]
    %v597 = vld [vmem:[%s6] sm:$0x1]
    %v599 = vlaneseq
    %v600 = vshrl.u32 %v599, 7
    %v601 = vsub.s32 0, %v600
    %v602 = vrot.slane %v597, %v601
    %s604 = scalar_lea.vmem %s6, 1
    %v605 = vld [vmem:[%s604] sm:$0x1]
    %v607 = vlaneseq
    %v608 = vshrl.u32 %v607, 7
    %v609 = vsub.s32 0, %v608
    %v610 = vrot.slane %v605, %v609
    %v612 = vld [vmem:[%s7] sm:$0x1]
    %v614 = vlaneseq
    %v615 = vshrl.u32 %v614, 7
    %v616 = vsub.s32 0, %v615
    %v617 = vrot.slane %v612, %v616
    %s619 = scalar_lea.vmem %s7, 1
    %v620 = vld [vmem:[%s619] sm:$0x1]
    %v622 = vlaneseq
    %v623 = vshrl.u32 %v622, 7
    %v624 = vsub.s32 0, %v623
    %v625 = vrot.slane %v620, %v624
    %v627 = vld [vmem:[%s8] sm:$0xff]
    %v628 = vld [vmem:[%s8 + $0x8] sm:$0xff]
    %v629 = vld [vmem:[%s8 + $0x10] sm:$0xff]
    %v630 = vld [vmem:[%s8 + $0x18] sm:$0xff]
    %v631 = vld [vmem:[%s10] sm:$0xff]
    %v632 = vld [vmem:[%s10 + $0x8] sm:$0xff]
    %v633 = vld [vmem:[%s10 + $0x10] sm:$0xff]
    %v634 = vld [vmem:[%s10 + $0x18] sm:$0xff]
    %v635 = vld [vmem:[%s9] sm:$0x1]
    %v637 = vlaneseq
    %v638 = vshrl.u32 %v637, 7
    %v639 = vsub.s32 0, %v638
    %v640 = vrot.slane %v635, %v639
    %v642 = vld [vmem:[%s11] sm:$0x1]
    %v644 = vlaneseq
    %v645 = vshrl.u32 %v644, 7
    %v646 = vsub.s32 0, %v645
    %v647 = vrot.slane %v642, %v646
    %vm649 = vcmask 261120
    %v651 = vsel %vm649, %v577, 0
    %v654 = vsel %vm649, %v578, 0
    %656 = vmatprep.subr.mxu0 0.0
    %657 = vmatpush1.msra.mxu0 %v579
    %658 = vmatprep.subr.mxu0 0.0
    %659 = vmatpush1.msra.mxu0 %v580
    %660 = vmatprep.subr.mxu0 0.0
    %661 = vmatpush1.msra.mxu0 %v581
    %662 = vmatprep.subr.mxu0 0.0
    %663 = vmatpush1.msra.mxu0 %v582
    %664 = vmatprep.subr.mxu0 0.0
    %665 = vmatpush1.msra.mxu0 0.0
    %666 = vmatprep.subr.mxu0 0.0
    %667 = vmatpush1.msra.mxu0 0.0
    %668 = vmatprep.subr.mxu0 0.0
    %669 = vmatpush1.msra.mxu0 0.0
    %670 = vmatprep.subr.mxu0 0.0
    %671 = vmatpush1.msra.mxu0 0.0
    %672 = vmatprep.subr.mxu0 0.0
    %673 = vmatpush1.msra.mxu0 0.0
    %674 = vmatprep.subr.mxu0 0.0
    %675 = vmatpush1.msra.mxu0 0.0
    %676 = vmatprep.subr.mxu0 0.0
    %677 = vmatpush1.msra.mxu0 0.0
    %678 = vmatprep.subr.mxu0 0.0
    %679 = vmatpush1.msra.mxu0 0.0
    %680 = vmatprep.subr.mxu0 0.0
    %681 = vmatpush1.msra.mxu0 0.0
    %682 = vmatprep.subr.mxu0 0.0
    %683 = vmatpush1.msra.mxu0 0.0
    %684 = vmatprep.subr.mxu0 0.0
    %685 = vmatpush1.msra.mxu0 0.0
    %686 = vmatprep.subr.mxu0 0.0
    %687 = vmatpush1.msra.mxu0 0.0
    %688 = vmatprep.subr.mxu0 0.0
    %689 = vmatpush1.msra.mxu0 0.0
    %690 = vmatprep.subr.mxu0 0.0
    %691 = vmatpush1.msra.mxu0 0.0
    %692 = vmatprep.subr.mxu0 0.0
    %693 = vmatpush1.msra.mxu0 0.0
    %694 = vmatprep.subr.mxu0 0.0
    %695 = vmatpush1.msra.mxu0 0.0
    %696 = vmatprep.subr.mxu0 0.0
    %697 = vmatpush1.msra.mxu0 0.0
    %698 = vmatprep.subr.mxu0 0.0
    %699 = vmatpush1.msra.mxu0 0.0
    %700 = vmatprep.subr.mxu0 0.0
    %701 = vmatpush1.msra.mxu0 0.0
    %702 = vmatprep.subr.mxu0 0.0
    %703 = vmatpush1.msra.mxu0 0.0
    %704 = vmatprep.subr.mxu0 0.0
    %705 = vmatpush1.msra.mxu0 0.0
    %706 = vmatprep.subr.mxu0 0.0
    %707 = vmatpush1.msra.mxu0 0.0
    %708 = vmatprep.subr.mxu0 0.0
    %709 = vmatpush1.msra.mxu0 0.0
    %710 = vmatprep.subr.mxu0 0.0
    %711 = vmatpush1.msra.mxu0 0.0
    %712 = vmatprep.subr.mxu0 0.0
    %713 = vmatpush1.msra.mxu0 0.0
    %714 = vmatprep.subr.mxu0 0.0
    %715 = vmatpush1.msra.mxu0 0.0
    %716 = vmatprep.subr.mxu0 0.0
    %717 = vmatpush1.msra.mxu0 0.0
    %718 = vmatprep.subr.mxu0 0.0
    %719 = vmatpush1.msra.mxu0 0.0
    %720 = vmatprep.mubr.f32.mxu0 0.0
    %721 = vmatmul.mubr.f32.gmra.mrb[0].mxu0 %v651
    %v722 = vpop.f32.mrb[0].mxu0
    %v723 = vadd.f32 %v602, %v722
    %v724 = vpop.f32.mrb[0].mxu0
    %725 = vmatprep.mubr.f32.mxu0 0.0
    %726 = vmatmul.mubr.f32.gmra.mrb[0].mxu0 %v654
    %v727 = vpop.f32.mrb[0].mxu0
    %v728 = vadd.f32 %v602, %v727
    %v729 = vpop.f32.mrb[0].mxu0
    %730 = vdwg.mxu0
    %v732 = vsel %vm649, 0.0, 0
    %734 = vmatprep.subr.mxu0 0.0
    %735 = vmatpush1.msra.mxu0 %v588
    %736 = vmatprep.subr.mxu0 0.0
    %737 = vmatpush1.msra.mxu0 %v589
    %738 = vmatprep.subr.mxu0 0.0
    %739 = vmatpush1.msra.mxu0 %v590
    %740 = vmatprep.subr.mxu0 0.0
    %741 = vmatpush1.msra.mxu0 %v591
    %742 = vmatprep.subr.mxu0 0.0
    %743 = vmatpush1.msra.mxu0 0.0
    %744 = vmatprep.subr.mxu0 0.0
    %745 = vmatpush1.msra.mxu0 0.0
    %746 = vmatprep.subr.mxu0 0.0
    %747 = vmatpush1.msra.mxu0 0.0
    %748 = vmatprep.subr.mxu0 0.0
    %749 = vmatpush1.msra.mxu0 0.0
    %750 = vmatprep.subr.mxu0 0.0
    %751 = vmatpush1.msra.mxu0 0.0
    %752 = vmatprep.subr.mxu0 0.0
    %753 = vmatpush1.msra.mxu0 0.0
    %754 = vmatprep.subr.mxu0 0.0
    %755 = vmatpush1.msra.mxu0 0.0
    %756 = vmatprep.subr.mxu0 0.0
    %757 = vmatpush1.msra.mxu0 0.0
    %758 = vmatprep.subr.mxu0 0.0
    %759 = vmatpush1.msra.mxu0 0.0
    %760 = vmatprep.subr.mxu0 0.0
    %761 = vmatpush1.msra.mxu0 0.0
    %762 = vmatprep.subr.mxu0 0.0
    %763 = vmatpush1.msra.mxu0 0.0
    %764 = vmatprep.subr.mxu0 0.0
    %765 = vmatpush1.msra.mxu0 0.0
    %766 = vmatprep.subr.mxu0 0.0
    %767 = vmatpush1.msra.mxu0 0.0
    %768 = vmatprep.subr.mxu0 0.0
    %769 = vmatpush1.msra.mxu0 0.0
    %770 = vmatprep.subr.mxu0 0.0
    %771 = vmatpush1.msra.mxu0 0.0
    %772 = vmatprep.subr.mxu0 0.0
    %773 = vmatpush1.msra.mxu0 0.0
    %774 = vmatprep.subr.mxu0 0.0
    %775 = vmatpush1.msra.mxu0 0.0
    %776 = vmatprep.subr.mxu0 0.0
    %777 = vmatpush1.msra.mxu0 0.0
    %778 = vmatprep.subr.mxu0 0.0
    %779 = vmatpush1.msra.mxu0 0.0
    %780 = vmatprep.subr.mxu0 0.0
    %781 = vmatpush1.msra.mxu0 0.0
    %782 = vmatprep.subr.mxu0 0.0
    %783 = vmatpush1.msra.mxu0 0.0
    %784 = vmatprep.subr.mxu0 0.0
    %785 = vmatpush1.msra.mxu0 0.0
    %786 = vmatprep.subr.mxu0 0.0
    %787 = vmatpush1.msra.mxu0 0.0
    %788 = vmatprep.subr.mxu0 0.0
    %789 = vmatpush1.msra.mxu0 0.0
    %790 = vmatprep.subr.mxu0 0.0
    %791 = vmatpush1.msra.mxu0 0.0
    %792 = vmatprep.subr.mxu0 0.0
    %793 = vmatpush1.msra.mxu0 0.0
    %794 = vmatprep.subr.mxu0 0.0
    %795 = vmatpush1.msra.mxu0 0.0
    %796 = vmatprep.subr.mxu0 0.0
    %797 = vmatpush1.msra.mxu0 0.0
    %798 = vmatprep.mubr.f32.mxu0 0.0
    %799 = vmatmul.mubr.f32.gmra.mrb[0].mxu0 %v732
    %v800 = vpop.f32.mrb[0].mxu0
    %v801 = vadd.f32 %v617, %v800
    %v802 = vpop.f32.mrb[0].mxu0
    %803 = vdwg.mxu0
    %v804 = vadd.f32 %v723, %v801
    %v805 = vxor.u32 %v804, 2147483648
    %v806 = vmul.f32 %v805, 1.442695
    %v807 = vpow.pop %v806
    %v808 = vadd.f32 %v807, 1.0
    %v809 = vrcp.pop %v808
    %v810 = vmul.f32 1.0, %v809
    %812 = vrot.lane.b32.xlu0 %v801, 64
    %v813 = vpop.permute.xlu0 %812
    %v815 = vmul.f32 %v810, %v813
    %817 = vrot.lane.b32.xlu0 %v815, 64
    %v818 = vpop.permute.xlu0 %817
    %v820 = vadd.f32 %v723, %v818
    %v821 = vtanh.pop %v820
    %v822 = vsub.f32 1.0, %v810
    %824 = vrot.lane.b32.xlu0 %v821, 96
    %v825 = vpop.permute.xlu0 %824
    %v827 = vmul.f32 %v822, %v825
    %v828 = vmul.f32 %v810, 0.0
    %v829 = vadd.f32 %v827, %v828
    %831 = vrot.lane.b32.xlu0 %v829, 96
    %v832 = vpop.permute.xlu0 %831
    %v833 = vsel %vm649, %v832, 0
    %835 = vmatprep.subr.mxu0 0.0
    %836 = vmatpush1.msra.mxu0 %v584
    %837 = vmatprep.subr.mxu0 0.0
    %838 = vmatpush1.msra.mxu0 %v585
    %839 = vmatprep.subr.mxu0 0.0
    %840 = vmatpush1.msra.mxu0 %v586
    %841 = vmatprep.subr.mxu0 0.0
    %842 = vmatpush1.msra.mxu0 %v587
    %843 = vmatprep.subr.mxu0 0.0
    %844 = vmatpush1.msra.mxu0 0.0
    %845 = vmatprep.subr.mxu0 0.0
    %846 = vmatpush1.msra.mxu0 0.0
    %847 = vmatprep.subr.mxu0 0.0
    %848 = vmatpush1.msra.mxu0 0.0
    %849 = vmatprep.subr.mxu0 0.0
    %850 = vmatpush1.msra.mxu0 0.0
    %851 = vmatprep.subr.mxu0 0.0
    %852 = vmatpush1.msra.mxu0 0.0
    %853 = vmatprep.subr.mxu0 0.0
    %854 = vmatpush1.msra.mxu0 0.0
    %855 = vmatprep.subr.mxu0 0.0
    %856 = vmatpush1.msra.mxu0 0.0
    %857 = vmatprep.subr.mxu0 0.0
    %858 = vmatpush1.msra.mxu0 0.0
    %859 = vmatprep.subr.mxu0 0.0
    %860 = vmatpush1.msra.mxu0 0.0
    %861 = vmatprep.subr.mxu0 0.0
    %862 = vmatpush1.msra.mxu0 0.0
    %863 = vmatprep.subr.mxu0 0.0
    %864 = vmatpush1.msra.mxu0 0.0
    %865 = vmatprep.subr.mxu0 0.0
    %866 = vmatpush1.msra.mxu0 0.0
    %867 = vmatprep.subr.mxu0 0.0
    %868 = vmatpush1.msra.mxu0 0.0
    %869 = vmatprep.subr.mxu0 0.0
    %870 = vmatpush1.msra.mxu0 0.0
    %871 = vmatprep.subr.mxu0 0.0
    %872 = vmatpush1.msra.mxu0 0.0
    %873 = vmatprep.subr.mxu0 0.0
    %874 = vmatpush1.msra.mxu0 0.0
    %875 = vmatprep.subr.mxu0 0.0
    %876 = vmatpush1.msra.mxu0 0.0
    %877 = vmatprep.subr.mxu0 0.0
    %878 = vmatpush1.msra.mxu0 0.0
    %879 = vmatprep.subr.mxu0 0.0
    %880 = vmatpush1.msra.mxu0 0.0
    %881 = vmatprep.subr.mxu0 0.0
    %882 = vmatpush1.msra.mxu0 0.0
    %883 = vmatprep.subr.mxu0 0.0
    %884 = vmatpush1.msra.mxu0 0.0
    %885 = vmatprep.subr.mxu0 0.0
    %886 = vmatpush1.msra.mxu0 0.0
    %887 = vmatprep.subr.mxu0 0.0
    %888 = vmatpush1.msra.mxu0 0.0
    %889 = vmatprep.subr.mxu0 0.0
    %890 = vmatpush1.msra.mxu0 0.0
    %891 = vmatprep.subr.mxu0 0.0
    %892 = vmatpush1.msra.mxu0 0.0
    %893 = vmatprep.subr.mxu0 0.0
    %894 = vmatpush1.msra.mxu0 0.0
    %895 = vmatprep.subr.mxu0 0.0
    %896 = vmatpush1.msra.mxu0 0.0
    %897 = vmatprep.subr.mxu0 0.0
    %898 = vmatpush1.msra.mxu0 0.0
    %899 = vmatprep.mubr.f32.mxu0 0.0
    %900 = vmatmul.mubr.f32.gmra.mrb[0].mxu0 %v833
    %v901 = vpop.f32.mrb[0].mxu0
    %v902 = vadd.f32 %v610, %v901
    %v903 = vpop.f32.mrb[0].mxu0
    %904 = vdwg.mxu0
    %905 = vmatprep.subr.mxu0 0.0
    %906 = vmatpush1.msra.mxu0 %v593
    %907 = vmatprep.subr.mxu0 0.0
    %908 = vmatpush1.msra.mxu0 %v594
    %909 = vmatprep.subr.mxu0 0.0
    %910 = vmatpush1.msra.mxu0 %v595
    %911 = vmatprep.subr.mxu0 0.0
    %912 = vmatpush1.msra.mxu0 %v596
    %913 = vmatprep.subr.mxu0 0.0
    %914 = vmatpush1.msra.mxu0 0.0
    %915 = vmatprep.subr.mxu0 0.0
    %916 = vmatpush1.msra.mxu0 0.0
    %917 = vmatprep.subr.mxu0 0.0
    %918 = vmatpush1.msra.mxu0 0.0
    %919 = vmatprep.subr.mxu0 0.0
    %920 = vmatpush1.msra.mxu0 0.0
    %921 = vmatprep.subr.mxu0 0.0
    %922 = vmatpush1.msra.mxu0 0.0
    %923 = vmatprep.subr.mxu0 0.0
    %924 = vmatpush1.msra.mxu0 0.0
    %925 = vmatprep.subr.mxu0 0.0
    %926 = vmatpush1.msra.mxu0 0.0
    %927 = vmatprep.subr.mxu0 0.0
    %928 = vmatpush1.msra.mxu0 0.0
    %929 = vmatprep.subr.mxu0 0.0
    %930 = vmatpush1.msra.mxu0 0.0
    %931 = vmatprep.subr.mxu0 0.0
    %932 = vmatpush1.msra.mxu0 0.0
    %933 = vmatprep.subr.mxu0 0.0
    %934 = vmatpush1.msra.mxu0 0.0
    %935 = vmatprep.subr.mxu0 0.0
    %936 = vmatpush1.msra.mxu0 0.0
    %937 = vmatprep.subr.mxu0 0.0
    %938 = vmatpush1.msra.mxu0 0.0
    %939 = vmatprep.subr.mxu0 0.0
    %940 = vmatpush1.msra.mxu0 0.0
    %941 = vmatprep.subr.mxu0 0.0
    %942 = vmatpush1.msra.mxu0 0.0
    %943 = vmatprep.subr.mxu0 0.0
    %944 = vmatpush1.msra.mxu0 0.0
    %945 = vmatprep.subr.mxu0 0.0
    %946 = vmatpush1.msra.mxu0 0.0
    %947 = vmatprep.subr.mxu0 0.0
    %948 = vmatpush1.msra.mxu0 0.0
    %949 = vmatprep.subr.mxu0 0.0
    %950 = vmatpush1.msra.mxu0 0.0
    %951 = vmatprep.subr.mxu0 0.0
    %952 = vmatpush1.msra.mxu0 0.0
    %953 = vmatprep.subr.mxu0 0.0
    %954 = vmatpush1.msra.mxu0 0.0
    %955 = vmatprep.subr.mxu0 0.0
    %956 = vmatpush1.msra.mxu0 0.0
    %957 = vmatprep.subr.mxu0 0.0
    %958 = vmatpush1.msra.mxu0 0.0
    %959 = vmatprep.subr.mxu0 0.0
    %960 = vmatpush1.msra.mxu0 0.0
    %961 = vmatprep.subr.mxu0 0.0
    %962 = vmatpush1.msra.mxu0 0.0
    %963 = vmatprep.subr.mxu0 0.0
    %964 = vmatpush1.msra.mxu0 0.0
    %965 = vmatprep.subr.mxu0 0.0
    %966 = vmatpush1.msra.mxu0 0.0
    %967 = vmatprep.subr.mxu0 0.0
    %968 = vmatpush1.msra.mxu0 0.0
    %969 = vmatprep.mubr.f32.mxu0 0.0
    %970 = vmatmul.mubr.f32.gmra.mrb[0].mxu0 %v732
    %v971 = vpop.f32.mrb[0].mxu0
    %v972 = vadd.f32 %v625, %v971
    %v973 = vpop.f32.mrb[0].mxu0
    %974 = vdwg.mxu0
    %v975 = vadd.f32 %v902, %v972
    %v976 = vxor.u32 %v975, 2147483648
    %v977 = vmul.f32 %v976, 1.442695
    %v978 = vpow.pop %v977
    %v979 = vadd.f32 %v978, 1.0
    %v980 = vrcp.pop %v979
    %v981 = vmul.f32 1.0, %v980
    %983 = vrot.lane.b32.xlu0 %v972, 64
    %v984 = vpop.permute.xlu0 %983
    %v986 = vmul.f32 %v981, %v984
    %988 = vrot.lane.b32.xlu0 %v986, 64
    %v989 = vpop.permute.xlu0 %988
    %v991 = vadd.f32 %v902, %v989
    %v992 = vtanh.pop %v991
    %v993 = vsub.f32 1.0, %v981
    %995 = vrot.lane.b32.xlu0 %v992, 96
    %v996 = vpop.permute.xlu0 %995
    %v998 = vmul.f32 %v993, %v996
    %v999 = vmul.f32 %v981, 0.0
    %v1000 = vadd.f32 %v998, %v999
    %1001 = vmatprep.subr.mxu0 0.0
    %1002 = vmatpush1.msra.mxu0 %v588
    %1003 = vmatprep.subr.mxu0 0.0
    %1004 = vmatpush1.msra.mxu0 %v589
    %1005 = vmatprep.subr.mxu0 0.0
    %1006 = vmatpush1.msra.mxu0 %v590
    %1007 = vmatprep.subr.mxu0 0.0
    %1008 = vmatpush1.msra.mxu0 %v591
    %1009 = vmatprep.subr.mxu0 0.0
    %1010 = vmatpush1.msra.mxu0 0.0
    %1011 = vmatprep.subr.mxu0 0.0
    %1012 = vmatpush1.msra.mxu0 0.0
    %1013 = vmatprep.subr.mxu0 0.0
    %1014 = vmatpush1.msra.mxu0 0.0
    %1015 = vmatprep.subr.mxu0 0.0
    %1016 = vmatpush1.msra.mxu0 0.0
    %1017 = vmatprep.subr.mxu0 0.0
    %1018 = vmatpush1.msra.mxu0 0.0
    %1019 = vmatprep.subr.mxu0 0.0
    %1020 = vmatpush1.msra.mxu0 0.0
    %1021 = vmatprep.subr.mxu0 0.0
    %1022 = vmatpush1.msra.mxu0 0.0
    %1023 = vmatprep.subr.mxu0 0.0
    %1024 = vmatpush1.msra.mxu0 0.0
    %1025 = vmatprep.subr.mxu0 0.0
    %1026 = vmatpush1.msra.mxu0 0.0
    %1027 = vmatprep.subr.mxu0 0.0
    %1028 = vmatpush1.msra.mxu0 0.0
    %1029 = vmatprep.subr.mxu0 0.0
    %1030 = vmatpush1.msra.mxu0 0.0
    %1031 = vmatprep.subr.mxu0 0.0
    %1032 = vmatpush1.msra.mxu0 0.0
    %1033 = vmatprep.subr.mxu0 0.0
    %1034 = vmatpush1.msra.mxu0 0.0
    %1035 = vmatprep.subr.mxu0 0.0
    %1036 = vmatpush1.msra.mxu0 0.0
    %1037 = vmatprep.subr.mxu0 0.0
    %1038 = vmatpush1.msra.mxu0 0.0
    %1039 = vmatprep.subr.mxu0 0.0
    %1040 = vmatpush1.msra.mxu0 0.0
    %1041 = vmatprep.subr.mxu0 0.0
    %1042 = vmatpush1.msra.mxu0 0.0
    %1043 = vmatprep.subr.mxu0 0.0
    %1044 = vmatpush1.msra.mxu0 0.0
    %1045 = vmatprep.subr.mxu0 0.0
    %1046 = vmatpush1.msra.mxu0 0.0
    %1047 = vmatprep.subr.mxu0 0.0
    %1048 = vmatpush1.msra.mxu0 0.0
    %1049 = vmatprep.subr.mxu0 0.0
    %1050 = vmatpush1.msra.mxu0 0.0
    %1051 = vmatprep.subr.mxu0 0.0
    %1052 = vmatpush1.msra.mxu0 0.0
    %1053 = vmatprep.subr.mxu0 0.0
    %1054 = vmatpush1.msra.mxu0 0.0
    %1055 = vmatprep.subr.mxu0 0.0
    %1056 = vmatpush1.msra.mxu0 0.0
    %1057 = vmatprep.subr.mxu0 0.0
    %1058 = vmatpush1.msra.mxu0 0.0
    %1059 = vmatprep.subr.mxu0 0.0
    %1060 = vmatpush1.msra.mxu0 0.0
    %1061 = vmatprep.subr.mxu0 0.0
    %1062 = vmatpush1.msra.mxu0 0.0
    %1063 = vmatprep.subr.mxu0 0.0
    %1064 = vmatpush1.msra.mxu0 0.0
    %1065 = vmatprep.mubr.f32.mxu0 0.0
    %1066 = vmatmul.mubr.f32.gmra.mrb[0].mxu0 %v833
    %v1067 = vpop.f32.mrb[0].mxu0
    %v1068 = vadd.f32 %v617, %v1067
    %v1069 = vpop.f32.mrb[0].mxu0
    %1070 = vdwg.mxu0
    %v1072 = vrot.slane %v1068, 6
    %v1074 = vadd.f32 %v723, %v1072
    %v1075 = vxor.u32 %v1074, 2147483648
    %v1076 = vmul.f32 %v1075, 1.442695
    %v1077 = vpow.pop %v1076
    %v1078 = vadd.f32 %v1077, 1.0
    %v1079 = vrcp.pop %v1078
    %v1080 = vmul.f32 1.0, %v1079
    %1081 = vrot.lane.b32.xlu0 %v1072, 64
    %v1082 = vpop.permute.xlu0 %1081
    %v1084 = vmul.f32 %v1080, %v1082
    %1086 = vrot.lane.b32.xlu0 %v1084, 64
    %v1087 = vpop.permute.xlu0 %1086
    %v1089 = vadd.f32 %v723, %v1087
    %v1090 = vtanh.pop %v1089
    %v1091 = vsub.f32 1.0, %v1080
    %1093 = vrot.lane.b32.xlu0 %v1090, 96
    %v1094 = vpop.permute.xlu0 %1093
    %v1096 = vmul.f32 %v1091, %v1094
    %v1097 = vrot.slane %v829, 6
    %v1099 = vmul.f32 %v1080, %v1097
    %v1100 = vadd.f32 %v1096, %v1099
    %v1102 = vrot.slane %v1100, 2
    %1103 = vrot.lane.b32.xlu0 %v1102, 96
    %v1104 = vpop.permute.xlu0 %1103
    %v1105 = vsel %vm649, %v1104, 0
    %1107 = vmatprep.subr.mxu0 0.0
    %1108 = vmatpush1.msra.mxu0 %v584
    %1109 = vmatprep.subr.mxu0 0.0
    %1110 = vmatpush1.msra.mxu0 %v585
    %1111 = vmatprep.subr.mxu0 0.0
    %1112 = vmatpush1.msra.mxu0 %v586
    %1113 = vmatprep.subr.mxu0 0.0
    %1114 = vmatpush1.msra.mxu0 %v587
    %1115 = vmatprep.subr.mxu0 0.0
    %1116 = vmatpush1.msra.mxu0 0.0
    %1117 = vmatprep.subr.mxu0 0.0
    %1118 = vmatpush1.msra.mxu0 0.0
    %1119 = vmatprep.subr.mxu0 0.0
    %1120 = vmatpush1.msra.mxu0 0.0
    %1121 = vmatprep.subr.mxu0 0.0
    %1122 = vmatpush1.msra.mxu0 0.0
    %1123 = vmatprep.subr.mxu0 0.0
    %1124 = vmatpush1.msra.mxu0 0.0
    %1125 = vmatprep.subr.mxu0 0.0
    %1126 = vmatpush1.msra.mxu0 0.0
    %1127 = vmatprep.subr.mxu0 0.0
    %1128 = vmatpush1.msra.mxu0 0.0
    %1129 = vmatprep.subr.mxu0 0.0
    %1130 = vmatpush1.msra.mxu0 0.0
    %1131 = vmatprep.subr.mxu0 0.0
    %1132 = vmatpush1.msra.mxu0 0.0
    %1133 = vmatprep.subr.mxu0 0.0
    %1134 = vmatpush1.msra.mxu0 0.0
    %1135 = vmatprep.subr.mxu0 0.0
    %1136 = vmatpush1.msra.mxu0 0.0
    %1137 = vmatprep.subr.mxu0 0.0
    %1138 = vmatpush1.msra.mxu0 0.0
    %1139 = vmatprep.subr.mxu0 0.0
    %1140 = vmatpush1.msra.mxu0 0.0
    %1141 = vmatprep.subr.mxu0 0.0
    %1142 = vmatpush1.msra.mxu0 0.0
    %1143 = vmatprep.subr.mxu0 0.0
    %1144 = vmatpush1.msra.mxu0 0.0
    %1145 = vmatprep.subr.mxu0 0.0
    %1146 = vmatpush1.msra.mxu0 0.0
    %1147 = vmatprep.subr.mxu0 0.0
    %1148 = vmatpush1.msra.mxu0 0.0
    %1149 = vmatprep.subr.mxu0 0.0
    %1150 = vmatpush1.msra.mxu0 0.0
    %1151 = vmatprep.subr.mxu0 0.0
    %1152 = vmatpush1.msra.mxu0 0.0
    %1153 = vmatprep.subr.mxu0 0.0
    %1154 = vmatpush1.msra.mxu0 0.0
    %1155 = vmatprep.subr.mxu0 0.0
    %1156 = vmatpush1.msra.mxu0 0.0
    %1157 = vmatprep.subr.mxu0 0.0
    %1158 = vmatpush1.msra.mxu0 0.0
    %1159 = vmatprep.subr.mxu0 0.0
    %1160 = vmatpush1.msra.mxu0 0.0
    %1161 = vmatprep.subr.mxu0 0.0
    %1162 = vmatpush1.msra.mxu0 0.0
    %1163 = vmatprep.subr.mxu0 0.0
    %1164 = vmatpush1.msra.mxu0 0.0
    %1165 = vmatprep.subr.mxu0 0.0
    %1166 = vmatpush1.msra.mxu0 0.0
    %1167 = vmatprep.subr.mxu0 0.0
    %1168 = vmatpush1.msra.mxu0 0.0
    %1169 = vmatprep.subr.mxu0 0.0
    %1170 = vmatpush1.msra.mxu0 0.0
    %1171 = vmatprep.mubr.f32.mxu0 0.0
    %1172 = vmatmul.mubr.f32.gmra.mrb[0].mxu0 %v1105
    %v1173 = vpop.f32.mrb[0].mxu0
    %v1174 = vadd.f32 %v610, %v1173
    %v1175 = vpop.f32.mrb[0].mxu0
    %1176 = vdwg.mxu0
    %1178 = vrot.lane.b32.xlu0 %v1000, 96
    %v1179 = vpop.permute.xlu0 %1178
    %v1180 = vsel %vm649, %v1179, 0
    %1182 = vmatprep.subr.mxu0 0.0
    %1183 = vmatpush1.msra.mxu0 %v593
    %1184 = vmatprep.subr.mxu0 0.0
    %1185 = vmatpush1.msra.mxu0 %v594
    %1186 = vmatprep.subr.mxu0 0.0
    %1187 = vmatpush1.msra.mxu0 %v595
    %1188 = vmatprep.subr.mxu0 0.0
    %1189 = vmatpush1.msra.mxu0 %v596
    %1190 = vmatprep.subr.mxu0 0.0
    %1191 = vmatpush1.msra.mxu0 0.0
    %1192 = vmatprep.subr.mxu0 0.0
    %1193 = vmatpush1.msra.mxu0 0.0
    %1194 = vmatprep.subr.mxu0 0.0
    %1195 = vmatpush1.msra.mxu0 0.0
    %1196 = vmatprep.subr.mxu0 0.0
    %1197 = vmatpush1.msra.mxu0 0.0
    %1198 = vmatprep.subr.mxu0 0.0
    %1199 = vmatpush1.msra.mxu0 0.0
    %1200 = vmatprep.subr.mxu0 0.0
    %1201 = vmatpush1.msra.mxu0 0.0
    %1202 = vmatprep.subr.mxu0 0.0
    %1203 = vmatpush1.msra.mxu0 0.0
    %1204 = vmatprep.subr.mxu0 0.0
    %1205 = vmatpush1.msra.mxu0 0.0
    %1206 = vmatprep.subr.mxu0 0.0
    %1207 = vmatpush1.msra.mxu0 0.0
    %1208 = vmatprep.subr.mxu0 0.0
    %1209 = vmatpush1.msra.mxu0 0.0
    %1210 = vmatprep.subr.mxu0 0.0
    %1211 = vmatpush1.msra.mxu0 0.0
    %1212 = vmatprep.subr.mxu0 0.0
    %1213 = vmatpush1.msra.mxu0 0.0
    %1214 = vmatprep.subr.mxu0 0.0
    %1215 = vmatpush1.msra.mxu0 0.0
    %1216 = vmatprep.subr.mxu0 0.0
    %1217 = vmatpush1.msra.mxu0 0.0
    %1218 = vmatprep.subr.mxu0 0.0
    %1219 = vmatpush1.msra.mxu0 0.0
    %1220 = vmatprep.subr.mxu0 0.0
    %1221 = vmatpush1.msra.mxu0 0.0
    %1222 = vmatprep.subr.mxu0 0.0
    %1223 = vmatpush1.msra.mxu0 0.0
    %1224 = vmatprep.subr.mxu0 0.0
    %1225 = vmatpush1.msra.mxu0 0.0
    %1226 = vmatprep.subr.mxu0 0.0
    %1227 = vmatpush1.msra.mxu0 0.0
    %1228 = vmatprep.subr.mxu0 0.0
    %1229 = vmatpush1.msra.mxu0 0.0
    %1230 = vmatprep.subr.mxu0 0.0
    %1231 = vmatpush1.msra.mxu0 0.0
    %1232 = vmatprep.subr.mxu0 0.0
    %1233 = vmatpush1.msra.mxu0 0.0
    %1234 = vmatprep.subr.mxu0 0.0
    %1235 = vmatpush1.msra.mxu0 0.0
    %1236 = vmatprep.subr.mxu0 0.0
    %1237 = vmatpush1.msra.mxu0 0.0
    %1238 = vmatprep.subr.mxu0 0.0
    %1239 = vmatpush1.msra.mxu0 0.0
    %1240 = vmatprep.subr.mxu0 0.0
    %1241 = vmatpush1.msra.mxu0 0.0
    %1242 = vmatprep.subr.mxu0 0.0
    %1243 = vmatpush1.msra.mxu0 0.0
    %1244 = vmatprep.subr.mxu0 0.0
    %1245 = vmatpush1.msra.mxu0 0.0
    %1246 = vmatprep.mubr.f32.mxu0 0.0
    %1247 = vmatmul.mubr.f32.gmra.mrb[0].mxu0 %v1180
    %v1248 = vpop.f32.mrb[0].mxu0
    %v1249 = vadd.f32 %v625, %v1248
    %v1250 = vpop.f32.mrb[0].mxu0
    %1251 = vdwg.mxu0
    %v1252 = vadd.f32 %v1174, %v1249
    %v1253 = vxor.u32 %v1252, 2147483648
    %v1254 = vmul.f32 %v1253, 1.442695
    %v1255 = vpow.pop %v1254
    %v1256 = vadd.f32 %v1255, 1.0
    %v1257 = vrcp.pop %v1256
    %v1258 = vmul.f32 1.0, %v1257
    %1260 = vrot.lane.b32.xlu0 %v1249, 64
    %v1261 = vpop.permute.xlu0 %1260
    %v1263 = vmul.f32 %v1258, %v1261
    %1265 = vrot.lane.b32.xlu0 %v1263, 64
    %v1266 = vpop.permute.xlu0 %1265
    %v1268 = vadd.f32 %v1174, %v1266
    %v1269 = vtanh.pop %v1268
    %v1270 = vsub.f32 1.0, %v1258
    %1272 = vrot.lane.b32.xlu0 %v1269, 96
    %v1273 = vpop.permute.xlu0 %1272
    %v1275 = vmul.f32 %v1270, %v1273
    %v1276 = vmul.f32 %v1258, %v1000
    %v1277 = vadd.f32 %v1275, %v1276
    %1278 = vmatprep.subr.mxu0 0.0
    %1279 = vmatpush1.msra.mxu0 %v588
    %1280 = vmatprep.subr.mxu0 0.0
    %1281 = vmatpush1.msra.mxu0 %v589
    %1282 = vmatprep.subr.mxu0 0.0
    %1283 = vmatpush1.msra.mxu0 %v590
    %1284 = vmatprep.subr.mxu0 0.0
    %1285 = vmatpush1.msra.mxu0 %v591
    %1286 = vmatprep.subr.mxu0 0.0
    %1287 = vmatpush1.msra.mxu0 0.0
    %1288 = vmatprep.subr.mxu0 0.0
    %1289 = vmatpush1.msra.mxu0 0.0
    %1290 = vmatprep.subr.mxu0 0.0
    %1291 = vmatpush1.msra.mxu0 0.0
    %1292 = vmatprep.subr.mxu0 0.0
    %1293 = vmatpush1.msra.mxu0 0.0
    %1294 = vmatprep.subr.mxu0 0.0
    %1295 = vmatpush1.msra.mxu0 0.0
    %1296 = vmatprep.subr.mxu0 0.0
    %1297 = vmatpush1.msra.mxu0 0.0
    %1298 = vmatprep.subr.mxu0 0.0
    %1299 = vmatpush1.msra.mxu0 0.0
    %1300 = vmatprep.subr.mxu0 0.0
    %1301 = vmatpush1.msra.mxu0 0.0
    %1302 = vmatprep.subr.mxu0 0.0
    %1303 = vmatpush1.msra.mxu0 0.0
    %1304 = vmatprep.subr.mxu0 0.0
    %1305 = vmatpush1.msra.mxu0 0.0
    %1306 = vmatprep.subr.mxu0 0.0
    %1307 = vmatpush1.msra.mxu0 0.0
    %1308 = vmatprep.subr.mxu0 0.0
    %1309 = vmatpush1.msra.mxu0 0.0
    %1310 = vmatprep.subr.mxu0 0.0
    %1311 = vmatpush1.msra.mxu0 0.0
    %1312 = vmatprep.subr.mxu0 0.0
    %1313 = vmatpush1.msra.mxu0 0.0
    %1314 = vmatprep.subr.mxu0 0.0
    %1315 = vmatpush1.msra.mxu0 0.0
    %1316 = vmatprep.subr.mxu0 0.0
    %1317 = vmatpush1.msra.mxu0 0.0
    %1318 = vmatprep.subr.mxu0 0.0
    %1319 = vmatpush1.msra.mxu0 0.0
    %1320 = vmatprep.subr.mxu0 0.0
    %1321 = vmatpush1.msra.mxu0 0.0
    %1322 = vmatprep.subr.mxu0 0.0
    %1323 = vmatpush1.msra.mxu0 0.0
    %1324 = vmatprep.subr.mxu0 0.0
    %1325 = vmatpush1.msra.mxu0 0.0
    %1326 = vmatprep.subr.mxu0 0.0
    %1327 = vmatpush1.msra.mxu0 0.0
    %1328 = vmatprep.subr.mxu0 0.0
    %1329 = vmatpush1.msra.mxu0 0.0
    %1330 = vmatprep.subr.mxu0 0.0
    %1331 = vmatpush1.msra.mxu0 0.0
    %1332 = vmatprep.subr.mxu0 0.0
    %1333 = vmatpush1.msra.mxu0 0.0
    %1334 = vmatprep.subr.mxu0 0.0
    %1335 = vmatpush1.msra.mxu0 0.0
    %1336 = vmatprep.subr.mxu0 0.0
    %1337 = vmatpush1.msra.mxu0 0.0
    %1338 = vmatprep.subr.mxu0 0.0
    %1339 = vmatpush1.msra.mxu0 0.0
    %1340 = vmatprep.subr.mxu0 0.0
    %1341 = vmatpush1.msra.mxu0 0.0
    %1342 = vmatprep.mubr.f32.mxu0 0.0
    %1343 = vmatmul.mubr.f32.gmra.mrb[0].mxu0 %v1105
    %v1344 = vpop.f32.mrb[0].mxu0
    %v1345 = vadd.f32 %v617, %v1344
    %v1346 = vpop.f32.mrb[0].mxu0
    %1347 = vdwg.mxu0
    %v1349 = vrot.slane %v1345, 4
    %v1351 = vadd.f32 %v723, %v1349
    %v1352 = vxor.u32 %v1351, 2147483648
    %v1353 = vmul.f32 %v1352, 1.442695
    %v1354 = vpow.pop %v1353
    %v1355 = vadd.f32 %v1354, 1.0
    %v1356 = vrcp.pop %v1355
    %v1357 = vmul.f32 1.0, %v1356
    %1358 = vrot.lane.b32.xlu0 %v1349, 64
    %v1359 = vpop.permute.xlu0 %1358
    %v1361 = vmul.f32 %v1357, %v1359
    %1363 = vrot.lane.b32.xlu0 %v1361, 64
    %v1364 = vpop.permute.xlu0 %1363
    %v1366 = vadd.f32 %v723, %v1364
    %v1367 = vtanh.pop %v1366
    %v1368 = vsub.f32 1.0, %v1357
    %1370 = vrot.lane.b32.xlu0 %v1367, 96
    %v1371 = vpop.permute.xlu0 %1370
    %v1373 = vmul.f32 %v1368, %v1371
    %v1374 = vrot.slane %v1100, 6
    %v1376 = vmul.f32 %v1357, %v1374
    %v1377 = vadd.f32 %v1373, %v1376
    %v1379 = vrot.slane %v1377, 4
    %1380 = vrot.lane.b32.xlu0 %v1379, 96
    %v1381 = vpop.permute.xlu0 %1380
    %v1382 = vsel %vm649, %v1381, 0
    %1384 = vmatprep.subr.mxu0 0.0
    %1385 = vmatpush1.msra.mxu0 %v584
    %1386 = vmatprep.subr.mxu0 0.0
    %1387 = vmatpush1.msra.mxu0 %v585
    %1388 = vmatprep.subr.mxu0 0.0
    %1389 = vmatpush1.msra.mxu0 %v586
    %1390 = vmatprep.subr.mxu0 0.0
    %1391 = vmatpush1.msra.mxu0 %v587
    %1392 = vmatprep.subr.mxu0 0.0
    %1393 = vmatpush1.msra.mxu0 0.0
    %1394 = vmatprep.subr.mxu0 0.0
    %1395 = vmatpush1.msra.mxu0 0.0
    %1396 = vmatprep.subr.mxu0 0.0
    %1397 = vmatpush1.msra.mxu0 0.0
    %1398 = vmatprep.subr.mxu0 0.0
    %1399 = vmatpush1.msra.mxu0 0.0
    %1400 = vmatprep.subr.mxu0 0.0
    %1401 = vmatpush1.msra.mxu0 0.0
    %1402 = vmatprep.subr.mxu0 0.0
    %1403 = vmatpush1.msra.mxu0 0.0
    %1404 = vmatprep.subr.mxu0 0.0
    %1405 = vmatpush1.msra.mxu0 0.0
    %1406 = vmatprep.subr.mxu0 0.0
    %1407 = vmatpush1.msra.mxu0 0.0
    %1408 = vmatprep.subr.mxu0 0.0
    %1409 = vmatpush1.msra.mxu0 0.0
    %1410 = vmatprep.subr.mxu0 0.0
    %1411 = vmatpush1.msra.mxu0 0.0
    %1412 = vmatprep.subr.mxu0 0.0
    %1413 = vmatpush1.msra.mxu0 0.0
    %1414 = vmatprep.subr.mxu0 0.0
    %1415 = vmatpush1.msra.mxu0 0.0
    %1416 = vmatprep.subr.mxu0 0.0
    %1417 = vmatpush1.msra.mxu0 0.0
    %1418 = vmatprep.subr.mxu0 0.0
    %1419 = vmatpush1.msra.mxu0 0.0
    %1420 = vmatprep.subr.mxu0 0.0
    %1421 = vmatpush1.msra.mxu0 0.0
    %1422 = vmatprep.subr.mxu0 0.0
    %1423 = vmatpush1.msra.mxu0 0.0
    %1424 = vmatprep.subr.mxu0 0.0
    %1425 = vmatpush1.msra.mxu0 0.0
    %1426 = vmatprep.subr.mxu0 0.0
    %1427 = vmatpush1.msra.mxu0 0.0
    %1428 = vmatprep.subr.mxu0 0.0
    %1429 = vmatpush1.msra.mxu0 0.0
    %1430 = vmatprep.subr.mxu0 0.0
    %1431 = vmatpush1.msra.mxu0 0.0
    %1432 = vmatprep.subr.mxu0 0.0
    %1433 = vmatpush1.msra.mxu0 0.0
    %1434 = vmatprep.subr.mxu0 0.0
    %1435 = vmatpush1.msra.mxu0 0.0
    %1436 = vmatprep.subr.mxu0 0.0
    %1437 = vmatpush1.msra.mxu0 0.0
    %1438 = vmatprep.subr.mxu0 0.0
    %1439 = vmatpush1.msra.mxu0 0.0
    %1440 = vmatprep.subr.mxu0 0.0
    %1441 = vmatpush1.msra.mxu0 0.0
    %1442 = vmatprep.subr.mxu0 0.0
    %1443 = vmatpush1.msra.mxu0 0.0
    %1444 = vmatprep.subr.mxu0 0.0
    %1445 = vmatpush1.msra.mxu0 0.0
    %1446 = vmatprep.subr.mxu0 0.0
    %1447 = vmatpush1.msra.mxu0 0.0
    %1448 = vmatprep.mubr.f32.mxu0 0.0
    %1449 = vmatmul.mubr.f32.gmra.mrb[0].mxu0 %v1382
    %v1450 = vpop.f32.mrb[0].mxu0
    %v1451 = vadd.f32 %v610, %v1450
    %v1452 = vpop.f32.mrb[0].mxu0
    %1453 = vdwg.mxu0
    %1455 = vrot.lane.b32.xlu0 %v1277, 96
    %v1456 = vpop.permute.xlu0 %1455
    %v1457 = vsel %vm649, %v1456, 0
    %1459 = vmatprep.subr.mxu0 0.0
    %1460 = vmatpush1.msra.mxu0 %v593
    %1461 = vmatprep.subr.mxu0 0.0
    %1462 = vmatpush1.msra.mxu0 %v594
    %1463 = vmatprep.subr.mxu0 0.0
    %1464 = vmatpush1.msra.mxu0 %v595
    %1465 = vmatprep.subr.mxu0 0.0
    %1466 = vmatpush1.msra.mxu0 %v596
    %1467 = vmatprep.subr.mxu0 0.0
    %1468 = vmatpush1.msra.mxu0 0.0
    %1469 = vmatprep.subr.mxu0 0.0
    %1470 = vmatpush1.msra.mxu0 0.0
    %1471 = vmatprep.subr.mxu0 0.0
    %1472 = vmatpush1.msra.mxu0 0.0
    %1473 = vmatprep.subr.mxu0 0.0
    %1474 = vmatpush1.msra.mxu0 0.0
    %1475 = vmatprep.subr.mxu0 0.0
    %1476 = vmatpush1.msra.mxu0 0.0
    %1477 = vmatprep.subr.mxu0 0.0
    %1478 = vmatpush1.msra.mxu0 0.0
    %1479 = vmatprep.subr.mxu0 0.0
    %1480 = vmatpush1.msra.mxu0 0.0
    %1481 = vmatprep.subr.mxu0 0.0
    %1482 = vmatpush1.msra.mxu0 0.0
    %1483 = vmatprep.subr.mxu0 0.0
    %1484 = vmatpush1.msra.mxu0 0.0
    %1485 = vmatprep.subr.mxu0 0.0
    %1486 = vmatpush1.msra.mxu0 0.0
    %1487 = vmatprep.subr.mxu0 0.0
    %1488 = vmatpush1.msra.mxu0 0.0
    %1489 = vmatprep.subr.mxu0 0.0
    %1490 = vmatpush1.msra.mxu0 0.0
    %1491 = vmatprep.subr.mxu0 0.0
    %1492 = vmatpush1.msra.mxu0 0.0
    %1493 = vmatprep.subr.mxu0 0.0
    %1494 = vmatpush1.msra.mxu0 0.0
    %1495 = vmatprep.subr.mxu0 0.0
    %1496 = vmatpush1.msra.mxu0 0.0
    %1497 = vmatprep.subr.mxu0 0.0
    %1498 = vmatpush1.msra.mxu0 0.0
    %1499 = vmatprep.subr.mxu0 0.0
    %1500 = vmatpush1.msra.mxu0 0.0
    %1501 = vmatprep.subr.mxu0 0.0
    %1502 = vmatpush1.msra.mxu0 0.0
    %1503 = vmatprep.subr.mxu0 0.0
    %1504 = vmatpush1.msra.mxu0 0.0
    %1505 = vmatprep.subr.mxu0 0.0
    %1506 = vmatpush1.msra.mxu0 0.0
    %1507 = vmatprep.subr.mxu0 0.0
    %1508 = vmatpush1.msra.mxu0 0.0
    %1509 = vmatprep.subr.mxu0 0.0
    %1510 = vmatpush1.msra.mxu0 0.0
    %1511 = vmatprep.subr.mxu0 0.0
    %1512 = vmatpush1.msra.mxu0 0.0
    %1513 = vmatprep.subr.mxu0 0.0
    %1514 = vmatpush1.msra.mxu0 0.0
    %1515 = vmatprep.subr.mxu0 0.0
    %1516 = vmatpush1.msra.mxu0 0.0
    %1517 = vmatprep.subr.mxu0 0.0
    %1518 = vmatpush1.msra.mxu0 0.0
    %1519 = vmatprep.subr.mxu0 0.0
    %1520 = vmatpush1.msra.mxu0 0.0
    %1521 = vmatprep.subr.mxu0 0.0
    %1522 = vmatpush1.msra.mxu0 0.0
    %1523 = vmatprep.mubr.f32.mxu0 0.0
    %1524 = vmatmul.mubr.f32.gmra.mrb[0].mxu0 %v1457
    %v1525 = vpop.f32.mrb[0].mxu0
    %v1526 = vadd.f32 %v625, %v1525
    %v1527 = vpop.f32.mrb[0].mxu0
    %1528 = vdwg.mxu0
    %v1529 = vadd.f32 %v1451, %v1526
    %v1530 = vxor.u32 %v1529, 2147483648
    %v1531 = vmul.f32 %v1530, 1.442695
    %v1532 = vpow.pop %v1531
    %v1533 = vadd.f32 %v1532, 1.0
    %v1534 = vrcp.pop %v1533
    %v1535 = vmul.f32 1.0, %v1534
    %1537 = vrot.lane.b32.xlu0 %v1526, 64
    %v1538 = vpop.permute.xlu0 %1537
    %v1540 = vmul.f32 %v1535, %v1538
    %1542 = vrot.lane.b32.xlu0 %v1540, 64
    %v1543 = vpop.permute.xlu0 %1542
    %v1545 = vadd.f32 %v1451, %v1543
    %v1546 = vtanh.pop %v1545
    %v1547 = vsub.f32 1.0, %v1535
    %1549 = vrot.lane.b32.xlu0 %v1546, 96
    %v1550 = vpop.permute.xlu0 %1549
    %v1552 = vmul.f32 %v1547, %v1550
    %v1553 = vmul.f32 %v1535, %v1277
    %v1554 = vadd.f32 %v1552, %v1553
    %1555 = vmatprep.subr.mxu0 0.0
    %1556 = vmatpush1.msra.mxu0 %v588
    %1557 = vmatprep.subr.mxu0 0.0
    %1558 = vmatpush1.msra.mxu0 %v589
    %1559 = vmatprep.subr.mxu0 0.0
    %1560 = vmatpush1.msra.mxu0 %v590
    %1561 = vmatprep.subr.mxu0 0.0
    %1562 = vmatpush1.msra.mxu0 %v591
    %1563 = vmatprep.subr.mxu0 0.0
    %1564 = vmatpush1.msra.mxu0 0.0
    %1565 = vmatprep.subr.mxu0 0.0
    %1566 = vmatpush1.msra.mxu0 0.0
    %1567 = vmatprep.subr.mxu0 0.0
    %1568 = vmatpush1.msra.mxu0 0.0
    %1569 = vmatprep.subr.mxu0 0.0
    %1570 = vmatpush1.msra.mxu0 0.0
    %1571 = vmatprep.subr.mxu0 0.0
    %1572 = vmatpush1.msra.mxu0 0.0
    %1573 = vmatprep.subr.mxu0 0.0
    %1574 = vmatpush1.msra.mxu0 0.0
    %1575 = vmatprep.subr.mxu0 0.0
    %1576 = vmatpush1.msra.mxu0 0.0
    %1577 = vmatprep.subr.mxu0 0.0
    %1578 = vmatpush1.msra.mxu0 0.0
    %1579 = vmatprep.subr.mxu0 0.0
    %1580 = vmatpush1.msra.mxu0 0.0
    %1581 = vmatprep.subr.mxu0 0.0
    %1582 = vmatpush1.msra.mxu0 0.0
    %1583 = vmatprep.subr.mxu0 0.0
    %1584 = vmatpush1.msra.mxu0 0.0
    %1585 = vmatprep.subr.mxu0 0.0
    %1586 = vmatpush1.msra.mxu0 0.0
    %1587 = vmatprep.subr.mxu0 0.0
    %1588 = vmatpush1.msra.mxu0 0.0
    %1589 = vmatprep.subr.mxu0 0.0
    %1590 = vmatpush1.msra.mxu0 0.0
    %1591 = vmatprep.subr.mxu0 0.0
    %1592 = vmatpush1.msra.mxu0 0.0
    %1593 = vmatprep.subr.mxu0 0.0
    %1594 = vmatpush1.msra.mxu0 0.0
    %1595 = vmatprep.subr.mxu0 0.0
    %1596 = vmatpush1.msra.mxu0 0.0
    %1597 = vmatprep.subr.mxu0 0.0
    %1598 = vmatpush1.msra.mxu0 0.0
    %1599 = vmatprep.subr.mxu0 0.0
    %1600 = vmatpush1.msra.mxu0 0.0
    %1601 = vmatprep.subr.mxu0 0.0
    %1602 = vmatpush1.msra.mxu0 0.0
    %1603 = vmatprep.subr.mxu0 0.0
    %1604 = vmatpush1.msra.mxu0 0.0
    %1605 = vmatprep.subr.mxu0 0.0
    %1606 = vmatpush1.msra.mxu0 0.0
    %1607 = vmatprep.subr.mxu0 0.0
    %1608 = vmatpush1.msra.mxu0 0.0
    %1609 = vmatprep.subr.mxu0 0.0
    %1610 = vmatpush1.msra.mxu0 0.0
    %1611 = vmatprep.subr.mxu0 0.0
    %1612 = vmatpush1.msra.mxu0 0.0
    %1613 = vmatprep.subr.mxu0 0.0
    %1614 = vmatpush1.msra.mxu0 0.0
    %1615 = vmatprep.subr.mxu0 0.0
    %1616 = vmatpush1.msra.mxu0 0.0
    %1617 = vmatprep.subr.mxu0 0.0
    %1618 = vmatpush1.msra.mxu0 0.0
    %1619 = vmatprep.mubr.f32.mxu0 0.0
    %1620 = vmatmul.mubr.f32.gmra.mrb[0].mxu0 %v1382
    %v1621 = vpop.f32.mrb[0].mxu0
    %v1622 = vadd.f32 %v617, %v1621
    %v1623 = vpop.f32.mrb[0].mxu0
    %1624 = vdwg.mxu0
    %v1626 = vrot.slane %v1622, 2
    %v1628 = vadd.f32 %v723, %v1626
    %v1629 = vxor.u32 %v1628, 2147483648
    %v1630 = vmul.f32 %v1629, 1.442695
    %v1631 = vpow.pop %v1630
    %v1632 = vadd.f32 %v1631, 1.0
    %v1633 = vrcp.pop %v1632
    %v1634 = vmul.f32 1.0, %v1633
    %1635 = vrot.lane.b32.xlu0 %v1626, 64
    %v1636 = vpop.permute.xlu0 %1635
    %v1638 = vmul.f32 %v1634, %v1636
    %1640 = vrot.lane.b32.xlu0 %v1638, 64
    %v1641 = vpop.permute.xlu0 %1640
    %v1643 = vadd.f32 %v723, %v1641
    %v1644 = vtanh.pop %v1643
    %v1645 = vsub.f32 1.0, %v1634
    %1647 = vrot.lane.b32.xlu0 %v1644, 96
    %v1648 = vpop.permute.xlu0 %1647
    %v1650 = vmul.f32 %v1645, %v1648
    %v1651 = vrot.slane %v1377, 6
    %v1653 = vmul.f32 %v1634, %v1651
    %v1654 = vadd.f32 %v1650, %v1653
    %v1656 = vrot.slane %v1654, 6
    %1657 = vrot.lane.b32.xlu0 %v1656, 96
    %v1658 = vpop.permute.xlu0 %1657
    %v1659 = vsel %vm649, %v1658, 0
    %1661 = vmatprep.subr.mxu0 0.0
    %1662 = vmatpush1.msra.mxu0 %v584
    %1663 = vmatprep.subr.mxu0 0.0
    %1664 = vmatpush1.msra.mxu0 %v585
    %1665 = vmatprep.subr.mxu0 0.0
    %1666 = vmatpush1.msra.mxu0 %v586
    %1667 = vmatprep.subr.mxu0 0.0
    %1668 = vmatpush1.msra.mxu0 %v587
    %1669 = vmatprep.subr.mxu0 0.0
    %1670 = vmatpush1.msra.mxu0 0.0
    %1671 = vmatprep.subr.mxu0 0.0
    %1672 = vmatpush1.msra.mxu0 0.0
    %1673 = vmatprep.subr.mxu0 0.0
    %1674 = vmatpush1.msra.mxu0 0.0
    %1675 = vmatprep.subr.mxu0 0.0
    %1676 = vmatpush1.msra.mxu0 0.0
    %1677 = vmatprep.subr.mxu0 0.0
    %1678 = vmatpush1.msra.mxu0 0.0
    %1679 = vmatprep.subr.mxu0 0.0
    %1680 = vmatpush1.msra.mxu0 0.0
    %1681 = vmatprep.subr.mxu0 0.0
    %1682 = vmatpush1.msra.mxu0 0.0
    %1683 = vmatprep.subr.mxu0 0.0
    %1684 = vmatpush1.msra.mxu0 0.0
    %1685 = vmatprep.subr.mxu0 0.0
    %1686 = vmatpush1.msra.mxu0 0.0
    %1687 = vmatprep.subr.mxu0 0.0
    %1688 = vmatpush1.msra.mxu0 0.0
    %1689 = vmatprep.subr.mxu0 0.0
    %1690 = vmatpush1.msra.mxu0 0.0
    %1691 = vmatprep.subr.mxu0 0.0
    %1692 = vmatpush1.msra.mxu0 0.0
    %1693 = vmatprep.subr.mxu0 0.0
    %1694 = vmatpush1.msra.mxu0 0.0
    %1695 = vmatprep.subr.mxu0 0.0
    %1696 = vmatpush1.msra.mxu0 0.0
    %1697 = vmatprep.subr.mxu0 0.0
    %1698 = vmatpush1.msra.mxu0 0.0
    %1699 = vmatprep.subr.mxu0 0.0
    %1700 = vmatpush1.msra.mxu0 0.0
    %1701 = vmatprep.subr.mxu0 0.0
    %1702 = vmatpush1.msra.mxu0 0.0
    %1703 = vmatprep.subr.mxu0 0.0
    %1704 = vmatpush1.msra.mxu0 0.0
    %1705 = vmatprep.subr.mxu0 0.0
    %1706 = vmatpush1.msra.mxu0 0.0
    %1707 = vmatprep.subr.mxu0 0.0
    %1708 = vmatpush1.msra.mxu0 0.0
    %1709 = vmatprep.subr.mxu0 0.0
    %1710 = vmatpush1.msra.mxu0 0.0
    %1711 = vmatprep.subr.mxu0 0.0
    %1712 = vmatpush1.msra.mxu0 0.0
    %1713 = vmatprep.subr.mxu0 0.0
    %1714 = vmatpush1.msra.mxu0 0.0
    %1715 = vmatprep.subr.mxu0 0.0
    %1716 = vmatpush1.msra.mxu0 0.0
    %1717 = vmatprep.subr.mxu0 0.0
    %1718 = vmatpush1.msra.mxu0 0.0
    %1719 = vmatprep.subr.mxu0 0.0
    %1720 = vmatpush1.msra.mxu0 0.0
    %1721 = vmatprep.subr.mxu0 0.0
    %1722 = vmatpush1.msra.mxu0 0.0
    %1723 = vmatprep.subr.mxu0 0.0
    %1724 = vmatpush1.msra.mxu0 0.0
    %1725 = vmatprep.mubr.f32.mxu0 0.0
    %1726 = vmatmul.mubr.f32.gmra.mrb[0].mxu0 %v1659
    %v1727 = vpop.f32.mrb[0].mxu0
    %v1728 = vadd.f32 %v610, %v1727
    %v1729 = vpop.f32.mrb[0].mxu0
    %1730 = vdwg.mxu0
    %1732 = vrot.lane.b32.xlu0 %v1554, 96
    %v1733 = vpop.permute.xlu0 %1732
    %v1734 = vsel %vm649, %v1733, 0
    %1736 = vmatprep.subr.mxu0 0.0
    %1737 = vmatpush1.msra.mxu0 %v593
    %1738 = vmatprep.subr.mxu0 0.0
    %1739 = vmatpush1.msra.mxu0 %v594
    %1740 = vmatprep.subr.mxu0 0.0
    %1741 = vmatpush1.msra.mxu0 %v595
    %1742 = vmatprep.subr.mxu0 0.0
    %1743 = vmatpush1.msra.mxu0 %v596
    %1744 = vmatprep.subr.mxu0 0.0
    %1745 = vmatpush1.msra.mxu0 0.0
    %1746 = vmatprep.subr.mxu0 0.0
    %1747 = vmatpush1.msra.mxu0 0.0
    %1748 = vmatprep.subr.mxu0 0.0
    %1749 = vmatpush1.msra.mxu0 0.0
    %1750 = vmatprep.subr.mxu0 0.0
    %1751 = vmatpush1.msra.mxu0 0.0
    %1752 = vmatprep.subr.mxu0 0.0
    %1753 = vmatpush1.msra.mxu0 0.0
    %1754 = vmatprep.subr.mxu0 0.0
    %1755 = vmatpush1.msra.mxu0 0.0
    %1756 = vmatprep.subr.mxu0 0.0
    %1757 = vmatpush1.msra.mxu0 0.0
    %1758 = vmatprep.subr.mxu0 0.0
    %1759 = vmatpush1.msra.mxu0 0.0
    %1760 = vmatprep.subr.mxu0 0.0
    %1761 = vmatpush1.msra.mxu0 0.0
    %1762 = vmatprep.subr.mxu0 0.0
    %1763 = vmatpush1.msra.mxu0 0.0
    %1764 = vmatprep.subr.mxu0 0.0
    %1765 = vmatpush1.msra.mxu0 0.0
    %1766 = vmatprep.subr.mxu0 0.0
    %1767 = vmatpush1.msra.mxu0 0.0
    %1768 = vmatprep.subr.mxu0 0.0
    %1769 = vmatpush1.msra.mxu0 0.0
    %1770 = vmatprep.subr.mxu0 0.0
    %1771 = vmatpush1.msra.mxu0 0.0
    %1772 = vmatprep.subr.mxu0 0.0
    %1773 = vmatpush1.msra.mxu0 0.0
    %1774 = vmatprep.subr.mxu0 0.0
    %1775 = vmatpush1.msra.mxu0 0.0
    %1776 = vmatprep.subr.mxu0 0.0
    %1777 = vmatpush1.msra.mxu0 0.0
    %1778 = vmatprep.subr.mxu0 0.0
    %1779 = vmatpush1.msra.mxu0 0.0
    %1780 = vmatprep.subr.mxu0 0.0
    %1781 = vmatpush1.msra.mxu0 0.0
    %1782 = vmatprep.subr.mxu0 0.0
    %1783 = vmatpush1.msra.mxu0 0.0
    %1784 = vmatprep.subr.mxu0 0.0
    %1785 = vmatpush1.msra.mxu0 0.0
    %1786 = vmatprep.subr.mxu0 0.0
    %1787 = vmatpush1.msra.mxu0 0.0
    %1788 = vmatprep.subr.mxu0 0.0
    %1789 = vmatpush1.msra.mxu0 0.0
    %1790 = vmatprep.subr.mxu0 0.0
    %1791 = vmatpush1.msra.mxu0 0.0
    %1792 = vmatprep.subr.mxu0 0.0
    %1793 = vmatpush1.msra.mxu0 0.0
    %1794 = vmatprep.subr.mxu0 0.0
    %1795 = vmatpush1.msra.mxu0 0.0
    %1796 = vmatprep.subr.mxu0 0.0
    %1797 = vmatpush1.msra.mxu0 0.0
    %1798 = vmatprep.subr.mxu0 0.0
    %1799 = vmatpush1.msra.mxu0 0.0
    %1800 = vmatprep.mubr.f32.mxu0 0.0
    %1801 = vmatmul.mubr.f32.gmra.mrb[0].mxu0 %v1734
    %v1802 = vpop.f32.mrb[0].mxu0
    %v1803 = vadd.f32 %v625, %v1802
    %v1804 = vpop.f32.mrb[0].mxu0
    %1805 = vdwg.mxu0
    %v1806 = vadd.f32 %v1728, %v1803
    %v1807 = vxor.u32 %v1806, 2147483648
    %v1808 = vmul.f32 %v1807, 1.442695
    %v1809 = vpow.pop %v1808
    %v1810 = vadd.f32 %v1809, 1.0
    %v1811 = vrcp.pop %v1810
    %v1812 = vmul.f32 1.0, %v1811
    %1814 = vrot.lane.b32.xlu0 %v1803, 64
    %v1815 = vpop.permute.xlu0 %1814
    %v1817 = vmul.f32 %v1812, %v1815
    %1819 = vrot.lane.b32.xlu0 %v1817, 64
    %v1820 = vpop.permute.xlu0 %1819
    %v1822 = vadd.f32 %v1728, %v1820
    %v1823 = vtanh.pop %v1822
    %v1824 = vsub.f32 1.0, %v1812
    %1826 = vrot.lane.b32.xlu0 %v1823, 96
    %v1827 = vpop.permute.xlu0 %1826
    %v1829 = vmul.f32 %v1824, %v1827
    %v1830 = vmul.f32 %v1812, %v1554
    %v1831 = vadd.f32 %v1829, %v1830
    %1832 = vmatprep.subr.mxu0 0.0
    %1833 = vmatpush1.msra.mxu0 %v588
    %1834 = vmatprep.subr.mxu0 0.0
    %1835 = vmatpush1.msra.mxu0 %v589
    %1836 = vmatprep.subr.mxu0 0.0
    %1837 = vmatpush1.msra.mxu0 %v590
    %1838 = vmatprep.subr.mxu0 0.0
    %1839 = vmatpush1.msra.mxu0 %v591
    %1840 = vmatprep.subr.mxu0 0.0
    %1841 = vmatpush1.msra.mxu0 0.0
    %1842 = vmatprep.subr.mxu0 0.0
    %1843 = vmatpush1.msra.mxu0 0.0
    %1844 = vmatprep.subr.mxu0 0.0
    %1845 = vmatpush1.msra.mxu0 0.0
    %1846 = vmatprep.subr.mxu0 0.0
    %1847 = vmatpush1.msra.mxu0 0.0
    %1848 = vmatprep.subr.mxu0 0.0
    %1849 = vmatpush1.msra.mxu0 0.0
    %1850 = vmatprep.subr.mxu0 0.0
    %1851 = vmatpush1.msra.mxu0 0.0
    %1852 = vmatprep.subr.mxu0 0.0
    %1853 = vmatpush1.msra.mxu0 0.0
    %1854 = vmatprep.subr.mxu0 0.0
    %1855 = vmatpush1.msra.mxu0 0.0
    %1856 = vmatprep.subr.mxu0 0.0
    %1857 = vmatpush1.msra.mxu0 0.0
    %1858 = vmatprep.subr.mxu0 0.0
    %1859 = vmatpush1.msra.mxu0 0.0
    %1860 = vmatprep.subr.mxu0 0.0
    %1861 = vmatpush1.msra.mxu0 0.0
    %1862 = vmatprep.subr.mxu0 0.0
    %1863 = vmatpush1.msra.mxu0 0.0
    %1864 = vmatprep.subr.mxu0 0.0
    %1865 = vmatpush1.msra.mxu0 0.0
    %1866 = vmatprep.subr.mxu0 0.0
    %1867 = vmatpush1.msra.mxu0 0.0
    %1868 = vmatprep.subr.mxu0 0.0
    %1869 = vmatpush1.msra.mxu0 0.0
    %1870 = vmatprep.subr.mxu0 0.0
    %1871 = vmatpush1.msra.mxu0 0.0
    %1872 = vmatprep.subr.mxu0 0.0
    %1873 = vmatpush1.msra.mxu0 0.0
    %1874 = vmatprep.subr.mxu0 0.0
    %1875 = vmatpush1.msra.mxu0 0.0
    %1876 = vmatprep.subr.mxu0 0.0
    %1877 = vmatpush1.msra.mxu0 0.0
    %1878 = vmatprep.subr.mxu0 0.0
    %1879 = vmatpush1.msra.mxu0 0.0
    %1880 = vmatprep.subr.mxu0 0.0
    %1881 = vmatpush1.msra.mxu0 0.0
    %1882 = vmatprep.subr.mxu0 0.0
    %1883 = vmatpush1.msra.mxu0 0.0
    %1884 = vmatprep.subr.mxu0 0.0
    %1885 = vmatpush1.msra.mxu0 0.0
    %1886 = vmatprep.subr.mxu0 0.0
    %1887 = vmatpush1.msra.mxu0 0.0
    %1888 = vmatprep.subr.mxu0 0.0
    %1889 = vmatpush1.msra.mxu0 0.0
    %1890 = vmatprep.subr.mxu0 0.0
    %1891 = vmatpush1.msra.mxu0 0.0
    %1892 = vmatprep.subr.mxu0 0.0
    %1893 = vmatpush1.msra.mxu0 0.0
    %1894 = vmatprep.subr.mxu0 0.0
    %1895 = vmatpush1.msra.mxu0 0.0
    %1896 = vmatprep.mubr.f32.mxu0 0.0
    %1897 = vmatmul.mubr.f32.gmra.mrb[0].mxu0 %v1659
    %v1898 = vpop.f32.mrb[0].mxu0
    %v1899 = vadd.f32 %v617, %v1898
    %v1900 = vpop.f32.mrb[0].mxu0
    %1901 = vdwg.mxu0
    %v1902 = vadd.f32 %v728, %v1899
    %v1903 = vxor.u32 %v1902, 2147483648
    %v1904 = vmul.f32 %v1903, 1.442695
    %v1905 = vpow.pop %v1904
    %v1906 = vadd.f32 %v1905, 1.0
    %v1907 = vrcp.pop %v1906
    %v1908 = vmul.f32 1.0, %v1907
    %1910 = vrot.lane.b32.xlu0 %v1899, 64
    %v1911 = vpop.permute.xlu0 %1910
    %v1913 = vmul.f32 %v1908, %v1911
    %1915 = vrot.lane.b32.xlu0 %v1913, 64
    %v1916 = vpop.permute.xlu0 %1915
    %v1918 = vadd.f32 %v728, %v1916
    %v1919 = vtanh.pop %v1918
    %v1920 = vsub.f32 1.0, %v1908
    %1922 = vrot.lane.b32.xlu0 %v1919, 96
    %v1923 = vpop.permute.xlu0 %1922
    %v1925 = vmul.f32 %v1920, %v1923
    %v1927 = vmul.f32 %v1908, %v1656
    %v1928 = vadd.f32 %v1925, %v1927
    %1930 = vrot.lane.b32.xlu0 %v1928, 96
    %v1931 = vpop.permute.xlu0 %1930
    %v1932 = vsel %vm649, %v1931, 0
    %1934 = vmatprep.subr.mxu0 0.0
    %1935 = vmatpush1.msra.mxu0 %v584
    %1936 = vmatprep.subr.mxu0 0.0
    %1937 = vmatpush1.msra.mxu0 %v585
    %1938 = vmatprep.subr.mxu0 0.0
    %1939 = vmatpush1.msra.mxu0 %v586
    %1940 = vmatprep.subr.mxu0 0.0
    %1941 = vmatpush1.msra.mxu0 %v587
    %1942 = vmatprep.subr.mxu0 0.0
    %1943 = vmatpush1.msra.mxu0 0.0
    %1944 = vmatprep.subr.mxu0 0.0
    %1945 = vmatpush1.msra.mxu0 0.0
    %1946 = vmatprep.subr.mxu0 0.0
    %1947 = vmatpush1.msra.mxu0 0.0
    %1948 = vmatprep.subr.mxu0 0.0
    %1949 = vmatpush1.msra.mxu0 0.0
    %1950 = vmatprep.subr.mxu0 0.0
    %1951 = vmatpush1.msra.mxu0 0.0
    %1952 = vmatprep.subr.mxu0 0.0
    %1953 = vmatpush1.msra.mxu0 0.0
    %1954 = vmatprep.subr.mxu0 0.0
    %1955 = vmatpush1.msra.mxu0 0.0
    %1956 = vmatprep.subr.mxu0 0.0
    %1957 = vmatpush1.msra.mxu0 0.0
    %1958 = vmatprep.subr.mxu0 0.0
    %1959 = vmatpush1.msra.mxu0 0.0
    %1960 = vmatprep.subr.mxu0 0.0
    %1961 = vmatpush1.msra.mxu0 0.0
    %1962 = vmatprep.subr.mxu0 0.0
    %1963 = vmatpush1.msra.mxu0 0.0
    %1964 = vmatprep.subr.mxu0 0.0
    %1965 = vmatpush1.msra.mxu0 0.0
    %1966 = vmatprep.subr.mxu0 0.0
    %1967 = vmatpush1.msra.mxu0 0.0
    %1968 = vmatprep.subr.mxu0 0.0
    %1969 = vmatpush1.msra.mxu0 0.0
    %1970 = vmatprep.subr.mxu0 0.0
    %1971 = vmatpush1.msra.mxu0 0.0
    %1972 = vmatprep.subr.mxu0 0.0
    %1973 = vmatpush1.msra.mxu0 0.0
    %1974 = vmatprep.subr.mxu0 0.0
    %1975 = vmatpush1.msra.mxu0 0.0
    %1976 = vmatprep.subr.mxu0 0.0
    %1977 = vmatpush1.msra.mxu0 0.0
    %1978 = vmatprep.subr.mxu0 0.0
    %1979 = vmatpush1.msra.mxu0 0.0
    %1980 = vmatprep.subr.mxu0 0.0
    %1981 = vmatpush1.msra.mxu0 0.0
    %1982 = vmatprep.subr.mxu0 0.0
    %1983 = vmatpush1.msra.mxu0 0.0
    %1984 = vmatprep.subr.mxu0 0.0
    %1985 = vmatpush1.msra.mxu0 0.0
    %1986 = vmatprep.subr.mxu0 0.0
    %1987 = vmatpush1.msra.mxu0 0.0
    %1988 = vmatprep.subr.mxu0 0.0
    %1989 = vmatpush1.msra.mxu0 0.0
    %1990 = vmatprep.subr.mxu0 0.0
    %1991 = vmatpush1.msra.mxu0 0.0
    %1992 = vmatprep.subr.mxu0 0.0
    %1993 = vmatpush1.msra.mxu0 0.0
    %1994 = vmatprep.subr.mxu0 0.0
    %1995 = vmatpush1.msra.mxu0 0.0
    %1996 = vmatprep.subr.mxu0 0.0
    %1997 = vmatpush1.msra.mxu0 0.0
    %1998 = vmatprep.mubr.f32.mxu0 0.0
    %1999 = vmatmul.mubr.f32.gmra.mrb[0].mxu0 %v1932
    %v2000 = vpop.f32.mrb[0].mxu0
    %v2001 = vadd.f32 %v610, %v2000
    %v2002 = vpop.f32.mrb[0].mxu0
    %2003 = vdwg.mxu0
    %2005 = vrot.lane.b32.xlu0 %v1831, 96
    %v2006 = vpop.permute.xlu0 %2005
    %v2007 = vsel %vm649, %v2006, 0
    %2009 = vmatprep.subr.mxu0 0.0
    %2010 = vmatpush1.msra.mxu0 %v593
    %2011 = vmatprep.subr.mxu0 0.0
    %2012 = vmatpush1.msra.mxu0 %v594
    %2013 = vmatprep.subr.mxu0 0.0
    %2014 = vmatpush1.msra.mxu0 %v595
    %2015 = vmatprep.subr.mxu0 0.0
    %2016 = vmatpush1.msra.mxu0 %v596
    %2017 = vmatprep.subr.mxu0 0.0
    %2018 = vmatpush1.msra.mxu0 0.0
    %2019 = vmatprep.subr.mxu0 0.0
    %2020 = vmatpush1.msra.mxu0 0.0
    %2021 = vmatprep.subr.mxu0 0.0
    %2022 = vmatpush1.msra.mxu0 0.0
    %2023 = vmatprep.subr.mxu0 0.0
    %2024 = vmatpush1.msra.mxu0 0.0
    %2025 = vmatprep.subr.mxu0 0.0
    %2026 = vmatpush1.msra.mxu0 0.0
    %2027 = vmatprep.subr.mxu0 0.0
    %2028 = vmatpush1.msra.mxu0 0.0
    %2029 = vmatprep.subr.mxu0 0.0
    %2030 = vmatpush1.msra.mxu0 0.0
    %2031 = vmatprep.subr.mxu0 0.0
    %2032 = vmatpush1.msra.mxu0 0.0
    %2033 = vmatprep.subr.mxu0 0.0
    %2034 = vmatpush1.msra.mxu0 0.0
    %2035 = vmatprep.subr.mxu0 0.0
    %2036 = vmatpush1.msra.mxu0 0.0
    %2037 = vmatprep.subr.mxu0 0.0
    %2038 = vmatpush1.msra.mxu0 0.0
    %2039 = vmatprep.subr.mxu0 0.0
    %2040 = vmatpush1.msra.mxu0 0.0
    %2041 = vmatprep.subr.mxu0 0.0
    %2042 = vmatpush1.msra.mxu0 0.0
    %2043 = vmatprep.subr.mxu0 0.0
    %2044 = vmatpush1.msra.mxu0 0.0
    %2045 = vmatprep.subr.mxu0 0.0
    %2046 = vmatpush1.msra.mxu0 0.0
    %2047 = vmatprep.subr.mxu0 0.0
    %2048 = vmatpush1.msra.mxu0 0.0
    %2049 = vmatprep.subr.mxu0 0.0
    %2050 = vmatpush1.msra.mxu0 0.0
    %2051 = vmatprep.subr.mxu0 0.0
    %2052 = vmatpush1.msra.mxu0 0.0
    %2053 = vmatprep.subr.mxu0 0.0
    %2054 = vmatpush1.msra.mxu0 0.0
    %2055 = vmatprep.subr.mxu0 0.0
    %2056 = vmatpush1.msra.mxu0 0.0
    %2057 = vmatprep.subr.mxu0 0.0
    %2058 = vmatpush1.msra.mxu0 0.0
    %2059 = vmatprep.subr.mxu0 0.0
    %2060 = vmatpush1.msra.mxu0 0.0
    %2061 = vmatprep.subr.mxu0 0.0
    %2062 = vmatpush1.msra.mxu0 0.0
    %2063 = vmatprep.subr.mxu0 0.0
    %2064 = vmatpush1.msra.mxu0 0.0
    %2065 = vmatprep.subr.mxu0 0.0
    %2066 = vmatpush1.msra.mxu0 0.0
    %2067 = vmatprep.subr.mxu0 0.0
    %2068 = vmatpush1.msra.mxu0 0.0
    %2069 = vmatprep.subr.mxu0 0.0
    %2070 = vmatpush1.msra.mxu0 0.0
    %2071 = vmatprep.subr.mxu0 0.0
    %2072 = vmatpush1.msra.mxu0 0.0
    %2073 = vmatprep.mubr.f32.mxu0 0.0
    %2074 = vmatmul.mubr.f32.gmra.mrb[0].mxu0 %v2007
    %v2075 = vpop.f32.mrb[0].mxu0
    %v2076 = vadd.f32 %v625, %v2075
    %v2077 = vpop.f32.mrb[0].mxu0
    %2078 = vdwg.mxu0
    %v2079 = vadd.f32 %v2001, %v2076
    %v2080 = vxor.u32 %v2079, 2147483648
    %v2081 = vmul.f32 %v2080, 1.442695
    %v2082 = vpow.pop %v2081
    %v2083 = vadd.f32 %v2082, 1.0
    %v2084 = vrcp.pop %v2083
    %v2085 = vmul.f32 1.0, %v2084
    %2087 = vrot.lane.b32.xlu0 %v2076, 64
    %v2088 = vpop.permute.xlu0 %2087
    %v2090 = vmul.f32 %v2085, %v2088
    %2092 = vrot.lane.b32.xlu0 %v2090, 64
    %v2093 = vpop.permute.xlu0 %2092
    %v2095 = vadd.f32 %v2001, %v2093
    %v2096 = vtanh.pop %v2095
    %v2097 = vsub.f32 1.0, %v2085
    %2099 = vrot.lane.b32.xlu0 %v2096, 96
    %v2100 = vpop.permute.xlu0 %2099
    %v2102 = vmul.f32 %v2097, %v2100
    %v2103 = vmul.f32 %v2085, %v1831
    %v2104 = vadd.f32 %v2102, %v2103
    %2105 = vmatprep.subr.mxu0 0.0
    %2106 = vmatpush1.msra.mxu0 %v588
    %2107 = vmatprep.subr.mxu0 0.0
    %2108 = vmatpush1.msra.mxu0 %v589
    %2109 = vmatprep.subr.mxu0 0.0
    %2110 = vmatpush1.msra.mxu0 %v590
    %2111 = vmatprep.subr.mxu0 0.0
    %2112 = vmatpush1.msra.mxu0 %v591
    %2113 = vmatprep.subr.mxu0 0.0
    %2114 = vmatpush1.msra.mxu0 0.0
    %2115 = vmatprep.subr.mxu0 0.0
    %2116 = vmatpush1.msra.mxu0 0.0
    %2117 = vmatprep.subr.mxu0 0.0
    %2118 = vmatpush1.msra.mxu0 0.0
    %2119 = vmatprep.subr.mxu0 0.0
    %2120 = vmatpush1.msra.mxu0 0.0
    %2121 = vmatprep.subr.mxu0 0.0
    %2122 = vmatpush1.msra.mxu0 0.0
    %2123 = vmatprep.subr.mxu0 0.0
    %2124 = vmatpush1.msra.mxu0 0.0
    %2125 = vmatprep.subr.mxu0 0.0
    %2126 = vmatpush1.msra.mxu0 0.0
    %2127 = vmatprep.subr.mxu0 0.0
    %2128 = vmatpush1.msra.mxu0 0.0
    %2129 = vmatprep.subr.mxu0 0.0
    %2130 = vmatpush1.msra.mxu0 0.0
    %2131 = vmatprep.subr.mxu0 0.0
    %2132 = vmatpush1.msra.mxu0 0.0
    %2133 = vmatprep.subr.mxu0 0.0
    %2134 = vmatpush1.msra.mxu0 0.0
    %2135 = vmatprep.subr.mxu0 0.0
    %2136 = vmatpush1.msra.mxu0 0.0
    %2137 = vmatprep.subr.mxu0 0.0
    %2138 = vmatpush1.msra.mxu0 0.0
    %2139 = vmatprep.subr.mxu0 0.0
    %2140 = vmatpush1.msra.mxu0 0.0
    %2141 = vmatprep.subr.mxu0 0.0
    %2142 = vmatpush1.msra.mxu0 0.0
    %2143 = vmatprep.subr.mxu0 0.0
    %2144 = vmatpush1.msra.mxu0 0.0
    %2145 = vmatprep.subr.mxu0 0.0
    %2146 = vmatpush1.msra.mxu0 0.0
    %2147 = vmatprep.subr.mxu0 0.0
    %2148 = vmatpush1.msra.mxu0 0.0
    %2149 = vmatprep.subr.mxu0 0.0
    %2150 = vmatpush1.msra.mxu0 0.0
    %2151 = vmatprep.subr.mxu0 0.0
    %2152 = vmatpush1.msra.mxu0 0.0
    %2153 = vmatprep.subr.mxu0 0.0
    %2154 = vmatpush1.msra.mxu0 0.0
    %2155 = vmatprep.subr.mxu0 0.0
    %2156 = vmatpush1.msra.mxu0 0.0
    %2157 = vmatprep.subr.mxu0 0.0
    %2158 = vmatpush1.msra.mxu0 0.0
    %2159 = vmatprep.subr.mxu0 0.0
    %2160 = vmatpush1.msra.mxu0 0.0
    %2161 = vmatprep.subr.mxu0 0.0
    %2162 = vmatpush1.msra.mxu0 0.0
    %2163 = vmatprep.subr.mxu0 0.0
    %2164 = vmatpush1.msra.mxu0 0.0
    %2165 = vmatprep.subr.mxu0 0.0
    %2166 = vmatpush1.msra.mxu0 0.0
    %2167 = vmatprep.subr.mxu0 0.0
    %2168 = vmatpush1.msra.mxu0 0.0
    %2169 = vmatprep.mubr.f32.mxu0 0.0
    %2170 = vmatmul.mubr.f32.gmra.mrb[0].mxu0 %v1932
    %v2171 = vpop.f32.mrb[0].mxu0
    %v2172 = vadd.f32 %v617, %v2171
    %v2173 = vpop.f32.mrb[0].mxu0
    %2174 = vdwg.mxu0
    %v2176 = vrot.slane %v2172, 6
    %v2178 = vadd.f32 %v728, %v2176
    %v2179 = vxor.u32 %v2178, 2147483648
    %v2180 = vmul.f32 %v2179, 1.442695
    %v2181 = vpow.pop %v2180
    %v2182 = vadd.f32 %v2181, 1.0
    %v2183 = vrcp.pop %v2182
    %v2184 = vmul.f32 1.0, %v2183
    %2185 = vrot.lane.b32.xlu0 %v2176, 64
    %v2186 = vpop.permute.xlu0 %2185
    %v2188 = vmul.f32 %v2184, %v2186
    %2190 = vrot.lane.b32.xlu0 %v2188, 64
    %v2191 = vpop.permute.xlu0 %2190
    %v2193 = vadd.f32 %v728, %v2191
    %v2194 = vtanh.pop %v2193
    %v2195 = vsub.f32 1.0, %v2184
    %2197 = vrot.lane.b32.xlu0 %v2194, 96
    %v2198 = vpop.permute.xlu0 %2197
    %v2200 = vmul.f32 %v2195, %v2198
    %v2201 = vrot.slane %v1928, 6
    %v2203 = vmul.f32 %v2184, %v2201
    %v2204 = vadd.f32 %v2200, %v2203
    %v2206 = vrot.slane %v2204, 2
    %2207 = vrot.lane.b32.xlu0 %v2206, 96
    %v2208 = vpop.permute.xlu0 %2207
    %v2209 = vsel %vm649, %v2208, 0
    %2211 = vmatprep.subr.mxu0 0.0
    %2212 = vmatpush1.msra.mxu0 %v584
    %2213 = vmatprep.subr.mxu0 0.0
    %2214 = vmatpush1.msra.mxu0 %v585
    %2215 = vmatprep.subr.mxu0 0.0
    %2216 = vmatpush1.msra.mxu0 %v586
    %2217 = vmatprep.subr.mxu0 0.0
    %2218 = vmatpush1.msra.mxu0 %v587
    %2219 = vmatprep.subr.mxu0 0.0
    %2220 = vmatpush1.msra.mxu0 0.0
    %2221 = vmatprep.subr.mxu0 0.0
    %2222 = vmatpush1.msra.mxu0 0.0
    %2223 = vmatprep.subr.mxu0 0.0
    %2224 = vmatpush1.msra.mxu0 0.0
    %2225 = vmatprep.subr.mxu0 0.0
    %2226 = vmatpush1.msra.mxu0 0.0
    %2227 = vmatprep.subr.mxu0 0.0
    %2228 = vmatpush1.msra.mxu0 0.0
    %2229 = vmatprep.subr.mxu0 0.0
    %2230 = vmatpush1.msra.mxu0 0.0
    %2231 = vmatprep.subr.mxu0 0.0
    %2232 = vmatpush1.msra.mxu0 0.0
    %2233 = vmatprep.subr.mxu0 0.0
    %2234 = vmatpush1.msra.mxu0 0.0
    %2235 = vmatprep.subr.mxu0 0.0
    %2236 = vmatpush1.msra.mxu0 0.0
    %2237 = vmatprep.subr.mxu0 0.0
    %2238 = vmatpush1.msra.mxu0 0.0
    %2239 = vmatprep.subr.mxu0 0.0
    %2240 = vmatpush1.msra.mxu0 0.0
    %2241 = vmatprep.subr.mxu0 0.0
    %2242 = vmatpush1.msra.mxu0 0.0
    %2243 = vmatprep.subr.mxu0 0.0
    %2244 = vmatpush1.msra.mxu0 0.0
    %2245 = vmatprep.subr.mxu0 0.0
    %2246 = vmatpush1.msra.mxu0 0.0
    %2247 = vmatprep.subr.mxu0 0.0
    %2248 = vmatpush1.msra.mxu0 0.0
    %2249 = vmatprep.subr.mxu0 0.0
    %2250 = vmatpush1.msra.mxu0 0.0
    %2251 = vmatprep.subr.mxu0 0.0
    %2252 = vmatpush1.msra.mxu0 0.0
    %2253 = vmatprep.subr.mxu0 0.0
    %2254 = vmatpush1.msra.mxu0 0.0
    %2255 = vmatprep.subr.mxu0 0.0
    %2256 = vmatpush1.msra.mxu0 0.0
    %2257 = vmatprep.subr.mxu0 0.0
    %2258 = vmatpush1.msra.mxu0 0.0
    %2259 = vmatprep.subr.mxu0 0.0
    %2260 = vmatpush1.msra.mxu0 0.0
    %2261 = vmatprep.subr.mxu0 0.0
    %2262 = vmatpush1.msra.mxu0 0.0
    %2263 = vmatprep.subr.mxu0 0.0
    %2264 = vmatpush1.msra.mxu0 0.0
    %2265 = vmatprep.subr.mxu0 0.0
    %2266 = vmatpush1.msra.mxu0 0.0
    %2267 = vmatprep.subr.mxu0 0.0
    %2268 = vmatpush1.msra.mxu0 0.0
    %2269 = vmatprep.subr.mxu0 0.0
    %2270 = vmatpush1.msra.mxu0 0.0
    %2271 = vmatprep.subr.mxu0 0.0
    %2272 = vmatpush1.msra.mxu0 0.0
    %2273 = vmatprep.subr.mxu0 0.0
    %2274 = vmatpush1.msra.mxu0 0.0
    %2275 = vmatprep.mubr.f32.mxu0 0.0
    %2276 = vmatmul.mubr.f32.gmra.mrb[0].mxu0 %v2209
    %v2277 = vpop.f32.mrb[0].mxu0
    %v2278 = vadd.f32 %v610, %v2277
    %v2279 = vpop.f32.mrb[0].mxu0
    %2280 = vdwg.mxu0
    %2282 = vrot.lane.b32.xlu0 %v2104, 96
    %v2283 = vpop.permute.xlu0 %2282
    %v2284 = vsel %vm649, %v2283, 0
    %2286 = vmatprep.subr.mxu0 0.0
    %2287 = vmatpush1.msra.mxu0 %v593
    %2288 = vmatprep.subr.mxu0 0.0
    %2289 = vmatpush1.msra.mxu0 %v594
    %2290 = vmatprep.subr.mxu0 0.0
    %2291 = vmatpush1.msra.mxu0 %v595
    %2292 = vmatprep.subr.mxu0 0.0
    %2293 = vmatpush1.msra.mxu0 %v596
    %2294 = vmatprep.subr.mxu0 0.0
    %2295 = vmatpush1.msra.mxu0 0.0
    %2296 = vmatprep.subr.mxu0 0.0
    %2297 = vmatpush1.msra.mxu0 0.0
    %2298 = vmatprep.subr.mxu0 0.0
    %2299 = vmatpush1.msra.mxu0 0.0
    %2300 = vmatprep.subr.mxu0 0.0
    %2301 = vmatpush1.msra.mxu0 0.0
    %2302 = vmatprep.subr.mxu0 0.0
    %2303 = vmatpush1.msra.mxu0 0.0
    %2304 = vmatprep.subr.mxu0 0.0
    %2305 = vmatpush1.msra.mxu0 0.0
    %2306 = vmatprep.subr.mxu0 0.0
    %2307 = vmatpush1.msra.mxu0 0.0
    %2308 = vmatprep.subr.mxu0 0.0
    %2309 = vmatpush1.msra.mxu0 0.0
    %2310 = vmatprep.subr.mxu0 0.0
    %2311 = vmatpush1.msra.mxu0 0.0
    %2312 = vmatprep.subr.mxu0 0.0
    %2313 = vmatpush1.msra.mxu0 0.0
    %2314 = vmatprep.subr.mxu0 0.0
    %2315 = vmatpush1.msra.mxu0 0.0
    %2316 = vmatprep.subr.mxu0 0.0
    %2317 = vmatpush1.msra.mxu0 0.0
    %2318 = vmatprep.subr.mxu0 0.0
    %2319 = vmatpush1.msra.mxu0 0.0
    %2320 = vmatprep.subr.mxu0 0.0
    %2321 = vmatpush1.msra.mxu0 0.0
    %2322 = vmatprep.subr.mxu0 0.0
    %2323 = vmatpush1.msra.mxu0 0.0
    %2324 = vmatprep.subr.mxu0 0.0
    %2325 = vmatpush1.msra.mxu0 0.0
    %2326 = vmatprep.subr.mxu0 0.0
    %2327 = vmatpush1.msra.mxu0 0.0
    %2328 = vmatprep.subr.mxu0 0.0
    %2329 = vmatpush1.msra.mxu0 0.0
    %2330 = vmatprep.subr.mxu0 0.0
    %2331 = vmatpush1.msra.mxu0 0.0
    %2332 = vmatprep.subr.mxu0 0.0
    %2333 = vmatpush1.msra.mxu0 0.0
    %2334 = vmatprep.subr.mxu0 0.0
    %2335 = vmatpush1.msra.mxu0 0.0
    %2336 = vmatprep.subr.mxu0 0.0
    %2337 = vmatpush1.msra.mxu0 0.0
    %2338 = vmatprep.subr.mxu0 0.0
    %2339 = vmatpush1.msra.mxu0 0.0
    %2340 = vmatprep.subr.mxu0 0.0
    %2341 = vmatpush1.msra.mxu0 0.0
    %2342 = vmatprep.subr.mxu0 0.0
    %2343 = vmatpush1.msra.mxu0 0.0
    %2344 = vmatprep.subr.mxu0 0.0
    %2345 = vmatpush1.msra.mxu0 0.0
    %2346 = vmatprep.subr.mxu0 0.0
    %2347 = vmatpush1.msra.mxu0 0.0
    %2348 = vmatprep.subr.mxu0 0.0
    %2349 = vmatpush1.msra.mxu0 0.0
    %2350 = vmatprep.mubr.f32.mxu0 0.0
    %2351 = vmatmul.mubr.f32.gmra.mrb[0].mxu0 %v2284
    %v2352 = vpop.f32.mrb[0].mxu0
    %v2353 = vadd.f32 %v625, %v2352
    %v2354 = vpop.f32.mrb[0].mxu0
    %2355 = vdwg.mxu0
    %v2356 = vadd.f32 %v2278, %v2353
    %v2357 = vxor.u32 %v2356, 2147483648
    %v2358 = vmul.f32 %v2357, 1.442695
    %v2359 = vpow.pop %v2358
    %v2360 = vadd.f32 %v2359, 1.0
    %v2361 = vrcp.pop %v2360
    %v2362 = vmul.f32 1.0, %v2361
    %2364 = vrot.lane.b32.xlu0 %v2353, 64
    %v2365 = vpop.permute.xlu0 %2364
    %v2367 = vmul.f32 %v2362, %v2365
    %2369 = vrot.lane.b32.xlu0 %v2367, 64
    %v2370 = vpop.permute.xlu0 %2369
    %v2372 = vadd.f32 %v2278, %v2370
    %v2373 = vtanh.pop %v2372
    %v2374 = vsub.f32 1.0, %v2362
    %2376 = vrot.lane.b32.xlu0 %v2373, 96
    %v2377 = vpop.permute.xlu0 %2376
    %v2379 = vmul.f32 %v2374, %v2377
    %v2380 = vmul.f32 %v2362, %v2104
    %v2381 = vadd.f32 %v2379, %v2380
    %2383 = vrot.lane.b32.xlu0 %v2381, 96
    %v2384 = vpop.permute.xlu0 %2383
    %v2385 = vsel %vm649, %v2384, 0
    %2387 = vmatprep.subr.mxu0 0.0
    %2388 = vmatpush1.msra.mxu0 %v627
    %2389 = vmatprep.subr.mxu0 0.0
    %2390 = vmatpush1.msra.mxu0 %v628
    %2391 = vmatprep.subr.mxu0 0.0
    %2392 = vmatpush1.msra.mxu0 %v629
    %2393 = vmatprep.subr.mxu0 0.0
    %2394 = vmatpush1.msra.mxu0 %v630
    %2395 = vmatprep.subr.mxu0 0.0
    %2396 = vmatpush1.msra.mxu0 0.0
    %2397 = vmatprep.subr.mxu0 0.0
    %2398 = vmatpush1.msra.mxu0 0.0
    %2399 = vmatprep.subr.mxu0 0.0
    %2400 = vmatpush1.msra.mxu0 0.0
    %2401 = vmatprep.subr.mxu0 0.0
    %2402 = vmatpush1.msra.mxu0 0.0
    %2403 = vmatprep.subr.mxu0 0.0
    %2404 = vmatpush1.msra.mxu0 0.0
    %2405 = vmatprep.subr.mxu0 0.0
    %2406 = vmatpush1.msra.mxu0 0.0
    %2407 = vmatprep.subr.mxu0 0.0
    %2408 = vmatpush1.msra.mxu0 0.0
    %2409 = vmatprep.subr.mxu0 0.0
    %2410 = vmatpush1.msra.mxu0 0.0
    %2411 = vmatprep.subr.mxu0 0.0
    %2412 = vmatpush1.msra.mxu0 0.0
    %2413 = vmatprep.subr.mxu0 0.0
    %2414 = vmatpush1.msra.mxu0 0.0
    %2415 = vmatprep.subr.mxu0 0.0
    %2416 = vmatpush1.msra.mxu0 0.0
    %2417 = vmatprep.subr.mxu0 0.0
    %2418 = vmatpush1.msra.mxu0 0.0
    %2419 = vmatprep.subr.mxu0 0.0
    %2420 = vmatpush1.msra.mxu0 0.0
    %2421 = vmatprep.subr.mxu0 0.0
    %2422 = vmatpush1.msra.mxu0 0.0
    %2423 = vmatprep.subr.mxu0 0.0
    %2424 = vmatpush1.msra.mxu0 0.0
    %2425 = vmatprep.subr.mxu0 0.0
    %2426 = vmatpush1.msra.mxu0 0.0
    %2427 = vmatprep.subr.mxu0 0.0
    %2428 = vmatpush1.msra.mxu0 0.0
    %2429 = vmatprep.subr.mxu0 0.0
    %2430 = vmatpush1.msra.mxu0 0.0
    %2431 = vmatprep.subr.mxu0 0.0
    %2432 = vmatpush1.msra.mxu0 0.0
    %2433 = vmatprep.subr.mxu0 0.0
    %2434 = vmatpush1.msra.mxu0 0.0
    %2435 = vmatprep.subr.mxu0 0.0
    %2436 = vmatpush1.msra.mxu0 0.0
    %2437 = vmatprep.subr.mxu0 0.0
    %2438 = vmatpush1.msra.mxu0 0.0
    %2439 = vmatprep.subr.mxu0 0.0
    %2440 = vmatpush1.msra.mxu0 0.0
    %2441 = vmatprep.subr.mxu0 0.0
    %2442 = vmatpush1.msra.mxu0 0.0
    %2443 = vmatprep.subr.mxu0 0.0
    %2444 = vmatpush1.msra.mxu0 0.0
    %2445 = vmatprep.subr.mxu0 0.0
    %2446 = vmatpush1.msra.mxu0 0.0
    %2447 = vmatprep.subr.mxu0 0.0
    %2448 = vmatpush1.msra.mxu0 0.0
    %2449 = vmatprep.subr.mxu0 0.0
    %2450 = vmatpush1.msra.mxu0 0.0
    %2451 = vmatprep.mubr.f32.mxu0 0.0
    %2452 = vmatmul.mubr.f32.gmra.mrb[0].mxu0 %v2385
    %v2453 = vpop.f32.mrb[0].mxu0
    %v2454 = vadd.f32 %v640, %v2453
    %v2455 = vpop.f32.mrb[0].mxu0
    %2456 = vdwg.mxu0
    %v2457 = vmax.f32 %v2454, 0.0
    %v2459 = vsel %vm649, %v2457, 0
    %2461 = vmatprep.subr.mxu0 0.0
    %2462 = vmatpush1.msra.mxu0 %v631
    %2463 = vmatprep.subr.mxu0 0.0
    %2464 = vmatpush1.msra.mxu0 %v632
    %2465 = vmatprep.subr.mxu0 0.0
    %2466 = vmatpush1.msra.mxu0 %v633
    %2467 = vmatprep.subr.mxu0 0.0
    %2468 = vmatpush1.msra.mxu0 %v634
    %2469 = vmatprep.subr.mxu0 0.0
    %2470 = vmatpush1.msra.mxu0 0.0
    %2471 = vmatprep.subr.mxu0 0.0
    %2472 = vmatpush1.msra.mxu0 0.0
    %2473 = vmatprep.subr.mxu0 0.0
    %2474 = vmatpush1.msra.mxu0 0.0
    %2475 = vmatprep.subr.mxu0 0.0
    %2476 = vmatpush1.msra.mxu0 0.0
    %2477 = vmatprep.subr.mxu0 0.0
    %2478 = vmatpush1.msra.mxu0 0.0
    %2479 = vmatprep.subr.mxu0 0.0
    %2480 = vmatpush1.msra.mxu0 0.0
    %2481 = vmatprep.subr.mxu0 0.0
    %2482 = vmatpush1.msra.mxu0 0.0
    %2483 = vmatprep.subr.mxu0 0.0
    %2484 = vmatpush1.msra.mxu0 0.0
    %2485 = vmatprep.subr.mxu0 0.0
    %2486 = vmatpush1.msra.mxu0 0.0
    %2487 = vmatprep.subr.mxu0 0.0
    %2488 = vmatpush1.msra.mxu0 0.0
    %2489 = vmatprep.subr.mxu0 0.0
    %2490 = vmatpush1.msra.mxu0 0.0
    %2491 = vmatprep.subr.mxu0 0.0
    %2492 = vmatpush1.msra.mxu0 0.0
    %2493 = vmatprep.subr.mxu0 0.0
    %2494 = vmatpush1.msra.mxu0 0.0
    %2495 = vmatprep.subr.mxu0 0.0
    %2496 = vmatpush1.msra.mxu0 0.0
    %2497 = vmatprep.subr.mxu0 0.0
    %2498 = vmatpush1.msra.mxu0 0.0
    %2499 = vmatprep.subr.mxu0 0.0
    %2500 = vmatpush1.msra.mxu0 0.0
    %2501 = vmatprep.subr.mxu0 0.0
    %2502 = vmatpush1.msra.mxu0 0.0
    %2503 = vmatprep.subr.mxu0 0.0
    %2504 = vmatpush1.msra.mxu0 0.0
    %2505 = vmatprep.subr.mxu0 0.0
    %2506 = vmatpush1.msra.mxu0 0.0
    %2507 = vmatprep.subr.mxu0 0.0
    %2508 = vmatpush1.msra.mxu0 0.0
    %2509 = vmatprep.subr.mxu0 0.0
    %2510 = vmatpush1.msra.mxu0 0.0
    %2511 = vmatprep.subr.mxu0 0.0
    %2512 = vmatpush1.msra.mxu0 0.0
    %2513 = vmatprep.subr.mxu0 0.0
    %2514 = vmatpush1.msra.mxu0 0.0
    %2515 = vmatprep.subr.mxu0 0.0
    %2516 = vmatpush1.msra.mxu0 0.0
    %2517 = vmatprep.subr.mxu0 0.0
    %2518 = vmatpush1.msra.mxu0 0.0
    %2519 = vmatprep.subr.mxu0 0.0
    %2520 = vmatpush1.msra.mxu0 0.0
    %2521 = vmatprep.subr.mxu0 0.0
    %2522 = vmatpush1.msra.mxu0 0.0
    %2523 = vmatprep.subr.mxu0 0.0
    %2524 = vmatpush1.msra.mxu0 0.0
    %2525 = vmatprep.mubr.f32.mxu0 0.0
    %2526 = vmatmul.mubr.f32.gmra.mrb[0].mxu0 %v2459
    %v2527 = vpop.f32.mrb[0].mxu0
    %v2528 = vadd.f32 %v647, %v2527
    %v2529 = vpop.f32.mrb[0].mxu0
    %2530 = vdwg.mxu0
    %v2532 = vsel %vm649, %v2528, 0
    %2534 = vmatprep.subr.mxu0 0.0
    %2535 = vmatpush1.msra.mxu0 %v579
    %2536 = vmatprep.subr.mxu0 0.0
    %2537 = vmatpush1.msra.mxu0 %v580
    %2538 = vmatprep.subr.mxu0 0.0
    %2539 = vmatpush1.msra.mxu0 %v581
    %2540 = vmatprep.subr.mxu0 0.0
    %2541 = vmatpush1.msra.mxu0 %v582
    %2542 = vmatprep.subr.mxu0 0.0
    %2543 = vmatpush1.msra.mxu0 0.0
    %2544 = vmatprep.subr.mxu0 0.0
    %2545 = vmatpush1.msra.mxu0 0.0
    %2546 = vmatprep.subr.mxu0 0.0
    %2547 = vmatpush1.msra.mxu0 0.0
    %2548 = vmatprep.subr.mxu0 0.0
    %2549 = vmatpush1.msra.mxu0 0.0
    %2550 = vmatprep.subr.mxu0 0.0
    %2551 = vmatpush1.msra.mxu0 0.0
    %2552 = vmatprep.subr.mxu0 0.0
    %2553 = vmatpush1.msra.mxu0 0.0
    %2554 = vmatprep.subr.mxu0 0.0
    %2555 = vmatpush1.msra.mxu0 0.0
    %2556 = vmatprep.subr.mxu0 0.0
    %2557 = vmatpush1.msra.mxu0 0.0
    %2558 = vmatprep.subr.mxu0 0.0
    %2559 = vmatpush1.msra.mxu0 0.0
    %2560 = vmatprep.subr.mxu0 0.0
    %2561 = vmatpush1.msra.mxu0 0.0
    %2562 = vmatprep.subr.mxu0 0.0
    %2563 = vmatpush1.msra.mxu0 0.0
    %2564 = vmatprep.subr.mxu0 0.0
    %2565 = vmatpush1.msra.mxu0 0.0
    %2566 = vmatprep.subr.mxu0 0.0
    %2567 = vmatpush1.msra.mxu0 0.0
    %2568 = vmatprep.subr.mxu0 0.0
    %2569 = vmatpush1.msra.mxu0 0.0
    %2570 = vmatprep.subr.mxu0 0.0
    %2571 = vmatpush1.msra.mxu0 0.0
    %2572 = vmatprep.subr.mxu0 0.0
    %2573 = vmatpush1.msra.mxu0 0.0
    %2574 = vmatprep.subr.mxu0 0.0
    %2575 = vmatpush1.msra.mxu0 0.0
    %2576 = vmatprep.subr.mxu0 0.0
    %2577 = vmatpush1.msra.mxu0 0.0
    %2578 = vmatprep.subr.mxu0 0.0
    %2579 = vmatpush1.msra.mxu0 0.0
    %2580 = vmatprep.subr.mxu0 0.0
    %2581 = vmatpush1.msra.mxu0 0.0
    %2582 = vmatprep.subr.mxu0 0.0
    %2583 = vmatpush1.msra.mxu0 0.0
    %2584 = vmatprep.subr.mxu0 0.0
    %2585 = vmatpush1.msra.mxu0 0.0
    %2586 = vmatprep.subr.mxu0 0.0
    %2587 = vmatpush1.msra.mxu0 0.0
    %2588 = vmatprep.subr.mxu0 0.0
    %2589 = vmatpush1.msra.mxu0 0.0
    %2590 = vmatprep.subr.mxu0 0.0
    %2591 = vmatpush1.msra.mxu0 0.0
    %2592 = vmatprep.subr.mxu0 0.0
    %2593 = vmatpush1.msra.mxu0 0.0
    %2594 = vmatprep.subr.mxu0 0.0
    %2595 = vmatpush1.msra.mxu0 0.0
    %2596 = vmatprep.subr.mxu0 0.0
    %2597 = vmatpush1.msra.mxu0 0.0
    %2598 = vmatprep.mubr.f32.mxu0 0.0
    %2599 = vmatmul.mubr.f32.gmra.mrb[0].mxu0 %v2532
    %v2600 = vpop.f32.mrb[0].mxu0
    %v2601 = vadd.f32 %v602, %v2600
    %v2602 = vpop.f32.mrb[0].mxu0
    %2603 = vdwg.mxu0
    %2604 = vmatprep.subr.mxu0 0.0
    %2605 = vmatpush1.msra.mxu0 %v588
    %2606 = vmatprep.subr.mxu0 0.0
    %2607 = vmatpush1.msra.mxu0 %v589
    %2608 = vmatprep.subr.mxu0 0.0
    %2609 = vmatpush1.msra.mxu0 %v590
    %2610 = vmatprep.subr.mxu0 0.0
    %2611 = vmatpush1.msra.mxu0 %v591
    %2612 = vmatprep.subr.mxu0 0.0
    %2613 = vmatpush1.msra.mxu0 0.0
    %2614 = vmatprep.subr.mxu0 0.0
    %2615 = vmatpush1.msra.mxu0 0.0
    %2616 = vmatprep.subr.mxu0 0.0
    %2617 = vmatpush1.msra.mxu0 0.0
    %2618 = vmatprep.subr.mxu0 0.0
    %2619 = vmatpush1.msra.mxu0 0.0
    %2620 = vmatprep.subr.mxu0 0.0
    %2621 = vmatpush1.msra.mxu0 0.0
    %2622 = vmatprep.subr.mxu0 0.0
    %2623 = vmatpush1.msra.mxu0 0.0
    %2624 = vmatprep.subr.mxu0 0.0
    %2625 = vmatpush1.msra.mxu0 0.0
    %2626 = vmatprep.subr.mxu0 0.0
    %2627 = vmatpush1.msra.mxu0 0.0
    %2628 = vmatprep.subr.mxu0 0.0
    %2629 = vmatpush1.msra.mxu0 0.0
    %2630 = vmatprep.subr.mxu0 0.0
    %2631 = vmatpush1.msra.mxu0 0.0
    %2632 = vmatprep.subr.mxu0 0.0
    %2633 = vmatpush1.msra.mxu0 0.0
    %2634 = vmatprep.subr.mxu0 0.0
    %2635 = vmatpush1.msra.mxu0 0.0
    %2636 = vmatprep.subr.mxu0 0.0
    %2637 = vmatpush1.msra.mxu0 0.0
    %2638 = vmatprep.subr.mxu0 0.0
    %2639 = vmatpush1.msra.mxu0 0.0
    %2640 = vmatprep.subr.mxu0 0.0
    %2641 = vmatpush1.msra.mxu0 0.0
    %2642 = vmatprep.subr.mxu0 0.0
    %2643 = vmatpush1.msra.mxu0 0.0
    %2644 = vmatprep.subr.mxu0 0.0
    %2645 = vmatpush1.msra.mxu0 0.0
    %2646 = vmatprep.subr.mxu0 0.0
    %2647 = vmatpush1.msra.mxu0 0.0
    %2648 = vmatprep.subr.mxu0 0.0
    %2649 = vmatpush1.msra.mxu0 0.0
    %2650 = vmatprep.subr.mxu0 0.0
    %2651 = vmatpush1.msra.mxu0 0.0
    %2652 = vmatprep.subr.mxu0 0.0
    %2653 = vmatpush1.msra.mxu0 0.0
    %2654 = vmatprep.subr.mxu0 0.0
    %2655 = vmatpush1.msra.mxu0 0.0
    %2656 = vmatprep.subr.mxu0 0.0
    %2657 = vmatpush1.msra.mxu0 0.0
    %2658 = vmatprep.subr.mxu0 0.0
    %2659 = vmatpush1.msra.mxu0 0.0
    %2660 = vmatprep.subr.mxu0 0.0
    %2661 = vmatpush1.msra.mxu0 0.0
    %2662 = vmatprep.subr.mxu0 0.0
    %2663 = vmatpush1.msra.mxu0 0.0
    %2664 = vmatprep.subr.mxu0 0.0
    %2665 = vmatpush1.msra.mxu0 0.0
    %2666 = vmatprep.subr.mxu0 0.0
    %2667 = vmatpush1.msra.mxu0 0.0
    %2668 = vmatprep.mubr.f32.mxu0 0.0
    %2669 = vmatmul.mubr.f32.gmra.mrb[0].mxu0 %v2209
    %v2670 = vpop.f32.mrb[0].mxu0
    %v2671 = vadd.f32 %v617, %v2670
    %v2672 = vpop.f32.mrb[0].mxu0
    %2673 = vdwg.mxu0
    %v2674 = vadd.f32 %v2601, %v2671
    %v2675 = vxor.u32 %v2674, 2147483648
    %v2676 = vmul.f32 %v2675, 1.442695
    %v2677 = vpow.pop %v2676
    %v2678 = vadd.f32 %v2677, 1.0
    %v2679 = vrcp.pop %v2678
    %v2680 = vmul.f32 1.0, %v2679
    %2682 = vrot.lane.b32.xlu0 %v2671, 64
    %v2683 = vpop.permute.xlu0 %2682
    %v2685 = vmul.f32 %v2680, %v2683
    %2687 = vrot.lane.b32.xlu0 %v2685, 64
    %v2688 = vpop.permute.xlu0 %2687
    %v2690 = vadd.f32 %v2601, %v2688
    %v2691 = vtanh.pop %v2690
    %v2692 = vsub.f32 1.0, %v2680
    %2694 = vrot.lane.b32.xlu0 %v2691, 96
    %v2695 = vpop.permute.xlu0 %2694
    %v2697 = vmul.f32 %v2692, %v2695
    %v2699 = vmul.f32 %v2680, %v2206
    %v2700 = vadd.f32 %v2697, %v2699
    %2702 = vrot.lane.b32.xlu0 %v2700, 96
    %v2703 = vpop.permute.xlu0 %2702
    %v2704 = vsel %vm649, %v2703, 0
    %2706 = vmatprep.subr.mxu0 0.0
    %2707 = vmatpush1.msra.mxu0 %v584
    %2708 = vmatprep.subr.mxu0 0.0
    %2709 = vmatpush1.msra.mxu0 %v585
    %2710 = vmatprep.subr.mxu0 0.0
    %2711 = vmatpush1.msra.mxu0 %v586
    %2712 = vmatprep.subr.mxu0 0.0
    %2713 = vmatpush1.msra.mxu0 %v587
    %2714 = vmatprep.subr.mxu0 0.0
    %2715 = vmatpush1.msra.mxu0 0.0
    %2716 = vmatprep.subr.mxu0 0.0
    %2717 = vmatpush1.msra.mxu0 0.0
    %2718 = vmatprep.subr.mxu0 0.0
    %2719 = vmatpush1.msra.mxu0 0.0
    %2720 = vmatprep.subr.mxu0 0.0
    %2721 = vmatpush1.msra.mxu0 0.0
    %2722 = vmatprep.subr.mxu0 0.0
    %2723 = vmatpush1.msra.mxu0 0.0
    %2724 = vmatprep.subr.mxu0 0.0
    %2725 = vmatpush1.msra.mxu0 0.0
    %2726 = vmatprep.subr.mxu0 0.0
    %2727 = vmatpush1.msra.mxu0 0.0
    %2728 = vmatprep.subr.mxu0 0.0
    %2729 = vmatpush1.msra.mxu0 0.0
    %2730 = vmatprep.subr.mxu0 0.0
    %2731 = vmatpush1.msra.mxu0 0.0
    %2732 = vmatprep.subr.mxu0 0.0
    %2733 = vmatpush1.msra.mxu0 0.0
    %2734 = vmatprep.subr.mxu0 0.0
    %2735 = vmatpush1.msra.mxu0 0.0
    %2736 = vmatprep.subr.mxu0 0.0
    %2737 = vmatpush1.msra.mxu0 0.0
    %2738 = vmatprep.subr.mxu0 0.0
    %2739 = vmatpush1.msra.mxu0 0.0
    %2740 = vmatprep.subr.mxu0 0.0
    %2741 = vmatpush1.msra.mxu0 0.0
    %2742 = vmatprep.subr.mxu0 0.0
    %2743 = vmatpush1.msra.mxu0 0.0
    %2744 = vmatprep.subr.mxu0 0.0
    %2745 = vmatpush1.msra.mxu0 0.0
    %2746 = vmatprep.subr.mxu0 0.0
    %2747 = vmatpush1.msra.mxu0 0.0
    %2748 = vmatprep.subr.mxu0 0.0
    %2749 = vmatpush1.msra.mxu0 0.0
    %2750 = vmatprep.subr.mxu0 0.0
    %2751 = vmatpush1.msra.mxu0 0.0
    %2752 = vmatprep.subr.mxu0 0.0
    %2753 = vmatpush1.msra.mxu0 0.0
    %2754 = vmatprep.subr.mxu0 0.0
    %2755 = vmatpush1.msra.mxu0 0.0
    %2756 = vmatprep.subr.mxu0 0.0
    %2757 = vmatpush1.msra.mxu0 0.0
    %2758 = vmatprep.subr.mxu0 0.0
    %2759 = vmatpush1.msra.mxu0 0.0
    %2760 = vmatprep.subr.mxu0 0.0
    %2761 = vmatpush1.msra.mxu0 0.0
    %2762 = vmatprep.subr.mxu0 0.0
    %2763 = vmatpush1.msra.mxu0 0.0
    %2764 = vmatprep.subr.mxu0 0.0
    %2765 = vmatpush1.msra.mxu0 0.0
    %2766 = vmatprep.subr.mxu0 0.0
    %2767 = vmatpush1.msra.mxu0 0.0
    %2768 = vmatprep.subr.mxu0 0.0
    %2769 = vmatpush1.msra.mxu0 0.0
    %2770 = vmatprep.mubr.f32.mxu0 0.0
    %2771 = vmatmul.mubr.f32.gmra.mrb[0].mxu0 %v2704
    %v2772 = vpop.f32.mrb[0].mxu0
    %v2773 = vadd.f32 %v610, %v2772
    %v2774 = vpop.f32.mrb[0].mxu0
    %2775 = vdwg.mxu0
    %2776 = vmatprep.subr.mxu0 0.0
    %2777 = vmatpush1.msra.mxu0 %v593
    %2778 = vmatprep.subr.mxu0 0.0
    %2779 = vmatpush1.msra.mxu0 %v594
    %2780 = vmatprep.subr.mxu0 0.0
    %2781 = vmatpush1.msra.mxu0 %v595
    %2782 = vmatprep.subr.mxu0 0.0
    %2783 = vmatpush1.msra.mxu0 %v596
    %2784 = vmatprep.subr.mxu0 0.0
    %2785 = vmatpush1.msra.mxu0 0.0
    %2786 = vmatprep.subr.mxu0 0.0
    %2787 = vmatpush1.msra.mxu0 0.0
    %2788 = vmatprep.subr.mxu0 0.0
    %2789 = vmatpush1.msra.mxu0 0.0
    %2790 = vmatprep.subr.mxu0 0.0
    %2791 = vmatpush1.msra.mxu0 0.0
    %2792 = vmatprep.subr.mxu0 0.0
    %2793 = vmatpush1.msra.mxu0 0.0
    %2794 = vmatprep.subr.mxu0 0.0
    %2795 = vmatpush1.msra.mxu0 0.0
    %2796 = vmatprep.subr.mxu0 0.0
    %2797 = vmatpush1.msra.mxu0 0.0
    %2798 = vmatprep.subr.mxu0 0.0
    %2799 = vmatpush1.msra.mxu0 0.0
    %2800 = vmatprep.subr.mxu0 0.0
    %2801 = vmatpush1.msra.mxu0 0.0
    %2802 = vmatprep.subr.mxu0 0.0
    %2803 = vmatpush1.msra.mxu0 0.0
    %2804 = vmatprep.subr.mxu0 0.0
    %2805 = vmatpush1.msra.mxu0 0.0
    %2806 = vmatprep.subr.mxu0 0.0
    %2807 = vmatpush1.msra.mxu0 0.0
    %2808 = vmatprep.subr.mxu0 0.0
    %2809 = vmatpush1.msra.mxu0 0.0
    %2810 = vmatprep.subr.mxu0 0.0
    %2811 = vmatpush1.msra.mxu0 0.0
    %2812 = vmatprep.subr.mxu0 0.0
    %2813 = vmatpush1.msra.mxu0 0.0
    %2814 = vmatprep.subr.mxu0 0.0
    %2815 = vmatpush1.msra.mxu0 0.0
    %2816 = vmatprep.subr.mxu0 0.0
    %2817 = vmatpush1.msra.mxu0 0.0
    %2818 = vmatprep.subr.mxu0 0.0
    %2819 = vmatpush1.msra.mxu0 0.0
    %2820 = vmatprep.subr.mxu0 0.0
    %2821 = vmatpush1.msra.mxu0 0.0
    %2822 = vmatprep.subr.mxu0 0.0
    %2823 = vmatpush1.msra.mxu0 0.0
    %2824 = vmatprep.subr.mxu0 0.0
    %2825 = vmatpush1.msra.mxu0 0.0
    %2826 = vmatprep.subr.mxu0 0.0
    %2827 = vmatpush1.msra.mxu0 0.0
    %2828 = vmatprep.subr.mxu0 0.0
    %2829 = vmatpush1.msra.mxu0 0.0
    %2830 = vmatprep.subr.mxu0 0.0
    %2831 = vmatpush1.msra.mxu0 0.0
    %2832 = vmatprep.subr.mxu0 0.0
    %2833 = vmatpush1.msra.mxu0 0.0
    %2834 = vmatprep.subr.mxu0 0.0
    %2835 = vmatpush1.msra.mxu0 0.0
    %2836 = vmatprep.subr.mxu0 0.0
    %2837 = vmatpush1.msra.mxu0 0.0
    %2838 = vmatprep.subr.mxu0 0.0
    %2839 = vmatpush1.msra.mxu0 0.0
    %2840 = vmatprep.mubr.f32.mxu0 0.0
    %2841 = vmatmul.mubr.f32.gmra.mrb[0].mxu0 %v2385
    %v2842 = vpop.f32.mrb[0].mxu0
    %v2843 = vadd.f32 %v625, %v2842
    %v2844 = vpop.f32.mrb[0].mxu0
    %2845 = vdwg.mxu0
    %v2846 = vadd.f32 %v2773, %v2843
    %v2847 = vxor.u32 %v2846, 2147483648
    %v2848 = vmul.f32 %v2847, 1.442695
    %v2849 = vpow.pop %v2848
    %v2850 = vadd.f32 %v2849, 1.0
    %v2851 = vrcp.pop %v2850
    %v2852 = vmul.f32 1.0, %v2851
    %2854 = vrot.lane.b32.xlu0 %v2843, 64
    %v2855 = vpop.permute.xlu0 %2854
    %v2857 = vmul.f32 %v2852, %v2855
    %2859 = vrot.lane.b32.xlu0 %v2857, 64
    %v2860 = vpop.permute.xlu0 %2859
    %v2862 = vadd.f32 %v2773, %v2860
    %v2863 = vtanh.pop %v2862
    %v2864 = vsub.f32 1.0, %v2852
    %2866 = vrot.lane.b32.xlu0 %v2863, 96
    %v2867 = vpop.permute.xlu0 %2866
    %v2869 = vmul.f32 %v2864, %v2867
    %v2870 = vmul.f32 %v2852, %v2381
    %v2871 = vadd.f32 %v2869, %v2870
    %2873 = vrot.lane.b32.xlu0 %v2871, 96
    %v2874 = vpop.permute.xlu0 %2873
    %v2875 = vsel %vm649, %v2874, 0
    %2877 = vmatprep.subr.mxu0 0.0
    %2878 = vmatpush1.msra.mxu0 %v627
    %2879 = vmatprep.subr.mxu0 0.0
    %2880 = vmatpush1.msra.mxu0 %v628
    %2881 = vmatprep.subr.mxu0 0.0
    %2882 = vmatpush1.msra.mxu0 %v629
    %2883 = vmatprep.subr.mxu0 0.0
    %2884 = vmatpush1.msra.mxu0 %v630
    %2885 = vmatprep.subr.mxu0 0.0
    %2886 = vmatpush1.msra.mxu0 0.0
    %2887 = vmatprep.subr.mxu0 0.0
    %2888 = vmatpush1.msra.mxu0 0.0
    %2889 = vmatprep.subr.mxu0 0.0
    %2890 = vmatpush1.msra.mxu0 0.0
    %2891 = vmatprep.subr.mxu0 0.0
    %2892 = vmatpush1.msra.mxu0 0.0
    %2893 = vmatprep.subr.mxu0 0.0
    %2894 = vmatpush1.msra.mxu0 0.0
    %2895 = vmatprep.subr.mxu0 0.0
    %2896 = vmatpush1.msra.mxu0 0.0
    %2897 = vmatprep.subr.mxu0 0.0
    %2898 = vmatpush1.msra.mxu0 0.0
    %2899 = vmatprep.subr.mxu0 0.0
    %2900 = vmatpush1.msra.mxu0 0.0
    %2901 = vmatprep.subr.mxu0 0.0
    %2902 = vmatpush1.msra.mxu0 0.0
    %2903 = vmatprep.subr.mxu0 0.0
    %2904 = vmatpush1.msra.mxu0 0.0
    %2905 = vmatprep.subr.mxu0 0.0
    %2906 = vmatpush1.msra.mxu0 0.0
    %2907 = vmatprep.subr.mxu0 0.0
    %2908 = vmatpush1.msra.mxu0 0.0
    %2909 = vmatprep.subr.mxu0 0.0
    %2910 = vmatpush1.msra.mxu0 0.0
    %2911 = vmatprep.subr.mxu0 0.0
    %2912 = vmatpush1.msra.mxu0 0.0
    %2913 = vmatprep.subr.mxu0 0.0
    %2914 = vmatpush1.msra.mxu0 0.0
    %2915 = vmatprep.subr.mxu0 0.0
    %2916 = vmatpush1.msra.mxu0 0.0
    %2917 = vmatprep.subr.mxu0 0.0
    %2918 = vmatpush1.msra.mxu0 0.0
    %2919 = vmatprep.subr.mxu0 0.0
    %2920 = vmatpush1.msra.mxu0 0.0
    %2921 = vmatprep.subr.mxu0 0.0
    %2922 = vmatpush1.msra.mxu0 0.0
    %2923 = vmatprep.subr.mxu0 0.0
    %2924 = vmatpush1.msra.mxu0 0.0
    %2925 = vmatprep.subr.mxu0 0.0
    %2926 = vmatpush1.msra.mxu0 0.0
    %2927 = vmatprep.subr.mxu0 0.0
    %2928 = vmatpush1.msra.mxu0 0.0
    %2929 = vmatprep.subr.mxu0 0.0
    %2930 = vmatpush1.msra.mxu0 0.0
    %2931 = vmatprep.subr.mxu0 0.0
    %2932 = vmatpush1.msra.mxu0 0.0
    %2933 = vmatprep.subr.mxu0 0.0
    %2934 = vmatpush1.msra.mxu0 0.0
    %2935 = vmatprep.subr.mxu0 0.0
    %2936 = vmatpush1.msra.mxu0 0.0
    %2937 = vmatprep.subr.mxu0 0.0
    %2938 = vmatpush1.msra.mxu0 0.0
    %2939 = vmatprep.subr.mxu0 0.0
    %2940 = vmatpush1.msra.mxu0 0.0
    %2941 = vmatprep.mubr.f32.mxu0 0.0
    %2942 = vmatmul.mubr.f32.gmra.mrb[0].mxu0 %v2875
    %v2943 = vpop.f32.mrb[0].mxu0
    %v2944 = vadd.f32 %v640, %v2943
    %v2945 = vpop.f32.mrb[0].mxu0
    %2946 = vdwg.mxu0
    %v2947 = vmax.f32 %v2944, 0.0
    %v2949 = vsel %vm649, %v2947, 0
    %2951 = vmatprep.subr.mxu0 0.0
    %2952 = vmatpush1.msra.mxu0 %v631
    %2953 = vmatprep.subr.mxu0 0.0
    %2954 = vmatpush1.msra.mxu0 %v632
    %2955 = vmatprep.subr.mxu0 0.0
    %2956 = vmatpush1.msra.mxu0 %v633
    %2957 = vmatprep.subr.mxu0 0.0
    %2958 = vmatpush1.msra.mxu0 %v634
    %2959 = vmatprep.subr.mxu0 0.0
    %2960 = vmatpush1.msra.mxu0 0.0
    %2961 = vmatprep.subr.mxu0 0.0
    %2962 = vmatpush1.msra.mxu0 0.0
    %2963 = vmatprep.subr.mxu0 0.0
    %2964 = vmatpush1.msra.mxu0 0.0
    %2965 = vmatprep.subr.mxu0 0.0
    %2966 = vmatpush1.msra.mxu0 0.0
    %2967 = vmatprep.subr.mxu0 0.0
    %2968 = vmatpush1.msra.mxu0 0.0
    %2969 = vmatprep.subr.mxu0 0.0
    %2970 = vmatpush1.msra.mxu0 0.0
    %2971 = vmatprep.subr.mxu0 0.0
    %2972 = vmatpush1.msra.mxu0 0.0
    %2973 = vmatprep.subr.mxu0 0.0
    %2974 = vmatpush1.msra.mxu0 0.0
    %2975 = vmatprep.subr.mxu0 0.0
    %2976 = vmatpush1.msra.mxu0 0.0
    %2977 = vmatprep.subr.mxu0 0.0
    %2978 = vmatpush1.msra.mxu0 0.0
    %2979 = vmatprep.subr.mxu0 0.0
    %2980 = vmatpush1.msra.mxu0 0.0
    %2981 = vmatprep.subr.mxu0 0.0
    %2982 = vmatpush1.msra.mxu0 0.0
    %2983 = vmatprep.subr.mxu0 0.0
    %2984 = vmatpush1.msra.mxu0 0.0
    %2985 = vmatprep.subr.mxu0 0.0
    %2986 = vmatpush1.msra.mxu0 0.0
    %2987 = vmatprep.subr.mxu0 0.0
    %2988 = vmatpush1.msra.mxu0 0.0
    %2989 = vmatprep.subr.mxu0 0.0
    %2990 = vmatpush1.msra.mxu0 0.0
    %2991 = vmatprep.subr.mxu0 0.0
    %2992 = vmatpush1.msra.mxu0 0.0
    %2993 = vmatprep.subr.mxu0 0.0
    %2994 = vmatpush1.msra.mxu0 0.0
    %2995 = vmatprep.subr.mxu0 0.0
    %2996 = vmatpush1.msra.mxu0 0.0
    %2997 = vmatprep.subr.mxu0 0.0
    %2998 = vmatpush1.msra.mxu0 0.0
    %2999 = vmatprep.subr.mxu0 0.0
    %3000 = vmatpush1.msra.mxu0 0.0
    %3001 = vmatprep.subr.mxu0 0.0
    %3002 = vmatpush1.msra.mxu0 0.0
    %3003 = vmatprep.subr.mxu0 0.0
    %3004 = vmatpush1.msra.mxu0 0.0
    %3005 = vmatprep.subr.mxu0 0.0
    %3006 = vmatpush1.msra.mxu0 0.0
    %3007 = vmatprep.subr.mxu0 0.0
    %3008 = vmatpush1.msra.mxu0 0.0
    %3009 = vmatprep.subr.mxu0 0.0
    %3010 = vmatpush1.msra.mxu0 0.0
    %3011 = vmatprep.subr.mxu0 0.0
    %3012 = vmatpush1.msra.mxu0 0.0
    %3013 = vmatprep.subr.mxu0 0.0
    %3014 = vmatpush1.msra.mxu0 0.0
    %3015 = vmatprep.mubr.f32.mxu0 0.0
    %3016 = vmatmul.mubr.f32.gmra.mrb[0].mxu0 %v2949
    %v3017 = vpop.f32.mrb[0].mxu0
    %v3018 = vadd.f32 %v647, %v3017
    %v3019 = vpop.f32.mrb[0].mxu0
    %3020 = vdwg.mxu0
    %v3022 = vunpack.c.l.s4 1966171168
    %v3023 = vunpack.c.0.s8 %v3022
    %v3024 = vlaneseq
    %v3025 = vshrl.u32 %v3024, 7
    %v3026 = vsub.s32 %v3023, %v3025
    %v3027 = vrot.slane %v2528, %v3026
    %v3028 = vcombine.high %v3027, %v3027
    %v3030 = vunpack.c.l.s4 1966171168
    %v3031 = vunpack.c.0.s8 %v3030
    %v3032 = vlaneseq
    %v3033 = vshrl.u32 %v3032, 7
    %v3034 = vsub.s32 %v3031, %v3033
    %v3035 = vrot.slane %v3027, %v3034
    %v3037 = vunpack.c.l.s4 1966171168
    %v3038 = vunpack.c.0.s8 %v3037
    %v3039 = vlaneseq
    %v3040 = vshrl.u32 %v3039, 7
    %v3041 = vsub.s32 %v3038, %v3040
    %v3042 = vrot.slane %v3028, %v3041
    %v3047 = vunpack.c.l.s4 1966171168
    %v3048 = vunpack.c.0.s8 %v3047
    %v3049 = vlaneseq
    %v3050 = vshrl.u32 %v3049, 7
    %v3051 = vsub.s32 %v3048, %v3050
    %v3052 = vrot.slane %v3018, %v3051
    %v3053 = vcombine.high %v3052, %v3052
    %v3055 = vunpack.c.l.s4 1966171168
    %v3056 = vunpack.c.0.s8 %v3055
    %v3057 = vlaneseq
    %v3058 = vshrl.u32 %v3057, 7
    %v3059 = vsub.s32 %v3056, %v3058
    %v3060 = vrot.slane %v3052, %v3059
    %v3062 = vunpack.c.l.s4 1966171168
    %v3063 = vunpack.c.0.s8 %v3062
    %v3064 = vlaneseq
    %v3065 = vshrl.u32 %v3064, 7
    %v3066 = vsub.s32 %v3063, %v3065
    %v3067 = vrot.slane %v3053, %v3066
    %v3068 = vlaneseq
    %v3069 = vshrl.u32 %v3068, 7
    %v3070 = vsub.s32 0, %v3069
    %v3071 = vrot.slane %v3060, %v3070
    %v3072 = vlaneseq
    %v3073 = vshrl.u32 %v3072, 7
    %v3074 = vsub.s32 0, %v3073
    %v3075 = vrot.slane %v3067, %v3074
    %vm3078 = vcmask 1040384
    %v3079 = vsel %vm3078, %v3035, %v3071
    %v3080 = vsel %vm3078, %v3042, %v3075
    %v3081 = vmul.f32 %v3079, %v3079
    %v3082 = vmul.f32 %v3080, %v3080
    %v3085 = vcombine.low %v3081, %v3082
    %v3087 = vunpack.c.l.s4 1983009808
    %v3088 = vunpack.c.0.s8 %v3087
    %v3089 = vlaneseq
    %v3090 = vshrl.u32 %v3089, 7
    %v3091 = vsub.s32 %v3088, %v3090
    %v3092 = vrot.slane %v3085, %v3091
    %vm3094 = vcmask 257024
    %v3095 = vsel %vm3094, %v3092, 0.0
    %3096 = vadd.xlane.f32.xlu0 %v3095
    %v3097 = vpop.xlane.xlu0 %3096
    %v3098 = vmax.f32 %v3097, 1e-24
    %v3099 = vrsqrt.pop %v3098
    %v3100 = vmul.f32 %v569, %v569
    %v3101 = vmul.f32 %v574, %v574
    %v3102 = vsel %vm649, %v3100, 0.0
    %3103 = vadd.xlane.f32.xlu0 %v3102
    %v3104 = vpop.xlane.xlu0 %3103
    %v3105 = vsel %vm649, %v3101, 0.0
    %3106 = vadd.xlane.f32.xlu0 %v3105
    %v3107 = vpop.xlane.xlu0 %3106
    %v3108 = vmax.f32 %v3104, 1e-24
    %v3109 = vmax.f32 %v3107, 1e-24
    %v3110 = vrsqrt.pop %v3108
    %v3111 = vrsqrt.pop %v3109
    %v3112 = vmul.f32 %v3099, 14.285714
    %v3115 = vunpack.c.l.s4 269488144
    %v3116 = vunpack.c.0.s8 %v3115
    %v3117 = vlaneseq
    %v3118 = vshrl.u32 %v3117, 7
    %v3119 = vsub.s32 %v3116, %v3118
    %v3120 = vrot.slane %v3112, %v3119
    %v3122 = vunpack.c.l.s4 842150450
    %v3123 = vunpack.c.0.s8 %v3122
    %v3124 = vlaneseq
    %v3125 = vshrl.u32 %v3124, 7
    %v3126 = vsub.s32 %v3123, %v3125
    %v3127 = vrot.slane %v3112, %v3126
    %v3130 = vmul.f32 %v3079, %v3120
    %v3131 = vmul.f32 %v3080, %v3127
    %v3132 = vmul.f32 %v569, %v3110
    %v3133 = vmul.f32 %v574, %v3111
    %v3136 = vcombine.low %v3130, %v3131
    %v3138 = vunpack.c.l.s4 1983009808
    %v3139 = vunpack.c.0.s8 %v3138
    %v3140 = vlaneseq
    %v3141 = vshrl.u32 %v3140, 7
    %v3142 = vsub.s32 %v3139, %v3141
    %v3143 = vrot.slane %v3136, %v3142
    %v3144 = vsel %vm649, %v3143, 0
    %v3147 = vsel %vm649, %v3132, 0
    %v3150 = vsel %vm649, %v3133, 0
    %3152 = vmatprep.subr.mxu0 0.0
    %3153 = vmatpush1.xpose.msra.mxu0 %v3147
    %3154 = vmatprep.subr.mxu0 0.0
    %3155 = vmatpush1.xpose.msra.mxu0 %v3150
    %3156 = vmatprep.subr.mxu0 0.0
    %3157 = vmatpush1.xpose.msra.mxu0 0.0
    %3158 = vmatprep.subr.mxu0 0.0
    %3159 = vmatpush1.xpose.msra.mxu0 0.0
    %3160 = vmatprep.subr.mxu0 0.0
    %3161 = vmatpush1.xpose.msra.mxu0 0.0
    %3162 = vmatprep.subr.mxu0 0.0
    %3163 = vmatpush1.xpose.msra.mxu0 0.0
    %3164 = vmatprep.subr.mxu0 0.0
    %3165 = vmatpush1.xpose.msra.mxu0 0.0
    %3166 = vmatprep.subr.mxu0 0.0
    %3167 = vmatpush1.xpose.msra.mxu0 0.0
    %3168 = vmatprep.subr.mxu0 0.0
    %3169 = vmatpush1.xpose.msra.mxu0 0.0
    %3170 = vmatprep.subr.mxu0 0.0
    %3171 = vmatpush1.xpose.msra.mxu0 0.0
    %3172 = vmatprep.subr.mxu0 0.0
    %3173 = vmatpush1.xpose.msra.mxu0 0.0
    %3174 = vmatprep.subr.mxu0 0.0
    %3175 = vmatpush1.xpose.msra.mxu0 0.0
    %3176 = vmatprep.subr.mxu0 0.0
    %3177 = vmatpush1.xpose.msra.mxu0 0.0
    %3178 = vmatprep.subr.mxu0 0.0
    %3179 = vmatpush1.xpose.msra.mxu0 0.0
    %3180 = vmatprep.subr.mxu0 0.0
    %3181 = vmatpush1.xpose.msra.mxu0 0.0
    %3182 = vmatprep.subr.mxu0 0.0
    %3183 = vmatpush1.xpose.msra.mxu0 0.0
    %3184 = vmatprep.subr.mxu0 0.0
    %3185 = vmatpush1.xpose.msra.mxu0 0.0
    %3186 = vmatprep.subr.mxu0 0.0
    %3187 = vmatpush1.xpose.msra.mxu0 0.0
    %3188 = vmatprep.subr.mxu0 0.0
    %3189 = vmatpush1.xpose.msra.mxu0 0.0
    %3190 = vmatprep.subr.mxu0 0.0
    %3191 = vmatpush1.xpose.msra.mxu0 0.0
    %3192 = vmatprep.subr.mxu0 0.0
    %3193 = vmatpush1.xpose.msra.mxu0 0.0
    %3194 = vmatprep.subr.mxu0 0.0
    %3195 = vmatpush1.xpose.msra.mxu0 0.0
    %3196 = vmatprep.subr.mxu0 0.0
    %3197 = vmatpush1.xpose.msra.mxu0 0.0
    %3198 = vmatprep.subr.mxu0 0.0
    %3199 = vmatpush1.xpose.msra.mxu0 0.0
    %3200 = vmatprep.subr.mxu0 0.0
    %3201 = vmatpush1.xpose.msra.mxu0 0.0
    %3202 = vmatprep.subr.mxu0 0.0
    %3203 = vmatpush1.xpose.msra.mxu0 0.0
    %3204 = vmatprep.subr.mxu0 0.0
    %3205 = vmatpush1.xpose.msra.mxu0 0.0
    %3206 = vmatprep.subr.mxu0 0.0
    %3207 = vmatpush1.xpose.msra.mxu0 0.0
    %3208 = vmatprep.subr.mxu0 0.0
    %3209 = vmatpush1.xpose.msra.mxu0 0.0
    %3210 = vmatprep.subr.mxu0 0.0
    %3211 = vmatpush1.xpose.msra.mxu0 0.0
    %3212 = vmatprep.subr.mxu0 0.0
    %3213 = vmatpush1.xpose.msra.mxu0 0.0
    %3214 = vmatprep.subr.mxu0 0.0
    %3215 = vmatpush1.xpose.msra.mxu0 0.0
    %3216 = vmatprep.mubr.f32.mxu0 0.0
    %3217 = vmatmul.mubr.f32.gmra.mrb[0].mxu0 %v3144
    %v3218 = vpop.f32.mrb[0].mxu0
    %v3219 = vadd.f32 0.0, %v3218
    %v3220 = vpop.f32.mrb[0].mxu0
    %3221 = vdwg.mxu0
    %vm3222 = vcmask 125952
    %3223 = vst.msk [vmem:[#allocation2] sm:$0xf] %vm3222, %v3219
    // Predicated region
    $region50: #{tpu_custom_call.1} parent=1 // pred_check
      _
    $region51: #{tpu_custom_call.1} parent=1 // pred_check_branch
      %3225 = sbr.rel (0) target = $region53
    $region52: #{tpu_custom_call.1} parent=1 // pred_region
      %s3227 = ssub.s32 64, 64
      %3228 = vsyncadd [#allocation3], %s3227
      %s3230 = sshll.u32 [#allocation2], 4
      %s3231 = int_to_ptr.vmem [resolvable:$true] %s3230
      %3233 = dma.vmem_to_hbm [thread:$0]  %s3231, 64, %s12, [#allocation3]
    $region53: #{tpu_custom_call.1} parent=1 // pred_fallthru
      _
    // Predicated region
    $region54: #{tpu_custom_call.1} parent=1 // pred_check
      _
    $region55: #{tpu_custom_call.1} parent=1 // pred_check_branch
      %3235 = sbr.rel (0) target = $region57
    $region56: #{tpu_custom_call.1} parent=1 // pred_region
      %3236 = dma.done [#allocation3], 64
    $region57: #{tpu_custom_call.1} parent=1 // pred_fallthru
      _
    %3237 = vsyncpa [#allocation3], 1

</llo_original>
